<compile_context>
chip_gen: v5e
topology: v5e:2x2
jax: 0.10.0
libtpu: 0.0.40
codegen_flags: <defaults>
</compile_context>

<pallas_src>
import numpy as np
import jax
import jax.numpy as jnp
from jax import lax
from jax.experimental import pallas as pl
from jax.experimental.pallas import tpu as pltpu

VOCAB = 50
EMB = 16
HID = 32
OUT = 5
N_LAYERS = 2
PAD_IDX = 0


# --------------------------------------------------------------------------
# Fused Pallas kernel
# --------------------------------------------------------------------------
def _make_rnn_kernel(n_layers):
    def kernel(*refs):
        tokf_ref, tokb_ref, lens_ref = refs[:3]
        layer_refs = refs[3:3 + 4 * n_layers]      # (in_f, in_b, whh_bd, bias) per layer
        fcw_ref, fcb_ref, out_ref = refs[3 + 4 * n_layers:]

        f32 = jnp.float32
        B = lens_ref.shape[0]
        TB = tokf_ref.shape[0]
        T = TB // B
        H8 = layer_refs[2].shape[1]                # whh_bd of layer 0: (2H, 8H)
        H2 = H8 // 4
        H = H2 // 2
        V = layer_refs[0].shape[0]

        # ---- layer-0 one-hots (fwd time order, bwd = time-reversed) ----------
        lane_v = lax.broadcasted_iota(jnp.int32, (TB, V), 1)
        oh_f = (tokf_ref[...] == lane_v).astype(f32)          # (T*B, V)
        oh_b = (tokb_ref[...] == lane_v).astype(f32)

        # ---- hoisted packed-sequence masks, full (B, 2H) width per step ------
        # Lanes [0:H]  belong to the fwd direction (processing time s),
        # lanes [H:2H] to the bwd direction (processing time T-1-s).
        lens = lens_ref[...]                                   # (B, 1) i32
        col = lax.broadcasted_iota(jnp.int32, (B, H2), 1)
        cmasks = []
        for s in range(T):
            t_of_col = jnp.where(col < H, s, T - 1 - s)
            cmasks.append(t_of_col < lens)                     # (B, 2H) bool

        def run_layer(xproj, whh_bd, collect):
            # xproj: (T*B, 8H); row block s holds pre-activations for the fwd
            # input at time s AND the bwd input at time T-1-s, in interleaved
            # 2H-wide gate blocks [i_f i_b | f_f f_b | g_f g_b | o_f o_b]
            # (bias already folded in).  whh_bd: (2H, 8H) block-diagonal.
            h = jnp.zeros((B, H2), f32)                        # [h_f | h_b]
            c = jnp.zeros((B, H2), f32)                        # [c_f | c_b]
            ys_f = [None] * T
            ys_b = [None] * T
            for s in range(T):
                r = jnp.dot(h, whh_bd, preferred_element_type=f32)     # (B, 8H)
                gcat = xproj[s * B:(s + 1) * B, :] + r
                sg = jax.nn.sigmoid(gcat)                      # one push over 8H
                tg = jnp.tanh(gcat)
                i = sg[:, 0 * H2:1 * H2]
                f = sg[:, 1 * H2:2 * H2]
                g = tg[:, 2 * H2:3 * H2]
                o = sg[:, 3 * H2:4 * H2]
                c_new = f * c + i * g
                h_new = o * jnp.tanh(c_new)
                m = cmasks[s]
                # packed-sequence semantics: state advances only while t < len.
                h = jnp.where(m, h_new, h)
                c = jnp.where(m, c_new, c)
                if collect:
                    # vreg-resident per-timestep outputs (off the h/c chain);
                    # padded fwd positions carry held state instead of 0s but
                    # are masked away by the next layer.
                    ys_f[s] = h[:, 0:H]
                    ys_b[T - 1 - s] = h[:, H:H2]
            return h, ys_f, ys_b

        h = None
        ys_f = ys_b = None
        for l in range(n_layers):
            inf_ref, inb_ref, whh_ref, b_ref = layer_refs[4 * l:4 * l + 4]
            if l == 0:
                # embedding folded into the projection weights (V, 8H).
                xproj = (jnp.dot(oh_f, inf_ref[...], preferred_element_type=f32)
                         + jnp.dot(oh_b, inb_ref[...], preferred_element_type=f32)
                         + b_ref[...])
            else:
                # layer input is [y_f(t) | y_b(t)]; row-block-split matmuls
                # avoid any lane concat.  Reverse-time stacks feed the bwd
                # gate columns so row block s matches (fwd@t=s, bwd@t=T-1-s).
                yf = jnp.concatenate(ys_f, axis=0)             # (T*B, H)
                yb = jnp.concatenate(ys_b, axis=0)
                yf_r = jnp.concatenate(ys_f[::-1], axis=0)
                yb_r = jnp.concatenate(ys_b[::-1], axis=0)
                inf = inf_ref[...]
                inb = inb_ref[...]
                xproj = (jnp.dot(yf, inf[0:H, :], preferred_element_type=f32)
                         + jnp.dot(yb, inf[H:H2, :], preferred_element_type=f32)
                         + jnp.dot(yf_r, inb[0:H, :], preferred_element_type=f32)
                         + jnp.dot(yb_r, inb[H:H2, :], preferred_element_type=f32)
                         + b_ref[...])
            h, ys_f, ys_b = run_layer(xproj, whh_ref[...],
                                      collect=(l < n_layers - 1))

        # ---- fc(cat(h_fwd_last, h_bwd_last)): state is already [h_f|h_b] -----
        out_ref[...] = (jnp.dot(h, fcw_ref[...], preferred_element_type=f32)
                        + fcb_ref[...])

    return kernel


# --------------------------------------------------------------------------
# Weight packing helpers (interleaved 2H-wide gate blocks [i|f|g|o])
# --------------------------------------------------------------------------
def _scatter_gates(w, direction, H):
    # w: (D, 4H), PyTorch gate order [i|f|g|o].  Returns (D, 8H) with each
    # gate's H columns placed at offset 0 (fwd) or H (bwd) of its 2H block.
    D = w.shape[0]
    out = jnp.zeros((D, 8 * H), w.dtype)
    off = 0 if direction == "f" else H
    for k in range(4):
        out = out.at[:, k * 2 * H + off: k * 2 * H + off + H].set(
            w[:, k * H:(k + 1) * H])
    return out


def _pack_whh_blockdiag(whh_f, whh_b, H):
    # (2H, 8H): rows 0:H act on h_f (fwd gate columns), rows H:2H on h_b.
    bd = jnp.zeros((2 * H, 8 * H), whh_f.dtype)
    bd = bd.at[0:H, :].set(_scatter_gates(whh_f, "f", H))
    bd = bd.at[H:2 * H, :].set(_scatter_gates(whh_b, "b", H))
    return bd


# --------------------------------------------------------------------------
# Wrapper
# --------------------------------------------------------------------------
def rnn_forward(text, text_lengths, params):
    """text: [T, B] int32 (seq-first); text_lengths: [B] int32 (sorted desc)."""
    T, B = text.shape
    H = params["lstm"][0]["whh_f"].shape[0]

    # pad batch to a full sublane group (8 rows) for aligned per-step slices
    B_pad = max(8, ((B + 7) // 8) * 8)
    text = text.astype(jnp.int32)
    lens = text_lengths.astype(jnp.int32)
    if B_pad != B:
        text = jnp.pad(text, ((0, 0), (0, B_pad - B)), constant_values=PAD_IDX)
        lens = jnp.pad(lens, (0, B_pad - B), constant_values=0)

    tok_f = text.reshape(T * B_pad, 1)
    tok_b = text[::-1, :].reshape(T * B_pad, 1)        # time-reversed token stream
    lens2 = lens.reshape(B_pad, 1)

    args = [tok_f, tok_b, lens2]
    for l, lp in enumerate(params["lstm"]):
        wf_sc = _scatter_gates(lp["wih_f"], "f", H)    # (D_in, 8H)
        wb_sc = _scatter_gates(lp["wih_b"], "b", H)
        if l == 0:
            # fold the embedding table into the layer-0 projection: (V, 8H)
            wf_sc = jnp.dot(params["embedding"], wf_sc)
            wb_sc = jnp.dot(params["embedding"], wb_sc)
        whh_bd = _pack_whh_blockdiag(lp["whh_f"], lp["whh_b"], H)
        b_int = (_scatter_gates(lp["b_f"], "f", H)
                 + _scatter_gates(lp["b_b"], "b", H))  # (1, 8H)
        args += [wf_sc, wb_sc, whh_bd, b_int]
    args += [params["fc_w"], params["fc_b"]]

    out_dim = params["fc_w"].shape[1]
    vm = pl.BlockSpec(memory_space=pltpu.MemorySpace.VMEM)
    out = pl.pallas_call(
        _make_rnn_kernel(len(params["lstm"])),
        out_shape=jax.ShapeDtypeStruct((B_pad, out_dim), jnp.float32),
        in_specs=[vm] * len(args),
        out_specs=vm,
        compiler_params=pltpu.CompilerParams(vmem_limit_bytes=32 * 1024 * 1024),
    )(*args)
    return out[:B]


# --------------------------------------------------------------------------
# Deterministic parameter init (synthetic; mirrors the module's shapes)
# --------------------------------------------------------------------------
def init_params(key):
    keys = jax.random.split(key, 2 + N_LAYERS * 6 + 2)
    it = iter(keys)
    emb = 0.1 * jax.random.normal(next(it), (VOCAB, EMB), jnp.float32)
    emb = emb.at[PAD_IDX].set(0.0)                     # padding_idx row = 0

    lstm = []
    d_in = EMB
    for _ in range(N_LAYERS):
        layer = {
            "wih_f": 0.1 * jax.random.normal(next(it), (d_in, 4 * HID), jnp.float32),
            "whh_f": 0.1 * jax.random.normal(next(it), (HID, 4 * HID), jnp.float32),
            "b_f":   0.1 * jax.random.normal(next(it), (1, 4 * HID), jnp.float32),
            "wih_b": 0.1 * jax.random.normal(next(it), (d_in, 4 * HID), jnp.float32),
            "whh_b": 0.1 * jax.random.normal(next(it), (HID, 4 * HID), jnp.float32),
            "b_b":   0.1 * jax.random.normal(next(it), (1, 4 * HID), jnp.float32),
        }
        lstm.append(layer)
        d_in = 2 * HID                                 # bidirectional stacking

    fc_w = 0.1 * jax.random.normal(next(it), (2 * HID, OUT), jnp.float32)
    fc_b = 0.1 * jax.random.normal(next(it), (1, OUT), jnp.float32)
    return {"embedding": emb, "lstm": lstm, "fc_w": fc_w, "fc_b": fc_b}


# --------------------------------------------------------------------------
# Pure numpy (float64) reference: packed bidirectional multi-layer LSTM
# --------------------------------------------------------------------------
def _rnn_reference(text, text_lengths, params):
    text = np.asarray(text)
    lens = np.asarray(text_lengths)
    emb = np.asarray(params["embedding"], np.float64)
    T, B = text.shape
    H = HID

    def sig(z):
        return 1.0 / (1.0 + np.exp(-z))

    x = emb[text]                                      # (T, B, EMB)
    hf_fin = hb_fin = None
    for lp in params["lstm"]:
        wih_f = np.asarray(lp["wih_f"], np.float64); whh_f = np.asarray(lp["whh_f"], np.float64)
        wih_b = np.asarray(lp["wih_b"], np.float64); whh_b = np.asarray(lp["whh_b"], np.float64)
        b_f = np.asarray(lp["b_f"], np.float64)[0];  b_b = np.asarray(lp["b_b"], np.float64)[0]
        y = np.zeros((T, B, 2 * H))
        hf_fin = np.zeros((B, H)); hb_fin = np.zeros((B, H))
        for b in range(B):
            L = int(lens[b])
            h = np.zeros(H); c = np.zeros(H)
            for t in range(L):
                g = x[t, b] @ wih_f + h @ whh_f + b_f
                i, f, gg, o = g[:H], g[H:2 * H], g[2 * H:3 * H], g[3 * H:]
                c = sig(f) * c + sig(i) * np.tanh(gg)
                h = sig(o) * np.tanh(c)
                y[t, b, :H] = h
            hf_fin[b] = h
            h = np.zeros(H); c = np.zeros(H)
            for t in range(L - 1, -1, -1):
                g = x[t, b] @ wih_b + h @ whh_b + b_b
                i, f, gg, o = g[:H], g[H:2 * H], g[2 * H:3 * H], g[3 * H:]
                c = sig(f) * c + sig(i) * np.tanh(gg)
                h = sig(o) * np.tanh(c)
                y[t, b, H:] = h
            hb_fin[b] = h
        x = y
    hidden = np.concatenate([hf_fin, hb_fin], axis=1)
    return hidden @ np.asarray(params["fc_w"], np.float64) + np.asarray(params["fc_b"], np.float64)[0]


if __name__ == "__main__":
    key = jax.random.PRNGKey(0)
    pkey, tkey = jax.random.split(key)
    params = init_params(pkey)

    T, B = 8, 4
    lengths = jnp.array([8, 6, 5, 3], dtype=jnp.int32)   # sorted desc (enforce_sorted)
    text = jax.random.randint(tkey, (T, B), 1, VOCAB, dtype=jnp.int32)
    t_idx = jnp.arange(T)[:, None]
    text = jnp.where(t_idx < lengths[None, :], text, PAD_IDX)  # pad beyond lengths

    logits = rnn_forward(text, lengths, params)
    jax.block_until_ready(logits)
    assert logits.shape == (B, OUT)

    ref = _rnn_reference(text, lengths, params)
    if not np.allclose(np.asarray(logits), ref, rtol=5e-3, atol=5e-3):
        raise AssertionError(
            "kernel/reference mismatch, max abs diff = "
            f"{np.max(np.abs(np.asarray(logits) - ref))}")
    print("KERNEL_OK")
</pallas_src>

<mosaic_0001>
module attributes {stable_mosaic.version = 11 : i64} {
  func.func @kernel(%arg0: memref<64x1xi32, #tpu.memory_space<vmem>>, %arg1: memref<64x1xi32, #tpu.memory_space<vmem>>, %arg2: memref<8x1xi32, #tpu.memory_space<vmem>>, %arg3: memref<50x256xf32, #tpu.memory_space<vmem>>, %arg4: memref<50x256xf32, #tpu.memory_space<vmem>>, %arg5: memref<64x256xf32, #tpu.memory_space<vmem>>, %arg6: memref<1x256xf32, #tpu.memory_space<vmem>>, %arg7: memref<64x256xf32, #tpu.memory_space<vmem>>, %arg8: memref<64x256xf32, #tpu.memory_space<vmem>>, %arg9: memref<64x256xf32, #tpu.memory_space<vmem>>, %arg10: memref<1x256xf32, #tpu.memory_space<vmem>>, %arg11: memref<64x5xf32, #tpu.memory_space<vmem>>, %arg12: memref<1x5xf32, #tpu.memory_space<vmem>>, %arg13: memref<8x5xf32, #tpu.memory_space<vmem>>) attributes {dimension_semantics = [], scalar_prefetch = 0 : i64, scratch_operands = 0 : i64, tpu.core_type = #tpu.core_type<tc>} {
    %0 = tpu.iota {dimensions = array<i32: 1>} : vector<64x50xi32>
    %c0 = arith.constant 0 : index
    %c0_0 = arith.constant 0 : index
    %1 = vector.load %arg0[%c0, %c0_0] : memref<64x1xi32, #tpu.memory_space<vmem>>, vector<64x1xi32>
    %2 = vector.broadcast %1 : vector<64x1xi32> to vector<64x50xi32>
    %3 = arith.cmpi eq, %2, %0 : vector<64x50xi32>
    %4 = arith.extui %3 : vector<64x50xi1> to vector<64x50xi32>
    %5 = arith.sitofp %4 : vector<64x50xi32> to vector<64x50xf32>
    %c0_1 = arith.constant 0 : index
    %c0_2 = arith.constant 0 : index
    %6 = vector.load %arg1[%c0_1, %c0_2] : memref<64x1xi32, #tpu.memory_space<vmem>>, vector<64x1xi32>
    %7 = vector.broadcast %6 : vector<64x1xi32> to vector<64x50xi32>
    %8 = arith.cmpi eq, %7, %0 : vector<64x50xi32>
    %9 = arith.extui %8 : vector<64x50xi1> to vector<64x50xi32>
    %10 = arith.sitofp %9 : vector<64x50xi32> to vector<64x50xf32>
    %c0_3 = arith.constant 0 : index
    %c0_4 = arith.constant 0 : index
    %11 = vector.load %arg2[%c0_3, %c0_4] : memref<8x1xi32, #tpu.memory_space<vmem>>, vector<8x1xi32>
    %12 = tpu.iota {dimensions = array<i32: 1>} : vector<8x64xi32>
    %c32_i32 = arith.constant 32 : i32
    %13 = vector.broadcast %c32_i32 : i32 to vector<8x64xi32>
    %14 = arith.cmpi slt, %12, %13 : vector<8x64xi32>
    %c0_i32 = arith.constant 0 : i32
    %c7_i32 = arith.constant 7 : i32
    %15 = vector.broadcast %c0_i32 : i32 to vector<8x64xi32>
    %16 = vector.broadcast %c7_i32 : i32 to vector<8x64xi32>
    %17 = arith.select %14, %15, %16 : vector<8x64xi1>, vector<8x64xi32>
    %18 = vector.broadcast %11 : vector<8x1xi32> to vector<8x64xi32>
    %19 = arith.cmpi slt, %17, %18 : vector<8x64xi32>
    %c32_i32_5 = arith.constant 32 : i32
    %20 = vector.broadcast %c32_i32_5 : i32 to vector<8x64xi32>
    %21 = arith.cmpi slt, %12, %20 : vector<8x64xi32>
    %c1_i32 = arith.constant 1 : i32
    %c6_i32 = arith.constant 6 : i32
    %22 = vector.broadcast %c1_i32 : i32 to vector<8x64xi32>
    %23 = vector.broadcast %c6_i32 : i32 to vector<8x64xi32>
    %24 = arith.select %21, %22, %23 : vector<8x64xi1>, vector<8x64xi32>
    %25 = vector.broadcast %11 : vector<8x1xi32> to vector<8x64xi32>
    %26 = arith.cmpi slt, %24, %25 : vector<8x64xi32>
    %c32_i32_6 = arith.constant 32 : i32
    %27 = vector.broadcast %c32_i32_6 : i32 to vector<8x64xi32>
    %28 = arith.cmpi slt, %12, %27 : vector<8x64xi32>
    %c2_i32 = arith.constant 2 : i32
    %c5_i32 = arith.constant 5 : i32
    %29 = vector.broadcast %c2_i32 : i32 to vector<8x64xi32>
    %30 = vector.broadcast %c5_i32 : i32 to vector<8x64xi32>
    %31 = arith.select %28, %29, %30 : vector<8x64xi1>, vector<8x64xi32>
    %32 = vector.broadcast %11 : vector<8x1xi32> to vector<8x64xi32>
    %33 = arith.cmpi slt, %31, %32 : vector<8x64xi32>
    %c32_i32_7 = arith.constant 32 : i32
    %34 = vector.broadcast %c32_i32_7 : i32 to vector<8x64xi32>
    %35 = arith.cmpi slt, %12, %34 : vector<8x64xi32>
    %c3_i32 = arith.constant 3 : i32
    %c4_i32 = arith.constant 4 : i32
    %36 = vector.broadcast %c3_i32 : i32 to vector<8x64xi32>
    %37 = vector.broadcast %c4_i32 : i32 to vector<8x64xi32>
    %38 = arith.select %35, %36, %37 : vector<8x64xi1>, vector<8x64xi32>
    %39 = vector.broadcast %11 : vector<8x1xi32> to vector<8x64xi32>
    %40 = arith.cmpi slt, %38, %39 : vector<8x64xi32>
    %c32_i32_8 = arith.constant 32 : i32
    %41 = vector.broadcast %c32_i32_8 : i32 to vector<8x64xi32>
    %42 = arith.cmpi slt, %12, %41 : vector<8x64xi32>
    %c4_i32_9 = arith.constant 4 : i32
    %c3_i32_10 = arith.constant 3 : i32
    %43 = vector.broadcast %c4_i32_9 : i32 to vector<8x64xi32>
    %44 = vector.broadcast %c3_i32_10 : i32 to vector<8x64xi32>
    %45 = arith.select %42, %43, %44 : vector<8x64xi1>, vector<8x64xi32>
    %46 = vector.broadcast %11 : vector<8x1xi32> to vector<8x64xi32>
    %47 = arith.cmpi slt, %45, %46 : vector<8x64xi32>
    %c32_i32_11 = arith.constant 32 : i32
    %48 = vector.broadcast %c32_i32_11 : i32 to vector<8x64xi32>
    %49 = arith.cmpi slt, %12, %48 : vector<8x64xi32>
    %c5_i32_12 = arith.constant 5 : i32
    %c2_i32_13 = arith.constant 2 : i32
    %50 = vector.broadcast %c5_i32_12 : i32 to vector<8x64xi32>
    %51 = vector.broadcast %c2_i32_13 : i32 to vector<8x64xi32>
    %52 = arith.select %49, %50, %51 : vector<8x64xi1>, vector<8x64xi32>
    %53 = vector.broadcast %11 : vector<8x1xi32> to vector<8x64xi32>
    %54 = arith.cmpi slt, %52, %53 : vector<8x64xi32>
    %c32_i32_14 = arith.constant 32 : i32
    %55 = vector.broadcast %c32_i32_14 : i32 to vector<8x64xi32>
    %56 = arith.cmpi slt, %12, %55 : vector<8x64xi32>
    %c6_i32_15 = arith.constant 6 : i32
    %c1_i32_16 = arith.constant 1 : i32
    %57 = vector.broadcast %c6_i32_15 : i32 to vector<8x64xi32>
    %58 = vector.broadcast %c1_i32_16 : i32 to vector<8x64xi32>
    %59 = arith.select %56, %57, %58 : vector<8x64xi1>, vector<8x64xi32>
    %60 = vector.broadcast %11 : vector<8x1xi32> to vector<8x64xi32>
    %61 = arith.cmpi slt, %59, %60 : vector<8x64xi32>
    %c32_i32_17 = arith.constant 32 : i32
    %62 = vector.broadcast %c32_i32_17 : i32 to vector<8x64xi32>
    %63 = arith.cmpi slt, %12, %62 : vector<8x64xi32>
    %c7_i32_18 = arith.constant 7 : i32
    %c0_i32_19 = arith.constant 0 : i32
    %64 = vector.broadcast %c7_i32_18 : i32 to vector<8x64xi32>
    %65 = vector.broadcast %c0_i32_19 : i32 to vector<8x64xi32>
    %66 = arith.select %63, %64, %65 : vector<8x64xi1>, vector<8x64xi32>
    %67 = vector.broadcast %11 : vector<8x1xi32> to vector<8x64xi32>
    %68 = arith.cmpi slt, %66, %67 : vector<8x64xi32>
    %c0_20 = arith.constant 0 : index
    %c0_21 = arith.constant 0 : index
    %69 = vector.load %arg3[%c0_20, %c0_21] : memref<50x256xf32, #tpu.memory_space<vmem>>, vector<50x256xf32>
    %cst = arith.constant dense<0.000000e+00> : vector<64x256xf32>
    %70 = tpu.matmul %5, %69, %cst {dimension_numbers = #tpu.dot_dimension_numbers<[1], [0], [0], [1], [0, 0, 1, 1], [], []>} : vector<64x50xf32>, vector<50x256xf32>, vector<64x256xf32> -> vector<64x256xf32>
    %c0_22 = arith.constant 0 : index
    %c0_23 = arith.constant 0 : index
    %71 = vector.load %arg4[%c0_22, %c0_23] : memref<50x256xf32, #tpu.memory_space<vmem>>, vector<50x256xf32>
    %cst_24 = arith.constant dense<0.000000e+00> : vector<64x256xf32>
    %72 = tpu.matmul %10, %71, %cst_24 {dimension_numbers = #tpu.dot_dimension_numbers<[1], [0], [0], [1], [0, 0, 1, 1], [], []>} : vector<64x50xf32>, vector<50x256xf32>, vector<64x256xf32> -> vector<64x256xf32>
    %73 = arith.addf %70, %72 : vector<64x256xf32>
    %c0_25 = arith.constant 0 : index
    %c0_26 = arith.constant 0 : index
    %74 = vector.load %arg6[%c0_25, %c0_26] : memref<1x256xf32, #tpu.memory_space<vmem>>, vector<1x256xf32>
    %75 = vector.broadcast %74 : vector<1x256xf32> to vector<64x256xf32>
    %76 = arith.addf %73, %75 : vector<64x256xf32>
    %c0_27 = arith.constant 0 : index
    %c0_28 = arith.constant 0 : index
    %77 = vector.load %arg5[%c0_27, %c0_28] : memref<64x256xf32, #tpu.memory_space<vmem>>, vector<64x256xf32>
    %cst_29 = arith.constant 0.000000e+00 : f32
    %78 = vector.broadcast %cst_29 : f32 to vector<8x64xf32>
    %cst_30 = arith.constant 0.000000e+00 : f32
    %79 = vector.broadcast %cst_30 : f32 to vector<8x64xf32>
    %cst_31 = arith.constant dense<0.000000e+00> : vector<8x256xf32>
    %80 = tpu.matmul %78, %77, %cst_31 {dimension_numbers = #tpu.dot_dimension_numbers<[1], [0], [0], [1], [0, 0, 1, 1], [], []>} : vector<8x64xf32>, vector<64x256xf32>, vector<8x256xf32> -> vector<8x256xf32>
    %81 = vector.extract_strided_slice %76 {offsets = [0, 0], sizes = [8, 256], strides = [1, 1]} : vector<64x256xf32> to vector<8x256xf32>
    %82 = arith.addf %81, %80 : vector<8x256xf32>
    %83 = arith.negf %82 : vector<8x256xf32>
    %84 = math.exp %83 : vector<8x256xf32>
    %cst_32 = arith.constant 1.000000e+00 : f32
    %85 = vector.broadcast %cst_32 : f32 to vector<8x256xf32>
    %86 = arith.addf %85, %84 : vector<8x256xf32>
    %87 = arith.divf %85, %86 : vector<8x256xf32>
    %88 = math.tanh %82 : vector<8x256xf32>
    %89 = vector.extract_strided_slice %87 {offsets = [0, 0], sizes = [8, 64], strides = [1, 1]} : vector<8x256xf32> to vector<8x64xf32>
    %90 = vector.extract_strided_slice %87 {offsets = [0, 64], sizes = [8, 64], strides = [1, 1]} : vector<8x256xf32> to vector<8x64xf32>
    %91 = vector.extract_strided_slice %88 {offsets = [0, 128], sizes = [8, 64], strides = [1, 1]} : vector<8x256xf32> to vector<8x64xf32>
    %92 = vector.extract_strided_slice %87 {offsets = [0, 192], sizes = [8, 64], strides = [1, 1]} : vector<8x256xf32> to vector<8x64xf32>
    %93 = arith.mulf %90, %79 : vector<8x64xf32>
    %94 = arith.mulf %89, %91 : vector<8x64xf32>
    %95 = arith.addf %93, %94 : vector<8x64xf32>
    %96 = math.tanh %95 : vector<8x64xf32>
    %97 = arith.mulf %92, %96 : vector<8x64xf32>
    %98 = arith.select %19, %97, %78 : vector<8x64xi1>, vector<8x64xf32>
    %99 = arith.select %19, %95, %79 : vector<8x64xi1>, vector<8x64xf32>
    %100 = vector.extract_strided_slice %98 {offsets = [0, 0], sizes = [8, 32], strides = [1, 1]} : vector<8x64xf32> to vector<8x32xf32>
    %101 = vector.extract_strided_slice %98 {offsets = [0, 32], sizes = [8, 32], strides = [1, 1]} : vector<8x64xf32> to vector<8x32xf32>
    %cst_33 = arith.constant dense<0.000000e+00> : vector<8x256xf32>
    %102 = tpu.matmul %98, %77, %cst_33 {dimension_numbers = #tpu.dot_dimension_numbers<[1], [0], [0], [1], [0, 0, 1, 1], [], []>} : vector<8x64xf32>, vector<64x256xf32>, vector<8x256xf32> -> vector<8x256xf32>
    %103 = vector.extract_strided_slice %76 {offsets = [8, 0], sizes = [8, 256], strides = [1, 1]} : vector<64x256xf32> to vector<8x256xf32>
    %104 = arith.addf %103, %102 : vector<8x256xf32>
    %105 = arith.negf %104 : vector<8x256xf32>
    %106 = math.exp %105 : vector<8x256xf32>
    %cst_34 = arith.constant 1.000000e+00 : f32
    %107 = vector.broadcast %cst_34 : f32 to vector<8x256xf32>
    %108 = arith.addf %107, %106 : vector<8x256xf32>
    %109 = arith.divf %107, %108 : vector<8x256xf32>
    %110 = math.tanh %104 : vector<8x256xf32>
    %111 = vector.extract_strided_slice %109 {offsets = [0, 0], sizes = [8, 64], strides = [1, 1]} : vector<8x256xf32> to vector<8x64xf32>
    %112 = vector.extract_strided_slice %109 {offsets = [0, 64], sizes = [8, 64], strides = [1, 1]} : vector<8x256xf32> to vector<8x64xf32>
    %113 = vector.extract_strided_slice %110 {offsets = [0, 128], sizes = [8, 64], strides = [1, 1]} : vector<8x256xf32> to vector<8x64xf32>
    %114 = vector.extract_strided_slice %109 {offsets = [0, 192], sizes = [8, 64], strides = [1, 1]} : vector<8x256xf32> to vector<8x64xf32>
    %115 = arith.mulf %112, %99 : vector<8x64xf32>
    %116 = arith.mulf %111, %113 : vector<8x64xf32>
    %117 = arith.addf %115, %116 : vector<8x64xf32>
    %118 = math.tanh %117 : vector<8x64xf32>
    %119 = arith.mulf %114, %118 : vector<8x64xf32>
    %120 = arith.select %26, %119, %98 : vector<8x64xi1>, vector<8x64xf32>
    %121 = arith.select %26, %117, %99 : vector<8x64xi1>, vector<8x64xf32>
    %122 = vector.extract_strided_slice %120 {offsets = [0, 0], sizes = [8, 32], strides = [1, 1]} : vector<8x64xf32> to vector<8x32xf32>
    %123 = vector.extract_strided_slice %120 {offsets = [0, 32], sizes = [8, 32], strides = [1, 1]} : vector<8x64xf32> to vector<8x32xf32>
    %cst_35 = arith.constant dense<0.000000e+00> : vector<8x256xf32>
    %124 = tpu.matmul %120, %77, %cst_35 {dimension_numbers = #tpu.dot_dimension_numbers<[1], [0], [0], [1], [0, 0, 1, 1], [], []>} : vector<8x64xf32>, vector<64x256xf32>, vector<8x256xf32> -> vector<8x256xf32>
    %125 = vector.extract_strided_slice %76 {offsets = [16, 0], sizes = [8, 256], strides = [1, 1]} : vector<64x256xf32> to vector<8x256xf32>
    %126 = arith.addf %125, %124 : vector<8x256xf32>
    %127 = arith.negf %126 : vector<8x256xf32>
    %128 = math.exp %127 : vector<8x256xf32>
    %cst_36 = arith.constant 1.000000e+00 : f32
    %129 = vector.broadcast %cst_36 : f32 to vector<8x256xf32>
    %130 = arith.addf %129, %128 : vector<8x256xf32>
    %131 = arith.divf %129, %130 : vector<8x256xf32>
    %132 = math.tanh %126 : vector<8x256xf32>
    %133 = vector.extract_strided_slice %131 {offsets = [0, 0], sizes = [8, 64], strides = [1, 1]} : vector<8x256xf32> to vector<8x64xf32>
    %134 = vector.extract_strided_slice %131 {offsets = [0, 64], sizes = [8, 64], strides = [1, 1]} : vector<8x256xf32> to vector<8x64xf32>
    %135 = vector.extract_strided_slice %132 {offsets = [0, 128], sizes = [8, 64], strides = [1, 1]} : vector<8x256xf32> to vector<8x64xf32>
    %136 = vector.extract_strided_slice %131 {offsets = [0, 192], sizes = [8, 64], strides = [1, 1]} : vector<8x256xf32> to vector<8x64xf32>
    %137 = arith.mulf %134, %121 : vector<8x64xf32>
    %138 = arith.mulf %133, %135 : vector<8x64xf32>
    %139 = arith.addf %137, %138 : vector<8x64xf32>
    %140 = math.tanh %139 : vector<8x64xf32>
    %141 = arith.mulf %136, %140 : vector<8x64xf32>
    %142 = arith.select %33, %141, %120 : vector<8x64xi1>, vector<8x64xf32>
    %143 = arith.select %33, %139, %121 : vector<8x64xi1>, vector<8x64xf32>
    %144 = vector.extract_strided_slice %142 {offsets = [0, 0], sizes = [8, 32], strides = [1, 1]} : vector<8x64xf32> to vector<8x32xf32>
    %145 = vector.extract_strided_slice %142 {offsets = [0, 32], sizes = [8, 32], strides = [1, 1]} : vector<8x64xf32> to vector<8x32xf32>
    %cst_37 = arith.constant dense<0.000000e+00> : vector<8x256xf32>
    %146 = tpu.matmul %142, %77, %cst_37 {dimension_numbers = #tpu.dot_dimension_numbers<[1], [0], [0], [1], [0, 0, 1, 1], [], []>} : vector<8x64xf32>, vector<64x256xf32>, vector<8x256xf32> -> vector<8x256xf32>
    %147 = vector.extract_strided_slice %76 {offsets = [24, 0], sizes = [8, 256], strides = [1, 1]} : vector<64x256xf32> to vector<8x256xf32>
    %148 = arith.addf %147, %146 : vector<8x256xf32>
    %149 = arith.negf %148 : vector<8x256xf32>
    %150 = math.exp %149 : vector<8x256xf32>
    %cst_38 = arith.constant 1.000000e+00 : f32
    %151 = vector.broadcast %cst_38 : f32 to vector<8x256xf32>
    %152 = arith.addf %151, %150 : vector<8x256xf32>
    %153 = arith.divf %151, %152 : vector<8x256xf32>
    %154 = math.tanh %148 : vector<8x256xf32>
    %155 = vector.extract_strided_slice %153 {offsets = [0, 0], sizes = [8, 64], strides = [1, 1]} : vector<8x256xf32> to vector<8x64xf32>
    %156 = vector.extract_strided_slice %153 {offsets = [0, 64], sizes = [8, 64], strides = [1, 1]} : vector<8x256xf32> to vector<8x64xf32>
    %157 = vector.extract_strided_slice %154 {offsets = [0, 128], sizes = [8, 64], strides = [1, 1]} : vector<8x256xf32> to vector<8x64xf32>
    %158 = vector.extract_strided_slice %153 {offsets = [0, 192], sizes = [8, 64], strides = [1, 1]} : vector<8x256xf32> to vector<8x64xf32>
    %159 = arith.mulf %156, %143 : vector<8x64xf32>
    %160 = arith.mulf %155, %157 : vector<8x64xf32>
    %161 = arith.addf %159, %160 : vector<8x64xf32>
    %162 = math.tanh %161 : vector<8x64xf32>
    %163 = arith.mulf %158, %162 : vector<8x64xf32>
    %164 = arith.select %40, %163, %142 : vector<8x64xi1>, vector<8x64xf32>
    %165 = arith.select %40, %161, %143 : vector<8x64xi1>, vector<8x64xf32>
    %166 = vector.extract_strided_slice %164 {offsets = [0, 0], sizes = [8, 32], strides = [1, 1]} : vector<8x64xf32> to vector<8x32xf32>
    %167 = vector.extract_strided_slice %164 {offsets = [0, 32], sizes = [8, 32], strides = [1, 1]} : vector<8x64xf32> to vector<8x32xf32>
    %cst_39 = arith.constant dense<0.000000e+00> : vector<8x256xf32>
    %168 = tpu.matmul %164, %77, %cst_39 {dimension_numbers = #tpu.dot_dimension_numbers<[1], [0], [0], [1], [0, 0, 1, 1], [], []>} : vector<8x64xf32>, vector<64x256xf32>, vector<8x256xf32> -> vector<8x256xf32>
    %169 = vector.extract_strided_slice %76 {offsets = [32, 0], sizes = [8, 256], strides = [1, 1]} : vector<64x256xf32> to vector<8x256xf32>
    %170 = arith.addf %169, %168 : vector<8x256xf32>
    %171 = arith.negf %170 : vector<8x256xf32>
    %172 = math.exp %171 : vector<8x256xf32>
    %cst_40 = arith.constant 1.000000e+00 : f32
    %173 = vector.broadcast %cst_40 : f32 to vector<8x256xf32>
    %174 = arith.addf %173, %172 : vector<8x256xf32>
    %175 = arith.divf %173, %174 : vector<8x256xf32>
    %176 = math.tanh %170 : vector<8x256xf32>
    %177 = vector.extract_strided_slice %175 {offsets = [0, 0], sizes = [8, 64], strides = [1, 1]} : vector<8x256xf32> to vector<8x64xf32>
    %178 = vector.extract_strided_slice %175 {offsets = [0, 64], sizes = [8, 64], strides = [1, 1]} : vector<8x256xf32> to vector<8x64xf32>
    %179 = vector.extract_strided_slice %176 {offsets = [0, 128], sizes = [8, 64], strides = [1, 1]} : vector<8x256xf32> to vector<8x64xf32>
    %180 = vector.extract_strided_slice %175 {offsets = [0, 192], sizes = [8, 64], strides = [1, 1]} : vector<8x256xf32> to vector<8x64xf32>
    %181 = arith.mulf %178, %165 : vector<8x64xf32>
    %182 = arith.mulf %177, %179 : vector<8x64xf32>
    %183 = arith.addf %181, %182 : vector<8x64xf32>
    %184 = math.tanh %183 : vector<8x64xf32>
    %185 = arith.mulf %180, %184 : vector<8x64xf32>
    %186 = arith.select %47, %185, %164 : vector<8x64xi1>, vector<8x64xf32>
    %187 = arith.select %47, %183, %165 : vector<8x64xi1>, vector<8x64xf32>
    %188 = vector.extract_strided_slice %186 {offsets = [0, 0], sizes = [8, 32], strides = [1, 1]} : vector<8x64xf32> to vector<8x32xf32>
    %189 = vector.extract_strided_slice %186 {offsets = [0, 32], sizes = [8, 32], strides = [1, 1]} : vector<8x64xf32> to vector<8x32xf32>
    %cst_41 = arith.constant dense<0.000000e+00> : vector<8x256xf32>
    %190 = tpu.matmul %186, %77, %cst_41 {dimension_numbers = #tpu.dot_dimension_numbers<[1], [0], [0], [1], [0, 0, 1, 1], [], []>} : vector<8x64xf32>, vector<64x256xf32>, vector<8x256xf32> -> vector<8x256xf32>
    %191 = vector.extract_strided_slice %76 {offsets = [40, 0], sizes = [8, 256], strides = [1, 1]} : vector<64x256xf32> to vector<8x256xf32>
    %192 = arith.addf %191, %190 : vector<8x256xf32>
    %193 = arith.negf %192 : vector<8x256xf32>
    %194 = math.exp %193 : vector<8x256xf32>
    %cst_42 = arith.constant 1.000000e+00 : f32
    %195 = vector.broadcast %cst_42 : f32 to vector<8x256xf32>
    %196 = arith.addf %195, %194 : vector<8x256xf32>
    %197 = arith.divf %195, %196 : vector<8x256xf32>
    %198 = math.tanh %192 : vector<8x256xf32>
    %199 = vector.extract_strided_slice %197 {offsets = [0, 0], sizes = [8, 64], strides = [1, 1]} : vector<8x256xf32> to vector<8x64xf32>
    %200 = vector.extract_strided_slice %197 {offsets = [0, 64], sizes = [8, 64], strides = [1, 1]} : vector<8x256xf32> to vector<8x64xf32>
    %201 = vector.extract_strided_slice %198 {offsets = [0, 128], sizes = [8, 64], strides = [1, 1]} : vector<8x256xf32> to vector<8x64xf32>
    %202 = vector.extract_strided_slice %197 {offsets = [0, 192], sizes = [8, 64], strides = [1, 1]} : vector<8x256xf32> to vector<8x64xf32>
    %203 = arith.mulf %200, %187 : vector<8x64xf32>
    %204 = arith.mulf %199, %201 : vector<8x64xf32>
    %205 = arith.addf %203, %204 : vector<8x64xf32>
    %206 = math.tanh %205 : vector<8x64xf32>
    %207 = arith.mulf %202, %206 : vector<8x64xf32>
    %208 = arith.select %54, %207, %186 : vector<8x64xi1>, vector<8x64xf32>
    %209 = arith.select %54, %205, %187 : vector<8x64xi1>, vector<8x64xf32>
    %210 = vector.extract_strided_slice %208 {offsets = [0, 0], sizes = [8, 32], strides = [1, 1]} : vector<8x64xf32> to vector<8x32xf32>
    %211 = vector.extract_strided_slice %208 {offsets = [0, 32], sizes = [8, 32], strides = [1, 1]} : vector<8x64xf32> to vector<8x32xf32>
    %cst_43 = arith.constant dense<0.000000e+00> : vector<8x256xf32>
    %212 = tpu.matmul %208, %77, %cst_43 {dimension_numbers = #tpu.dot_dimension_numbers<[1], [0], [0], [1], [0, 0, 1, 1], [], []>} : vector<8x64xf32>, vector<64x256xf32>, vector<8x256xf32> -> vector<8x256xf32>
    %213 = vector.extract_strided_slice %76 {offsets = [48, 0], sizes = [8, 256], strides = [1, 1]} : vector<64x256xf32> to vector<8x256xf32>
    %214 = arith.addf %213, %212 : vector<8x256xf32>
    %215 = arith.negf %214 : vector<8x256xf32>
    %216 = math.exp %215 : vector<8x256xf32>
    %cst_44 = arith.constant 1.000000e+00 : f32
    %217 = vector.broadcast %cst_44 : f32 to vector<8x256xf32>
    %218 = arith.addf %217, %216 : vector<8x256xf32>
    %219 = arith.divf %217, %218 : vector<8x256xf32>
    %220 = math.tanh %214 : vector<8x256xf32>
    %221 = vector.extract_strided_slice %219 {offsets = [0, 0], sizes = [8, 64], strides = [1, 1]} : vector<8x256xf32> to vector<8x64xf32>
    %222 = vector.extract_strided_slice %219 {offsets = [0, 64], sizes = [8, 64], strides = [1, 1]} : vector<8x256xf32> to vector<8x64xf32>
    %223 = vector.extract_strided_slice %220 {offsets = [0, 128], sizes = [8, 64], strides = [1, 1]} : vector<8x256xf32> to vector<8x64xf32>
    %224 = vector.extract_strided_slice %219 {offsets = [0, 192], sizes = [8, 64], strides = [1, 1]} : vector<8x256xf32> to vector<8x64xf32>
    %225 = arith.mulf %222, %209 : vector<8x64xf32>
    %226 = arith.mulf %221, %223 : vector<8x64xf32>
    %227 = arith.addf %225, %226 : vector<8x64xf32>
    %228 = math.tanh %227 : vector<8x64xf32>
    %229 = arith.mulf %224, %228 : vector<8x64xf32>
    %230 = arith.select %61, %229, %208 : vector<8x64xi1>, vector<8x64xf32>
    %231 = arith.select %61, %227, %209 : vector<8x64xi1>, vector<8x64xf32>
    %232 = vector.extract_strided_slice %230 {offsets = [0, 0], sizes = [8, 32], strides = [1, 1]} : vector<8x64xf32> to vector<8x32xf32>
    %233 = vector.extract_strided_slice %230 {offsets = [0, 32], sizes = [8, 32], strides = [1, 1]} : vector<8x64xf32> to vector<8x32xf32>
    %cst_45 = arith.constant dense<0.000000e+00> : vector<8x256xf32>
    %234 = tpu.matmul %230, %77, %cst_45 {dimension_numbers = #tpu.dot_dimension_numbers<[1], [0], [0], [1], [0, 0, 1, 1], [], []>} : vector<8x64xf32>, vector<64x256xf32>, vector<8x256xf32> -> vector<8x256xf32>
    %235 = vector.extract_strided_slice %76 {offsets = [56, 0], sizes = [8, 256], strides = [1, 1]} : vector<64x256xf32> to vector<8x256xf32>
    %236 = arith.addf %235, %234 : vector<8x256xf32>
    %237 = arith.negf %236 : vector<8x256xf32>
    %238 = math.exp %237 : vector<8x256xf32>
    %cst_46 = arith.constant 1.000000e+00 : f32
    %239 = vector.broadcast %cst_46 : f32 to vector<8x256xf32>
    %240 = arith.addf %239, %238 : vector<8x256xf32>
    %241 = arith.divf %239, %240 : vector<8x256xf32>
    %242 = math.tanh %236 : vector<8x256xf32>
    %243 = vector.extract_strided_slice %241 {offsets = [0, 0], sizes = [8, 64], strides = [1, 1]} : vector<8x256xf32> to vector<8x64xf32>
    %244 = vector.extract_strided_slice %241 {offsets = [0, 64], sizes = [8, 64], strides = [1, 1]} : vector<8x256xf32> to vector<8x64xf32>
    %245 = vector.extract_strided_slice %242 {offsets = [0, 128], sizes = [8, 64], strides = [1, 1]} : vector<8x256xf32> to vector<8x64xf32>
    %246 = vector.extract_strided_slice %241 {offsets = [0, 192], sizes = [8, 64], strides = [1, 1]} : vector<8x256xf32> to vector<8x64xf32>
    %247 = arith.mulf %244, %231 : vector<8x64xf32>
    %248 = arith.mulf %243, %245 : vector<8x64xf32>
    %249 = arith.addf %247, %248 : vector<8x64xf32>
    %250 = math.tanh %249 : vector<8x64xf32>
    %251 = arith.mulf %246, %250 : vector<8x64xf32>
    %252 = arith.select %68, %251, %230 : vector<8x64xi1>, vector<8x64xf32>
    %253 = vector.extract_strided_slice %252 {offsets = [0, 0], sizes = [8, 32], strides = [1, 1]} : vector<8x64xf32> to vector<8x32xf32>
    %254 = vector.extract_strided_slice %252 {offsets = [0, 32], sizes = [8, 32], strides = [1, 1]} : vector<8x64xf32> to vector<8x32xf32>
    %255 = tpu.concatenate %100, %122, %144, %166, %188, %210, %232, %253 in 0 : vector<8x32xf32>, vector<8x32xf32>, vector<8x32xf32>, vector<8x32xf32>, vector<8x32xf32>, vector<8x32xf32>, vector<8x32xf32>, vector<8x32xf32> -> vector<64x32xf32>
    %256 = tpu.concatenate %254, %233, %211, %189, %167, %145, %123, %101 in 0 : vector<8x32xf32>, vector<8x32xf32>, vector<8x32xf32>, vector<8x32xf32>, vector<8x32xf32>, vector<8x32xf32>, vector<8x32xf32>, vector<8x32xf32> -> vector<64x32xf32>
    %257 = tpu.concatenate %253, %232, %210, %188, %166, %144, %122, %100 in 0 : vector<8x32xf32>, vector<8x32xf32>, vector<8x32xf32>, vector<8x32xf32>, vector<8x32xf32>, vector<8x32xf32>, vector<8x32xf32>, vector<8x32xf32> -> vector<64x32xf32>
    %258 = tpu.concatenate %101, %123, %145, %167, %189, %211, %233, %254 in 0 : vector<8x32xf32>, vector<8x32xf32>, vector<8x32xf32>, vector<8x32xf32>, vector<8x32xf32>, vector<8x32xf32>, vector<8x32xf32>, vector<8x32xf32> -> vector<64x32xf32>
    %c0_47 = arith.constant 0 : index
    %c0_48 = arith.constant 0 : index
    %259 = vector.load %arg7[%c0_47, %c0_48] : memref<64x256xf32, #tpu.memory_space<vmem>>, vector<64x256xf32>
    %c0_49 = arith.constant 0 : index
    %c0_50 = arith.constant 0 : index
    %260 = vector.load %arg8[%c0_49, %c0_50] : memref<64x256xf32, #tpu.memory_space<vmem>>, vector<64x256xf32>
    %261 = vector.extract_strided_slice %259 {offsets = [0, 0], sizes = [32, 256], strides = [1, 1]} : vector<64x256xf32> to vector<32x256xf32>
    %cst_51 = arith.constant dense<0.000000e+00> : vector<64x256xf32>
    %262 = tpu.matmul %255, %261, %cst_51 {dimension_numbers = #tpu.dot_dimension_numbers<[1], [0], [0], [1], [0, 0, 1, 1], [], []>} : vector<64x32xf32>, vector<32x256xf32>, vector<64x256xf32> -> vector<64x256xf32>
    %263 = vector.extract_strided_slice %259 {offsets = [32, 0], sizes = [32, 256], strides = [1, 1]} : vector<64x256xf32> to vector<32x256xf32>
    %cst_52 = arith.constant dense<0.000000e+00> : vector<64x256xf32>
    %264 = tpu.matmul %256, %263, %cst_52 {dimension_numbers = #tpu.dot_dimension_numbers<[1], [0], [0], [1], [0, 0, 1, 1], [], []>} : vector<64x32xf32>, vector<32x256xf32>, vector<64x256xf32> -> vector<64x256xf32>
    %265 = arith.addf %262, %264 : vector<64x256xf32>
    %266 = vector.extract_strided_slice %260 {offsets = [0, 0], sizes = [32, 256], strides = [1, 1]} : vector<64x256xf32> to vector<32x256xf32>
    %cst_53 = arith.constant dense<0.000000e+00> : vector<64x256xf32>
    %267 = tpu.matmul %257, %266, %cst_53 {dimension_numbers = #tpu.dot_dimension_numbers<[1], [0], [0], [1], [0, 0, 1, 1], [], []>} : vector<64x32xf32>, vector<32x256xf32>, vector<64x256xf32> -> vector<64x256xf32>
    %268 = arith.addf %265, %267 : vector<64x256xf32>
    %269 = vector.extract_strided_slice %260 {offsets = [32, 0], sizes = [32, 256], strides = [1, 1]} : vector<64x256xf32> to vector<32x256xf32>
    %cst_54 = arith.constant dense<0.000000e+00> : vector<64x256xf32>
    %270 = tpu.matmul %258, %269, %cst_54 {dimension_numbers = #tpu.dot_dimension_numbers<[1], [0], [0], [1], [0, 0, 1, 1], [], []>} : vector<64x32xf32>, vector<32x256xf32>, vector<64x256xf32> -> vector<64x256xf32>
    %271 = arith.addf %268, %270 : vector<64x256xf32>
    %c0_55 = arith.constant 0 : index
    %c0_56 = arith.constant 0 : index
    %272 = vector.load %arg10[%c0_55, %c0_56] : memref<1x256xf32, #tpu.memory_space<vmem>>, vector<1x256xf32>
    %273 = vector.broadcast %272 : vector<1x256xf32> to vector<64x256xf32>
    %274 = arith.addf %271, %273 : vector<64x256xf32>
    %c0_57 = arith.constant 0 : index
    %c0_58 = arith.constant 0 : index
    %275 = vector.load %arg9[%c0_57, %c0_58] : memref<64x256xf32, #tpu.memory_space<vmem>>, vector<64x256xf32>
    %cst_59 = arith.constant 0.000000e+00 : f32
    %276 = vector.broadcast %cst_59 : f32 to vector<8x64xf32>
    %cst_60 = arith.constant 0.000000e+00 : f32
    %277 = vector.broadcast %cst_60 : f32 to vector<8x64xf32>
    %cst_61 = arith.constant dense<0.000000e+00> : vector<8x256xf32>
    %278 = tpu.matmul %276, %275, %cst_61 {dimension_numbers = #tpu.dot_dimension_numbers<[1], [0], [0], [1], [0, 0, 1, 1], [], []>} : vector<8x64xf32>, vector<64x256xf32>, vector<8x256xf32> -> vector<8x256xf32>
    %279 = vector.extract_strided_slice %274 {offsets = [0, 0], sizes = [8, 256], strides = [1, 1]} : vector<64x256xf32> to vector<8x256xf32>
    %280 = arith.addf %279, %278 : vector<8x256xf32>
    %281 = arith.negf %280 : vector<8x256xf32>
    %282 = math.exp %281 : vector<8x256xf32>
    %cst_62 = arith.constant 1.000000e+00 : f32
    %283 = vector.broadcast %cst_62 : f32 to vector<8x256xf32>
    %284 = arith.addf %283, %282 : vector<8x256xf32>
    %285 = arith.divf %283, %284 : vector<8x256xf32>
    %286 = math.tanh %280 : vector<8x256xf32>
    %287 = vector.extract_strided_slice %285 {offsets = [0, 0], sizes = [8, 64], strides = [1, 1]} : vector<8x256xf32> to vector<8x64xf32>
    %288 = vector.extract_strided_slice %285 {offsets = [0, 64], sizes = [8, 64], strides = [1, 1]} : vector<8x256xf32> to vector<8x64xf32>
    %289 = vector.extract_strided_slice %286 {offsets = [0, 128], sizes = [8, 64], strides = [1, 1]} : vector<8x256xf32> to vector<8x64xf32>
    %290 = vector.extract_strided_slice %285 {offsets = [0, 192], sizes = [8, 64], strides = [1, 1]} : vector<8x256xf32> to vector<8x64xf32>
    %291 = arith.mulf %288, %277 : vector<8x64xf32>
    %292 = arith.mulf %287, %289 : vector<8x64xf32>
    %293 = arith.addf %291, %292 : vector<8x64xf32>
    %294 = math.tanh %293 : vector<8x64xf32>
    %295 = arith.mulf %290, %294 : vector<8x64xf32>
    %296 = arith.select %19, %295, %276 : vector<8x64xi1>, vector<8x64xf32>
    %297 = arith.select %19, %293, %277 : vector<8x64xi1>, vector<8x64xf32>
    %cst_63 = arith.constant dense<0.000000e+00> : vector<8x256xf32>
    %298 = tpu.matmul %296, %275, %cst_63 {dimension_numbers = #tpu.dot_dimension_numbers<[1], [0], [0], [1], [0, 0, 1, 1], [], []>} : vector<8x64xf32>, vector<64x256xf32>, vector<8x256xf32> -> vector<8x256xf32>
    %299 = vector.extract_strided_slice %274 {offsets = [8, 0], sizes = [8, 256], strides = [1, 1]} : vector<64x256xf32> to vector<8x256xf32>
    %300 = arith.addf %299, %298 : vector<8x256xf32>
    %301 = arith.negf %300 : vector<8x256xf32>
    %302 = math.exp %301 : vector<8x256xf32>
    %cst_64 = arith.constant 1.000000e+00 : f32
    %303 = vector.broadcast %cst_64 : f32 to vector<8x256xf32>
    %304 = arith.addf %303, %302 : vector<8x256xf32>
    %305 = arith.divf %303, %304 : vector<8x256xf32>
    %306 = math.tanh %300 : vector<8x256xf32>
    %307 = vector.extract_strided_slice %305 {offsets = [0, 0], sizes = [8, 64], strides = [1, 1]} : vector<8x256xf32> to vector<8x64xf32>
    %308 = vector.extract_strided_slice %305 {offsets = [0, 64], sizes = [8, 64], strides = [1, 1]} : vector<8x256xf32> to vector<8x64xf32>
    %309 = vector.extract_strided_slice %306 {offsets = [0, 128], sizes = [8, 64], strides = [1, 1]} : vector<8x256xf32> to vector<8x64xf32>
    %310 = vector.extract_strided_slice %305 {offsets = [0, 192], sizes = [8, 64], strides = [1, 1]} : vector<8x256xf32> to vector<8x64xf32>
    %311 = arith.mulf %308, %297 : vector<8x64xf32>
    %312 = arith.mulf %307, %309 : vector<8x64xf32>
    %313 = arith.addf %311, %312 : vector<8x64xf32>
    %314 = math.tanh %313 : vector<8x64xf32>
    %315 = arith.mulf %310, %314 : vector<8x64xf32>
    %316 = arith.select %26, %315, %296 : vector<8x64xi1>, vector<8x64xf32>
    %317 = arith.select %26, %313, %297 : vector<8x64xi1>, vector<8x64xf32>
    %cst_65 = arith.constant dense<0.000000e+00> : vector<8x256xf32>
    %318 = tpu.matmul %316, %275, %cst_65 {dimension_numbers = #tpu.dot_dimension_numbers<[1], [0], [0], [1], [0, 0, 1, 1], [], []>} : vector<8x64xf32>, vector<64x256xf32>, vector<8x256xf32> -> vector<8x256xf32>
    %319 = vector.extract_strided_slice %274 {offsets = [16, 0], sizes = [8, 256], strides = [1, 1]} : vector<64x256xf32> to vector<8x256xf32>
    %320 = arith.addf %319, %318 : vector<8x256xf32>
    %321 = arith.negf %320 : vector<8x256xf32>
    %322 = math.exp %321 : vector<8x256xf32>
    %cst_66 = arith.constant 1.000000e+00 : f32
    %323 = vector.broadcast %cst_66 : f32 to vector<8x256xf32>
    %324 = arith.addf %323, %322 : vector<8x256xf32>
    %325 = arith.divf %323, %324 : vector<8x256xf32>
    %326 = math.tanh %320 : vector<8x256xf32>
    %327 = vector.extract_strided_slice %325 {offsets = [0, 0], sizes = [8, 64], strides = [1, 1]} : vector<8x256xf32> to vector<8x64xf32>
    %328 = vector.extract_strided_slice %325 {offsets = [0, 64], sizes = [8, 64], strides = [1, 1]} : vector<8x256xf32> to vector<8x64xf32>
    %329 = vector.extract_strided_slice %326 {offsets = [0, 128], sizes = [8, 64], strides = [1, 1]} : vector<8x256xf32> to vector<8x64xf32>
    %330 = vector.extract_strided_slice %325 {offsets = [0, 192], sizes = [8, 64], strides = [1, 1]} : vector<8x256xf32> to vector<8x64xf32>
    %331 = arith.mulf %328, %317 : vector<8x64xf32>
    %332 = arith.mulf %327, %329 : vector<8x64xf32>
    %333 = arith.addf %331, %332 : vector<8x64xf32>
    %334 = math.tanh %333 : vector<8x64xf32>
    %335 = arith.mulf %330, %334 : vector<8x64xf32>
    %336 = arith.select %33, %335, %316 : vector<8x64xi1>, vector<8x64xf32>
    %337 = arith.select %33, %333, %317 : vector<8x64xi1>, vector<8x64xf32>
    %cst_67 = arith.constant dense<0.000000e+00> : vector<8x256xf32>
    %338 = tpu.matmul %336, %275, %cst_67 {dimension_numbers = #tpu.dot_dimension_numbers<[1], [0], [0], [1], [0, 0, 1, 1], [], []>} : vector<8x64xf32>, vector<64x256xf32>, vector<8x256xf32> -> vector<8x256xf32>
    %339 = vector.extract_strided_slice %274 {offsets = [24, 0], sizes = [8, 256], strides = [1, 1]} : vector<64x256xf32> to vector<8x256xf32>
    %340 = arith.addf %339, %338 : vector<8x256xf32>
    %341 = arith.negf %340 : vector<8x256xf32>
    %342 = math.exp %341 : vector<8x256xf32>
    %cst_68 = arith.constant 1.000000e+00 : f32
    %343 = vector.broadcast %cst_68 : f32 to vector<8x256xf32>
    %344 = arith.addf %343, %342 : vector<8x256xf32>
    %345 = arith.divf %343, %344 : vector<8x256xf32>
    %346 = math.tanh %340 : vector<8x256xf32>
    %347 = vector.extract_strided_slice %345 {offsets = [0, 0], sizes = [8, 64], strides = [1, 1]} : vector<8x256xf32> to vector<8x64xf32>
    %348 = vector.extract_strided_slice %345 {offsets = [0, 64], sizes = [8, 64], strides = [1, 1]} : vector<8x256xf32> to vector<8x64xf32>
    %349 = vector.extract_strided_slice %346 {offsets = [0, 128], sizes = [8, 64], strides = [1, 1]} : vector<8x256xf32> to vector<8x64xf32>
    %350 = vector.extract_strided_slice %345 {offsets = [0, 192], sizes = [8, 64], strides = [1, 1]} : vector<8x256xf32> to vector<8x64xf32>
    %351 = arith.mulf %348, %337 : vector<8x64xf32>
    %352 = arith.mulf %347, %349 : vector<8x64xf32>
    %353 = arith.addf %351, %352 : vector<8x64xf32>
    %354 = math.tanh %353 : vector<8x64xf32>
    %355 = arith.mulf %350, %354 : vector<8x64xf32>
    %356 = arith.select %40, %355, %336 : vector<8x64xi1>, vector<8x64xf32>
    %357 = arith.select %40, %353, %337 : vector<8x64xi1>, vector<8x64xf32>
    %cst_69 = arith.constant dense<0.000000e+00> : vector<8x256xf32>
    %358 = tpu.matmul %356, %275, %cst_69 {dimension_numbers = #tpu.dot_dimension_numbers<[1], [0], [0], [1], [0, 0, 1, 1], [], []>} : vector<8x64xf32>, vector<64x256xf32>, vector<8x256xf32> -> vector<8x256xf32>
    %359 = vector.extract_strided_slice %274 {offsets = [32, 0], sizes = [8, 256], strides = [1, 1]} : vector<64x256xf32> to vector<8x256xf32>
    %360 = arith.addf %359, %358 : vector<8x256xf32>
    %361 = arith.negf %360 : vector<8x256xf32>
    %362 = math.exp %361 : vector<8x256xf32>
    %cst_70 = arith.constant 1.000000e+00 : f32
    %363 = vector.broadcast %cst_70 : f32 to vector<8x256xf32>
    %364 = arith.addf %363, %362 : vector<8x256xf32>
    %365 = arith.divf %363, %364 : vector<8x256xf32>
    %366 = math.tanh %360 : vector<8x256xf32>
    %367 = vector.extract_strided_slice %365 {offsets = [0, 0], sizes = [8, 64], strides = [1, 1]} : vector<8x256xf32> to vector<8x64xf32>
    %368 = vector.extract_strided_slice %365 {offsets = [0, 64], sizes = [8, 64], strides = [1, 1]} : vector<8x256xf32> to vector<8x64xf32>
    %369 = vector.extract_strided_slice %366 {offsets = [0, 128], sizes = [8, 64], strides = [1, 1]} : vector<8x256xf32> to vector<8x64xf32>
    %370 = vector.extract_strided_slice %365 {offsets = [0, 192], sizes = [8, 64], strides = [1, 1]} : vector<8x256xf32> to vector<8x64xf32>
    %371 = arith.mulf %368, %357 : vector<8x64xf32>
    %372 = arith.mulf %367, %369 : vector<8x64xf32>
    %373 = arith.addf %371, %372 : vector<8x64xf32>
    %374 = math.tanh %373 : vector<8x64xf32>
    %375 = arith.mulf %370, %374 : vector<8x64xf32>
    %376 = arith.select %47, %375, %356 : vector<8x64xi1>, vector<8x64xf32>
    %377 = arith.select %47, %373, %357 : vector<8x64xi1>, vector<8x64xf32>
    %cst_71 = arith.constant dense<0.000000e+00> : vector<8x256xf32>
    %378 = tpu.matmul %376, %275, %cst_71 {dimension_numbers = #tpu.dot_dimension_numbers<[1], [0], [0], [1], [0, 0, 1, 1], [], []>} : vector<8x64xf32>, vector<64x256xf32>, vector<8x256xf32> -> vector<8x256xf32>
    %379 = vector.extract_strided_slice %274 {offsets = [40, 0], sizes = [8, 256], strides = [1, 1]} : vector<64x256xf32> to vector<8x256xf32>
    %380 = arith.addf %379, %378 : vector<8x256xf32>
    %381 = arith.negf %380 : vector<8x256xf32>
    %382 = math.exp %381 : vector<8x256xf32>
    %cst_72 = arith.constant 1.000000e+00 : f32
    %383 = vector.broadcast %cst_72 : f32 to vector<8x256xf32>
    %384 = arith.addf %383, %382 : vector<8x256xf32>
    %385 = arith.divf %383, %384 : vector<8x256xf32>
    %386 = math.tanh %380 : vector<8x256xf32>
    %387 = vector.extract_strided_slice %385 {offsets = [0, 0], sizes = [8, 64], strides = [1, 1]} : vector<8x256xf32> to vector<8x64xf32>
    %388 = vector.extract_strided_slice %385 {offsets = [0, 64], sizes = [8, 64], strides = [1, 1]} : vector<8x256xf32> to vector<8x64xf32>
    %389 = vector.extract_strided_slice %386 {offsets = [0, 128], sizes = [8, 64], strides = [1, 1]} : vector<8x256xf32> to vector<8x64xf32>
    %390 = vector.extract_strided_slice %385 {offsets = [0, 192], sizes = [8, 64], strides = [1, 1]} : vector<8x256xf32> to vector<8x64xf32>
    %391 = arith.mulf %388, %377 : vector<8x64xf32>
    %392 = arith.mulf %387, %389 : vector<8x64xf32>
    %393 = arith.addf %391, %392 : vector<8x64xf32>
    %394 = math.tanh %393 : vector<8x64xf32>
    %395 = arith.mulf %390, %394 : vector<8x64xf32>
    %396 = arith.select %54, %395, %376 : vector<8x64xi1>, vector<8x64xf32>
    %397 = arith.select %54, %393, %377 : vector<8x64xi1>, vector<8x64xf32>
    %cst_73 = arith.constant dense<0.000000e+00> : vector<8x256xf32>
    %398 = tpu.matmul %396, %275, %cst_73 {dimension_numbers = #tpu.dot_dimension_numbers<[1], [0], [0], [1], [0, 0, 1, 1], [], []>} : vector<8x64xf32>, vector<64x256xf32>, vector<8x256xf32> -> vector<8x256xf32>
    %399 = vector.extract_strided_slice %274 {offsets = [48, 0], sizes = [8, 256], strides = [1, 1]} : vector<64x256xf32> to vector<8x256xf32>
    %400 = arith.addf %399, %398 : vector<8x256xf32>
    %401 = arith.negf %400 : vector<8x256xf32>
    %402 = math.exp %401 : vector<8x256xf32>
    %cst_74 = arith.constant 1.000000e+00 : f32
    %403 = vector.broadcast %cst_74 : f32 to vector<8x256xf32>
    %404 = arith.addf %403, %402 : vector<8x256xf32>
    %405 = arith.divf %403, %404 : vector<8x256xf32>
    %406 = math.tanh %400 : vector<8x256xf32>
    %407 = vector.extract_strided_slice %405 {offsets = [0, 0], sizes = [8, 64], strides = [1, 1]} : vector<8x256xf32> to vector<8x64xf32>
    %408 = vector.extract_strided_slice %405 {offsets = [0, 64], sizes = [8, 64], strides = [1, 1]} : vector<8x256xf32> to vector<8x64xf32>
    %409 = vector.extract_strided_slice %406 {offsets = [0, 128], sizes = [8, 64], strides = [1, 1]} : vector<8x256xf32> to vector<8x64xf32>
    %410 = vector.extract_strided_slice %405 {offsets = [0, 192], sizes = [8, 64], strides = [1, 1]} : vector<8x256xf32> to vector<8x64xf32>
    %411 = arith.mulf %408, %397 : vector<8x64xf32>
    %412 = arith.mulf %407, %409 : vector<8x64xf32>
    %413 = arith.addf %411, %412 : vector<8x64xf32>
    %414 = math.tanh %413 : vector<8x64xf32>
    %415 = arith.mulf %410, %414 : vector<8x64xf32>
    %416 = arith.select %61, %415, %396 : vector<8x64xi1>, vector<8x64xf32>
    %417 = arith.select %61, %413, %397 : vector<8x64xi1>, vector<8x64xf32>
    %cst_75 = arith.constant dense<0.000000e+00> : vector<8x256xf32>
    %418 = tpu.matmul %416, %275, %cst_75 {dimension_numbers = #tpu.dot_dimension_numbers<[1], [0], [0], [1], [0, 0, 1, 1], [], []>} : vector<8x64xf32>, vector<64x256xf32>, vector<8x256xf32> -> vector<8x256xf32>
    %419 = vector.extract_strided_slice %274 {offsets = [56, 0], sizes = [8, 256], strides = [1, 1]} : vector<64x256xf32> to vector<8x256xf32>
    %420 = arith.addf %419, %418 : vector<8x256xf32>
    %421 = arith.negf %420 : vector<8x256xf32>
    %422 = math.exp %421 : vector<8x256xf32>
    %cst_76 = arith.constant 1.000000e+00 : f32
    %423 = vector.broadcast %cst_76 : f32 to vector<8x256xf32>
    %424 = arith.addf %423, %422 : vector<8x256xf32>
    %425 = arith.divf %423, %424 : vector<8x256xf32>
    %426 = math.tanh %420 : vector<8x256xf32>
    %427 = vector.extract_strided_slice %425 {offsets = [0, 0], sizes = [8, 64], strides = [1, 1]} : vector<8x256xf32> to vector<8x64xf32>
    %428 = vector.extract_strided_slice %425 {offsets = [0, 64], sizes = [8, 64], strides = [1, 1]} : vector<8x256xf32> to vector<8x64xf32>
    %429 = vector.extract_strided_slice %426 {offsets = [0, 128], sizes = [8, 64], strides = [1, 1]} : vector<8x256xf32> to vector<8x64xf32>
    %430 = vector.extract_strided_slice %425 {offsets = [0, 192], sizes = [8, 64], strides = [1, 1]} : vector<8x256xf32> to vector<8x64xf32>
    %431 = arith.mulf %428, %417 : vector<8x64xf32>
    %432 = arith.mulf %427, %429 : vector<8x64xf32>
    %433 = arith.addf %431, %432 : vector<8x64xf32>
    %434 = math.tanh %433 : vector<8x64xf32>
    %435 = arith.mulf %430, %434 : vector<8x64xf32>
    %436 = arith.select %68, %435, %416 : vector<8x64xi1>, vector<8x64xf32>
    %c0_77 = arith.constant 0 : index
    %c0_78 = arith.constant 0 : index
    %437 = vector.load %arg11[%c0_77, %c0_78] : memref<64x5xf32, #tpu.memory_space<vmem>>, vector<64x5xf32>
    %cst_79 = arith.constant dense<0.000000e+00> : vector<8x5xf32>
    %438 = tpu.matmul %436, %437, %cst_79 {dimension_numbers = #tpu.dot_dimension_numbers<[1], [0], [0], [1], [0, 0, 1, 1], [], []>} : vector<8x64xf32>, vector<64x5xf32>, vector<8x5xf32> -> vector<8x5xf32>
    %c0_80 = arith.constant 0 : index
    %c0_81 = arith.constant 0 : index
    %439 = vector.load %arg12[%c0_80, %c0_81] : memref<1x5xf32, #tpu.memory_space<vmem>>, vector<1x5xf32>
    %440 = vector.broadcast %439 : vector<1x5xf32> to vector<8x5xf32>
    %441 = arith.addf %438, %440 : vector<8x5xf32>
    %c0_82 = arith.constant 0 : index
    %c0_83 = arith.constant 0 : index
    %442 = vector.load %arg13[%c0_82, %c0_83] : memref<8x5xf32, #tpu.memory_space<vmem>>, vector<8x5xf32>
    tpu.vector_store %arg13[%c0_82, %c0_83], %441 {strides = array<i32>} : memref<8x5xf32, #tpu.memory_space<vmem>>, vector<8x5xf32>,
    return
  }
}

</mosaic_0001>

<llo_original>
// kernel: tpu_custom_call.1
$region0: #{tpu_custom_call.1}
  #allocation0 [shape = 'u32[]', space=smem, size = 0x4, offset = 0x4, fixed_abs, tag = 'smem constant byte address 0x4 - core index']
  #allocation1 [shape = 'u32[72,128]{1,0:T(1,128)}', space=vmem, size = 0x9000, scoped, tag = 'internal scratch']
  %s0 = inlined_call_operand.vmem [shape: s32[64,1], index: 0, kind: input, shape index: {}]
  %s1 = inlined_call_operand.vmem [shape: s32[64,1], index: 1, kind: input, shape index: {}]
  %s2 = inlined_call_operand.vmem [shape: s32[8,1], index: 2, kind: input, shape index: {}]
  %s3 = inlined_call_operand.hbm [shape: f32[50,256], index: 3, kind: input, shape index: {}]
  %s4 = inlined_call_operand.hbm [shape: f32[50,256], index: 4, kind: input, shape index: {}]
  %s5 = inlined_call_operand.vmem [shape: f32[64,256], index: 5, kind: input, shape index: {}]
  %s6 = inlined_call_operand.vmem [shape: f32[1,256], index: 6, kind: input, shape index: {}]
  %s7 = inlined_call_operand.hbm [shape: f32[64,256], index: 7, kind: input, shape index: {}]
  %s8 = inlined_call_operand.hbm [shape: f32[64,256], index: 8, kind: input, shape index: {}]
  %s9 = inlined_call_operand.hbm [shape: f32[64,256], index: 9, kind: input, shape index: {}]
  %s10 = inlined_call_operand.vmem [shape: f32[1,256], index: 10, kind: input, shape index: {}]
  %s11 = inlined_call_operand.vmem [shape: f32[64,5], index: 11, kind: input, shape index: {}]
  %s12 = inlined_call_operand.vmem [shape: f32[1,5], index: 12, kind: input, shape index: {}]
  %s13 = inlined_call_operand.hbm [shape: f32[8,5], index: 13, kind: output, shape index: {}]
  %s14 = sld [smem:[#allocation0]]
  $region82: #{tpu_custom_call.1} parent=0
    _
  %s16 = ssub.s32 1, %s14
  %s17 = scalar_select 0, %s16, %s14
  $region1: #{tpu_custom_call.1} parent=0
    #allocation2 [shape = 'u8[57344]{0}', space=vmem, size = 0xe000, scoped, tag = 'input window, operand 3, single buffered']
    #allocation3 [shape = 's32[1]{0}', space=sflag, size = 0x4, scoped, tag = 'scoped memory for tpu_custom_call.1']
    #allocation4 [shape = 's32[1]{0}', space=sflag, size = 0x4, scoped, tag = 'scoped memory for tpu_custom_call.1']
    #allocation5 [shape = 'u8[57344]{0}', space=vmem, size = 0xe000, scoped, tag = 'input window, operand 4, single buffered']
    #allocation6 [shape = 's32[1]{0}', space=sflag, size = 0x4, scoped, tag = 'scoped memory for tpu_custom_call.1']
    #allocation7 [shape = 'u8[65536]{0}', space=vmem, size = 0x10000, scoped, tag = 'input window, operand 7, single buffered']
    #allocation8 [shape = 'u8[65536]{0}', space=vmem, size = 0x10000, scoped, tag = 'input window, operand 8, single buffered']
    #allocation9 [shape = 's32[1]{0}', space=sflag, size = 0x4, scoped, tag = 'scoped memory for tpu_custom_call.1']
    #allocation10 [shape = 'u8[65536]{0}', space=vmem, size = 0x10000, scoped, tag = 'input window, operand 9, single buffered']
    #allocation11 [shape = 'u8[4096]{0}', space=vmem, size = 0x1000, scoped, tag = 'output window, operand 0, single buffered']
    %18 = vsyncpa [#allocation3], 0
    %19 = vsyncpa [#allocation6], 0
    %20 = vsyncpa [#allocation9], 0
    %21 = vsyncpa [#allocation4], 0
    // Predicated region
    $region2: #{tpu_custom_call.1} parent=1 // pred_check
      _
    $region3: #{tpu_custom_call.1} parent=1 // pred_check_branch
      %23 = sbr.rel (0) target = $region5
    $region4: #{tpu_custom_call.1} parent=1 // pred_region
      _
    $region5: #{tpu_custom_call.1} parent=1 // pred_fallthru
      _
    // Predicated region
    $region6: #{tpu_custom_call.1} parent=1 // pred_check
      _
    $region7: #{tpu_custom_call.1} parent=1 // pred_check_branch
      %25 = sbr.rel (0) target = $region9
    $region8: #{tpu_custom_call.1} parent=1 // pred_region
      _
    $region9: #{tpu_custom_call.1} parent=1 // pred_fallthru
      _
    // Predicated region
    $region10: #{tpu_custom_call.1} parent=1 // pred_check
      _
    $region11: #{tpu_custom_call.1} parent=1 // pred_check_branch
      %27 = sbr.rel (0) target = $region13
    $region12: #{tpu_custom_call.1} parent=1 // pred_region
      _
    $region13: #{tpu_custom_call.1} parent=1 // pred_fallthru
      _
    // Predicated region
    $region14: #{tpu_custom_call.1} parent=1 // pred_check
      _
    $region15: #{tpu_custom_call.1} parent=1 // pred_check_branch
      %29 = sbr.rel (0) target = $region17
    $region16: #{tpu_custom_call.1} parent=1 // pred_region
      %31 = vsyncadd [#allocation3], 0
      %s32 = sshll.u32 %s3, 4
      %s33 = int_to_ptr.hbm [resolvable:$true] %s32
      %s34 = sshll.u32 [#allocation2], 4
      %s35 = int_to_ptr.vmem [resolvable:$true] %s34
      %40 = dma.hbm_to_vmem [thread:$0]  %s33, 1792, %s35, [#allocation3], 256, 256, 16
    $region17: #{tpu_custom_call.1} parent=1 // pred_fallthru
      _
    // Predicated region
    $region18: #{tpu_custom_call.1} parent=1 // pred_check
      _
    $region19: #{tpu_custom_call.1} parent=1 // pred_check_branch
      %42 = sbr.rel (0) target = $region21
    $region20: #{tpu_custom_call.1} parent=1 // pred_region
      %44 = vsyncadd [#allocation6], 0
      %s45 = sshll.u32 %s4, 4
      %s46 = int_to_ptr.hbm [resolvable:$true] %s45
      %s47 = sshll.u32 [#allocation5], 4
      %s48 = int_to_ptr.vmem [resolvable:$true] %s47
      %53 = dma.hbm_to_vmem [thread:$0]  %s46, 1792, %s48, [#allocation6], 256, 256, 16
    $region21: #{tpu_custom_call.1} parent=1 // pred_fallthru
      _
    // Predicated region
    $region22: #{tpu_custom_call.1} parent=1 // pred_check
      _
    $region23: #{tpu_custom_call.1} parent=1 // pred_check_branch
      %55 = sbr.rel (0) target = $region25
    $region24: #{tpu_custom_call.1} parent=1 // pred_region
      _
    $region25: #{tpu_custom_call.1} parent=1 // pred_fallthru
      _
    // Predicated region
    $region26: #{tpu_custom_call.1} parent=1 // pred_check
      _
    $region27: #{tpu_custom_call.1} parent=1 // pred_check_branch
      %57 = sbr.rel (0) target = $region29
    $region28: #{tpu_custom_call.1} parent=1 // pred_region
      _
    $region29: #{tpu_custom_call.1} parent=1 // pred_fallthru
      _
    // Predicated region
    $region30: #{tpu_custom_call.1} parent=1 // pred_check
      _
    $region31: #{tpu_custom_call.1} parent=1 // pred_check_branch
      %59 = sbr.rel (0) target = $region33
    $region32: #{tpu_custom_call.1} parent=1 // pred_region
      %61 = vsyncadd [#allocation6], 0
      %s62 = sshll.u32 %s7, 4
      %s63 = int_to_ptr.hbm [resolvable:$true] %s62
      %s64 = sshll.u32 [#allocation7], 4
      %s65 = int_to_ptr.vmem [resolvable:$true] %s64
      %70 = dma.hbm_to_vmem [thread:$0]  %s63, 2048, %s65, [#allocation6], 256, 256, 16
    $region33: #{tpu_custom_call.1} parent=1 // pred_fallthru
      _
    // Predicated region
    $region34: #{tpu_custom_call.1} parent=1 // pred_check
      _
    $region35: #{tpu_custom_call.1} parent=1 // pred_check_branch
      %72 = sbr.rel (0) target = $region37
    $region36: #{tpu_custom_call.1} parent=1 // pred_region
      %74 = vsyncadd [#allocation9], 0
      %s75 = sshll.u32 %s8, 4
      %s76 = int_to_ptr.hbm [resolvable:$true] %s75
      %s77 = sshll.u32 [#allocation8], 4
      %s78 = int_to_ptr.vmem [resolvable:$true] %s77
      %83 = dma.hbm_to_vmem [thread:$0]  %s76, 2048, %s78, [#allocation9], 256, 256, 16
    $region37: #{tpu_custom_call.1} parent=1 // pred_fallthru
      _
    // Predicated region
    $region38: #{tpu_custom_call.1} parent=1 // pred_check
      _
    $region39: #{tpu_custom_call.1} parent=1 // pred_check_branch
      %85 = sbr.rel (0) target = $region41
    $region40: #{tpu_custom_call.1} parent=1 // pred_region
      %87 = vsyncadd [#allocation9], 0
      %s88 = sshll.u32 %s9, 4
      %s89 = int_to_ptr.hbm [resolvable:$true] %s88
      %s90 = sshll.u32 [#allocation10], 4
      %s91 = int_to_ptr.vmem [resolvable:$true] %s90
      %96 = dma.hbm_to_vmem [thread:$0]  %s89, 2048, %s91, [#allocation9], 256, 256, 16
    $region41: #{tpu_custom_call.1} parent=1 // pred_fallthru
      _
    // Predicated region
    $region42: #{tpu_custom_call.1} parent=1 // pred_check
      _
    $region43: #{tpu_custom_call.1} parent=1 // pred_check_branch
      %98 = sbr.rel (0) target = $region45
    $region44: #{tpu_custom_call.1} parent=1 // pred_region
      _
    $region45: #{tpu_custom_call.1} parent=1 // pred_fallthru
      _
    // Predicated region
    $region46: #{tpu_custom_call.1} parent=1 // pred_check
      _
    $region47: #{tpu_custom_call.1} parent=1 // pred_check_branch
      %100 = sbr.rel (0) target = $region49
    $region48: #{tpu_custom_call.1} parent=1 // pred_region
      _
    $region49: #{tpu_custom_call.1} parent=1 // pred_fallthru
      _
    // Predicated region
    $region50: #{tpu_custom_call.1} parent=1 // pred_check
      _
    $region51: #{tpu_custom_call.1} parent=1 // pred_check_branch
      %102 = sbr.rel (0) target = $region53
    $region52: #{tpu_custom_call.1} parent=1 // pred_region
      _
    $region53: #{tpu_custom_call.1} parent=1 // pred_fallthru
      _
    // Predicated region
    $region54: #{tpu_custom_call.1} parent=1 // pred_check
      _
    $region55: #{tpu_custom_call.1} parent=1 // pred_check_branch
      %104 = sbr.rel (0) target = $region57
    $region56: #{tpu_custom_call.1} parent=1 // pred_region
      %106 = dma.done [#allocation3], 1792
    $region57: #{tpu_custom_call.1} parent=1 // pred_fallthru
      _
    // Predicated region
    $region58: #{tpu_custom_call.1} parent=1 // pred_check
      _
    $region59: #{tpu_custom_call.1} parent=1 // pred_check_branch
      %108 = sbr.rel (0) target = $region61
    $region60: #{tpu_custom_call.1} parent=1 // pred_region
      %110 = dma.done [#allocation6], 1792
    $region61: #{tpu_custom_call.1} parent=1 // pred_fallthru
      _
    // Predicated region
    $region62: #{tpu_custom_call.1} parent=1 // pred_check
      _
    $region63: #{tpu_custom_call.1} parent=1 // pred_check_branch
      %112 = sbr.rel (0) target = $region65
    $region64: #{tpu_custom_call.1} parent=1 // pred_region
      %114 = dma.done [#allocation6], 2048
    $region65: #{tpu_custom_call.1} parent=1 // pred_fallthru
      _
    // Predicated region
    $region66: #{tpu_custom_call.1} parent=1 // pred_check
      _
    $region67: #{tpu_custom_call.1} parent=1 // pred_check_branch
      %116 = sbr.rel (0) target = $region69
    $region68: #{tpu_custom_call.1} parent=1 // pred_region
      %118 = dma.done [#allocation9], 2048
    $region69: #{tpu_custom_call.1} parent=1 // pred_fallthru
      _
    // Predicated region
    $region70: #{tpu_custom_call.1} parent=1 // pred_check
      _
    $region71: #{tpu_custom_call.1} parent=1 // pred_check_branch
      %120 = sbr.rel (0) target = $region73
    $region72: #{tpu_custom_call.1} parent=1 // pred_region
      %122 = dma.done [#allocation9], 2048
    $region73: #{tpu_custom_call.1} parent=1 // pred_fallthru
      _
    %v123 = vlaneseq
    %v124 = vand.u32 %v123, 127
    %v125 = vld [vmem:[%s0] sm:$0xff]
    %v126 = vld [vmem:[%s0 + $0x8] sm:$0xff]
    %v127 = vld [vmem:[%s0 + $0x10] sm:$0xff]
    %v128 = vld [vmem:[%s0 + $0x18] sm:$0xff]
    %v129 = vld [vmem:[%s0 + $0x20] sm:$0xff]
    %v130 = vld [vmem:[%s0 + $0x28] sm:$0xff]
    %v131 = vld [vmem:[%s0 + $0x30] sm:$0xff]
    %v132 = vld [vmem:[%s0 + $0x38] sm:$0xff]
    %133 = vset.pattern.permute.xlu0 0
    %134 = vperm.xlu0 %133, %v125
    %v135 = vpop.permute.xlu0 %134
    %136 = vset.pattern.permute.xlu0 0
    %137 = vperm.xlu0 %136, %v126
    %v138 = vpop.permute.xlu0 %137
    %139 = vset.pattern.permute.xlu0 0
    %140 = vperm.xlu0 %139, %v127
    %v141 = vpop.permute.xlu0 %140
    %142 = vset.pattern.permute.xlu0 0
    %143 = vperm.xlu0 %142, %v128
    %v144 = vpop.permute.xlu0 %143
    %145 = vset.pattern.permute.xlu0 0
    %146 = vperm.xlu0 %145, %v129
    %v147 = vpop.permute.xlu0 %146
    %148 = vset.pattern.permute.xlu0 0
    %149 = vperm.xlu0 %148, %v130
    %v150 = vpop.permute.xlu0 %149
    %151 = vset.pattern.permute.xlu0 0
    %152 = vperm.xlu0 %151, %v131
    %v153 = vpop.permute.xlu0 %152
    %154 = vset.pattern.permute.xlu0 0
    %155 = vperm.xlu0 %154, %v132
    %v156 = vpop.permute.xlu0 %155
    %vm157 = vcmp.eq.s32.totalorder %v135, %v124
    %vm158 = vcmp.eq.s32.totalorder %v138, %v124
    %vm159 = vcmp.eq.s32.totalorder %v141, %v124
    %vm160 = vcmp.eq.s32.totalorder %v144, %v124
    %vm161 = vcmp.eq.s32.totalorder %v147, %v124
    %vm162 = vcmp.eq.s32.totalorder %v150, %v124
    %vm163 = vcmp.eq.s32.totalorder %v153, %v124
    %vm164 = vcmp.eq.s32.totalorder %v156, %v124
    %v165 = vsel %vm157, 1, 0
    %v166 = vsel %vm158, 1, 0
    %v167 = vsel %vm159, 1, 0
    %v168 = vsel %vm160, 1, 0
    %v169 = vsel %vm161, 1, 0
    %v170 = vsel %vm162, 1, 0
    %v171 = vsel %vm163, 1, 0
    %v172 = vsel %vm164, 1, 0
    %v173 = vcvt.s32.f32 %v165
    %v174 = vcvt.s32.f32 %v166
    %v175 = vcvt.s32.f32 %v167
    %v176 = vcvt.s32.f32 %v168
    %v177 = vcvt.s32.f32 %v169
    %v178 = vcvt.s32.f32 %v170
    %v179 = vcvt.s32.f32 %v171
    %v180 = vcvt.s32.f32 %v172
    %v181 = vld [vmem:[%s1] sm:$0xff]
    %v182 = vld [vmem:[%s1 + $0x8] sm:$0xff]
    %v183 = vld [vmem:[%s1 + $0x10] sm:$0xff]
    %v184 = vld [vmem:[%s1 + $0x18] sm:$0xff]
    %v185 = vld [vmem:[%s1 + $0x20] sm:$0xff]
    %v186 = vld [vmem:[%s1 + $0x28] sm:$0xff]
    %v187 = vld [vmem:[%s1 + $0x30] sm:$0xff]
    %v188 = vld [vmem:[%s1 + $0x38] sm:$0xff]
    %189 = vset.pattern.permute.xlu0 0
    %190 = vperm.xlu0 %189, %v181
    %v191 = vpop.permute.xlu0 %190
    %192 = vset.pattern.permute.xlu0 0
    %193 = vperm.xlu0 %192, %v182
    %v194 = vpop.permute.xlu0 %193
    %195 = vset.pattern.permute.xlu0 0
    %196 = vperm.xlu0 %195, %v183
    %v197 = vpop.permute.xlu0 %196
    %198 = vset.pattern.permute.xlu0 0
    %199 = vperm.xlu0 %198, %v184
    %v200 = vpop.permute.xlu0 %199
    %201 = vset.pattern.permute.xlu0 0
    %202 = vperm.xlu0 %201, %v185
    %v203 = vpop.permute.xlu0 %202
    %204 = vset.pattern.permute.xlu0 0
    %205 = vperm.xlu0 %204, %v186
    %v206 = vpop.permute.xlu0 %205
    %207 = vset.pattern.permute.xlu0 0
    %208 = vperm.xlu0 %207, %v187
    %v209 = vpop.permute.xlu0 %208
    %210 = vset.pattern.permute.xlu0 0
    %211 = vperm.xlu0 %210, %v188
    %v212 = vpop.permute.xlu0 %211
    %vm213 = vcmp.eq.s32.totalorder %v191, %v124
    %vm214 = vcmp.eq.s32.totalorder %v194, %v124
    %vm215 = vcmp.eq.s32.totalorder %v197, %v124
    %vm216 = vcmp.eq.s32.totalorder %v200, %v124
    %vm217 = vcmp.eq.s32.totalorder %v203, %v124
    %vm218 = vcmp.eq.s32.totalorder %v206, %v124
    %vm219 = vcmp.eq.s32.totalorder %v209, %v124
    %vm220 = vcmp.eq.s32.totalorder %v212, %v124
    %v221 = vsel %vm213, 1, 0
    %v222 = vsel %vm214, 1, 0
    %v223 = vsel %vm215, 1, 0
    %v224 = vsel %vm216, 1, 0
    %v225 = vsel %vm217, 1, 0
    %v226 = vsel %vm218, 1, 0
    %v227 = vsel %vm219, 1, 0
    %v228 = vsel %vm220, 1, 0
    %v229 = vcvt.s32.f32 %v221
    %v230 = vcvt.s32.f32 %v222
    %v231 = vcvt.s32.f32 %v223
    %v232 = vcvt.s32.f32 %v224
    %v233 = vcvt.s32.f32 %v225
    %v234 = vcvt.s32.f32 %v226
    %v235 = vcvt.s32.f32 %v227
    %v236 = vcvt.s32.f32 %v228
    %v237 = vld [vmem:[%s2] sm:$0xff]
    %vm238 = vcmp.lt.s32.totalorder %v124, 32
    %v239 = vsel %vm238, 0, 7
    %240 = vset.pattern.permute.xlu0 0
    %241 = vperm.xlu0 %240, %v237
    %v242 = vpop.permute.xlu0 %241
    %vm243 = vcmp.lt.s32.totalorder %v239, %v242
    %v244 = vsel %vm238, 1, 6
    %vm245 = vcmp.lt.s32.totalorder %v244, %v242
    %v246 = vsel %vm238, 2, 5
    %vm247 = vcmp.lt.s32.totalorder %v246, %v242
    %v248 = vsel %vm238, 3, 4
    %vm249 = vcmp.lt.s32.totalorder %v248, %v242
    %v250 = vsel %vm238, 4, 3
    %vm251 = vcmp.lt.s32.totalorder %v250, %v242
    %v252 = vsel %vm238, 5, 2
    %vm253 = vcmp.lt.s32.totalorder %v252, %v242
    %v254 = vsel %vm238, 6, 1
    %vm255 = vcmp.lt.s32.totalorder %v254, %v242
    %v256 = vsel %vm238, 7, 0
    %vm257 = vcmp.lt.s32.totalorder %v256, %v242
    %v258 = vld [vmem:[#allocation2] sm:$0xff]
    %v259 = vld [vmem:[#allocation2 + $0x8] sm:$0xff]
    %v260 = vld [vmem:[#allocation2 + $0x10] sm:$0xff]
    %v261 = vld [vmem:[#allocation2 + $0x18] sm:$0xff]
    %v262 = vld [vmem:[#allocation2 + $0x20] sm:$0xff]
    %v263 = vld [vmem:[#allocation2 + $0x28] sm:$0xff]
    %v264 = vld [vmem:[#allocation2 + $0x30] sm:$0xff]
    %v265 = vld [vmem:[#allocation2 + $0x38] sm:$0xff]
    %v266 = vld [vmem:[#allocation2 + $0x40] sm:$0xff]
    %v267 = vld [vmem:[#allocation2 + $0x48] sm:$0xff]
    %v268 = vld [vmem:[#allocation2 + $0x50] sm:$0xff]
    %v269 = vld [vmem:[#allocation2 + $0x58] sm:$0xff]
    %v270 = vld [vmem:[#allocation2 + $0x60] sm:$0x3]
    %v271 = vld [vmem:[#allocation2 + $0x68] sm:$0x3]
    %v272 = vld [vmem:[#allocation5] sm:$0xff]
    %v273 = vld [vmem:[#allocation5 + $0x8] sm:$0xff]
    %v274 = vld [vmem:[#allocation5 + $0x10] sm:$0xff]
    %v275 = vld [vmem:[#allocation5 + $0x18] sm:$0xff]
    %v276 = vld [vmem:[#allocation5 + $0x20] sm:$0xff]
    %v277 = vld [vmem:[#allocation5 + $0x28] sm:$0xff]
    %v278 = vld [vmem:[#allocation5 + $0x30] sm:$0xff]
    %v279 = vld [vmem:[#allocation5 + $0x38] sm:$0xff]
    %v280 = vld [vmem:[#allocation5 + $0x40] sm:$0xff]
    %v281 = vld [vmem:[#allocation5 + $0x48] sm:$0xff]
    %v282 = vld [vmem:[#allocation5 + $0x50] sm:$0xff]
    %v283 = vld [vmem:[#allocation5 + $0x58] sm:$0xff]
    %v284 = vld [vmem:[#allocation5 + $0x60] sm:$0x3]
    %v285 = vld [vmem:[#allocation5 + $0x68] sm:$0x3]
    %vm286 = vcmask 408576
    %v288 = vsel %vm286, %v229, 0
    %v291 = vsel %vm286, %v230, 0
    %v294 = vsel %vm286, %v231, 0
    %v297 = vsel %vm286, %v232, 0
    %v300 = vsel %vm286, %v233, 0
    %v303 = vsel %vm286, %v234, 0
    %v306 = vsel %vm286, %v235, 0
    %v309 = vsel %vm286, %v236, 0
    %vm311 = vcmask 1041408
    %v313 = vsel %vm311, %v284, 0
    %v316 = vsel %vm311, %v285, 0
    %318 = vmatpush.msra.mxu0 0.0
    %319 = vmatpush.msra.mxu0 0.0
    %320 = vmatpush.msra.mxu0 0.0
    %321 = vmatpush.msra.mxu0 0.0
    %322 = vmatpush.msra.mxu0 0.0
    %323 = vmatpush.msra.mxu0 0.0
    %324 = vmatpush.msra.mxu0 0.0
    %325 = vmatpush.msra.mxu0 0.0
    %326 = vmatpush.msra.mxu0 0.0
    %327 = vmatpush.msra.mxu0 %v313
    %328 = vmatpush.msra.mxu0 %v282
    %329 = vmatpush.msra.mxu0 %v280
    %330 = vmatpush.msra.mxu0 %v278
    %331 = vmatpush.msra.mxu0 %v276
    %332 = vmatpush.msra.mxu0 %v274
    %333 = vmatpush.msra.mxu0 %v272
    %334 = vmatmul.f32.gmra.mxu0 %v288
    %v335 = vpop.f32.mrf.mxu0
    %v336 = vadd.f32 0.0, %v335
    %337 = vmatmul.f32.gmra.mxu0 %v291
    %v338 = vpop.f32.mrf.mxu0
    %v339 = vadd.f32 0.0, %v338
    %340 = vmatmul.f32.gmra.mxu0 %v294
    %v341 = vpop.f32.mrf.mxu0
    %v342 = vadd.f32 0.0, %v341
    %343 = vmatmul.f32.gmra.mxu0 %v297
    %v344 = vpop.f32.mrf.mxu0
    %v345 = vadd.f32 0.0, %v344
    %346 = vmatmul.f32.gmra.mxu0 %v300
    %v347 = vpop.f32.mrf.mxu0
    %v348 = vadd.f32 0.0, %v347
    %349 = vmatmul.f32.gmra.mxu0 %v303
    %v350 = vpop.f32.mrf.mxu0
    %v351 = vadd.f32 0.0, %v350
    %352 = vmatmul.f32.gmra.mxu0 %v306
    %v353 = vpop.f32.mrf.mxu0
    %v354 = vadd.f32 0.0, %v353
    %355 = vmatmul.f32.gmra.mxu0 %v309
    %v356 = vpop.f32.mrf.mxu0
    %v357 = vadd.f32 0.0, %v356
    %358 = vdwg.mxu0
    %359 = vmatpush.msra.mxu0 0.0
    %360 = vmatpush.msra.mxu0 0.0
    %361 = vmatpush.msra.mxu0 0.0
    %362 = vmatpush.msra.mxu0 0.0
    %363 = vmatpush.msra.mxu0 0.0
    %364 = vmatpush.msra.mxu0 0.0
    %365 = vmatpush.msra.mxu0 0.0
    %366 = vmatpush.msra.mxu0 0.0
    %367 = vmatpush.msra.mxu0 0.0
    %368 = vmatpush.msra.mxu0 %v316
    %369 = vmatpush.msra.mxu0 %v283
    %370 = vmatpush.msra.mxu0 %v281
    %371 = vmatpush.msra.mxu0 %v279
    %372 = vmatpush.msra.mxu0 %v277
    %373 = vmatpush.msra.mxu0 %v275
    %374 = vmatpush.msra.mxu0 %v273
    %375 = vmatmul.f32.gmra.mxu0 %v288
    %v376 = vpop.f32.mrf.mxu0
    %v377 = vadd.f32 0.0, %v376
    %378 = vmatmul.f32.gmra.mxu0 %v291
    %v379 = vpop.f32.mrf.mxu0
    %v380 = vadd.f32 0.0, %v379
    %381 = vmatmul.f32.gmra.mxu0 %v294
    %v382 = vpop.f32.mrf.mxu0
    %v383 = vadd.f32 0.0, %v382
    %384 = vmatmul.f32.gmra.mxu0 %v297
    %v385 = vpop.f32.mrf.mxu0
    %v386 = vadd.f32 0.0, %v385
    %387 = vmatmul.f32.gmra.mxu0 %v300
    %v388 = vpop.f32.mrf.mxu0
    %v389 = vadd.f32 0.0, %v388
    %390 = vmatmul.f32.gmra.mxu0 %v303
    %v391 = vpop.f32.mrf.mxu0
    %v392 = vadd.f32 0.0, %v391
    %393 = vmatmul.f32.gmra.mxu0 %v306
    %v394 = vpop.f32.mrf.mxu0
    %v395 = vadd.f32 0.0, %v394
    %396 = vmatmul.f32.gmra.mxu0 %v309
    %v397 = vpop.f32.mrf.mxu0
    %v398 = vadd.f32 0.0, %v397
    %399 = vdwg.mxu0
    %v401 = vsel %vm286, %v173, 0
    %v404 = vsel %vm286, %v174, 0
    %v407 = vsel %vm286, %v175, 0
    %v410 = vsel %vm286, %v176, 0
    %v413 = vsel %vm286, %v177, 0
    %v416 = vsel %vm286, %v178, 0
    %v419 = vsel %vm286, %v179, 0
    %v422 = vsel %vm286, %v180, 0
    %v425 = vsel %vm311, %v270, 0
    %v428 = vsel %vm311, %v271, 0
    %430 = vmatpush.msra.mxu0 0.0
    %431 = vmatpush.msra.mxu0 0.0
    %432 = vmatpush.msra.mxu0 0.0
    %433 = vmatpush.msra.mxu0 0.0
    %434 = vmatpush.msra.mxu0 0.0
    %435 = vmatpush.msra.mxu0 0.0
    %436 = vmatpush.msra.mxu0 0.0
    %437 = vmatpush.msra.mxu0 0.0
    %438 = vmatpush.msra.mxu0 0.0
    %439 = vmatpush.msra.mxu0 %v425
    %440 = vmatpush.msra.mxu0 %v268
    %441 = vmatpush.msra.mxu0 %v266
    %442 = vmatpush.msra.mxu0 %v264
    %443 = vmatpush.msra.mxu0 %v262
    %444 = vmatpush.msra.mxu0 %v260
    %445 = vmatpush.msra.mxu0 %v258
    %446 = vmatmul.f32.gmra.mxu0 %v401
    %v447 = vpop.f32.mrf.mxu0
    %v448 = vadd.f32 %v336, %v447
    %449 = vmatmul.f32.gmra.mxu0 %v404
    %v450 = vpop.f32.mrf.mxu0
    %v451 = vadd.f32 %v339, %v450
    %452 = vmatmul.f32.gmra.mxu0 %v407
    %v453 = vpop.f32.mrf.mxu0
    %v454 = vadd.f32 %v342, %v453
    %455 = vmatmul.f32.gmra.mxu0 %v410
    %v456 = vpop.f32.mrf.mxu0
    %v457 = vadd.f32 %v345, %v456
    %458 = vmatmul.f32.gmra.mxu0 %v413
    %v459 = vpop.f32.mrf.mxu0
    %v460 = vadd.f32 %v348, %v459
    %461 = vmatmul.f32.gmra.mxu0 %v416
    %v462 = vpop.f32.mrf.mxu0
    %v463 = vadd.f32 %v351, %v462
    %464 = vmatmul.f32.gmra.mxu0 %v419
    %v465 = vpop.f32.mrf.mxu0
    %v466 = vadd.f32 %v354, %v465
    %467 = vmatmul.f32.gmra.mxu0 %v422
    %v468 = vpop.f32.mrf.mxu0
    %v469 = vadd.f32 %v357, %v468
    %470 = vdwg.mxu0
    %471 = vmatpush.msra.mxu0 0.0
    %472 = vmatpush.msra.mxu0 0.0
    %473 = vmatpush.msra.mxu0 0.0
    %474 = vmatpush.msra.mxu0 0.0
    %475 = vmatpush.msra.mxu0 0.0
    %476 = vmatpush.msra.mxu0 0.0
    %477 = vmatpush.msra.mxu0 0.0
    %478 = vmatpush.msra.mxu0 0.0
    %479 = vmatpush.msra.mxu0 0.0
    %480 = vmatpush.msra.mxu0 %v428
    %481 = vmatpush.msra.mxu0 %v269
    %482 = vmatpush.msra.mxu0 %v267
    %483 = vmatpush.msra.mxu0 %v265
    %484 = vmatpush.msra.mxu0 %v263
    %485 = vmatpush.msra.mxu0 %v261
    %486 = vmatpush.msra.mxu0 %v259
    %487 = vmatmul.f32.gmra.mxu0 %v401
    %v488 = vpop.f32.mrf.mxu0
    %v489 = vadd.f32 %v377, %v488
    %490 = vmatmul.f32.gmra.mxu0 %v404
    %v491 = vpop.f32.mrf.mxu0
    %v492 = vadd.f32 %v380, %v491
    %493 = vmatmul.f32.gmra.mxu0 %v407
    %v494 = vpop.f32.mrf.mxu0
    %v495 = vadd.f32 %v383, %v494
    %496 = vmatmul.f32.gmra.mxu0 %v410
    %v497 = vpop.f32.mrf.mxu0
    %v498 = vadd.f32 %v386, %v497
    %499 = vmatmul.f32.gmra.mxu0 %v413
    %v500 = vpop.f32.mrf.mxu0
    %v501 = vadd.f32 %v389, %v500
    %502 = vmatmul.f32.gmra.mxu0 %v416
    %v503 = vpop.f32.mrf.mxu0
    %v504 = vadd.f32 %v392, %v503
    %505 = vmatmul.f32.gmra.mxu0 %v419
    %v506 = vpop.f32.mrf.mxu0
    %v507 = vadd.f32 %v395, %v506
    %508 = vmatmul.f32.gmra.mxu0 %v422
    %v509 = vpop.f32.mrf.mxu0
    %v510 = vadd.f32 %v398, %v509
    %511 = vdwg.mxu0
    %v512 = vld [vmem:[%s6] sm:$0x3]
    %v514 = vperm.slane %v512, 0
    %v515 = vperm.slane %v512, 1
    %v518 = vadd.f32 %v448, %v514
    %v519 = vadd.f32 %v489, %v515
    %v520 = vadd.f32 %v451, %v514
    %v521 = vadd.f32 %v492, %v515
    %v522 = vadd.f32 %v454, %v514
    %v523 = vadd.f32 %v495, %v515
    %v524 = vadd.f32 %v457, %v514
    %v525 = vadd.f32 %v498, %v515
    %v526 = vadd.f32 %v460, %v514
    %v527 = vadd.f32 %v501, %v515
    %v528 = vadd.f32 %v463, %v514
    %v529 = vadd.f32 %v504, %v515
    %v530 = vadd.f32 %v466, %v514
    %v531 = vadd.f32 %v507, %v515
    %v532 = vadd.f32 %v469, %v514
    %v533 = vadd.f32 %v510, %v515
    %v534 = vld [vmem:[%s5] sm:$0xff]
    %v535 = vld [vmem:[%s5 + $0x8] sm:$0xff]
    %v536 = vld [vmem:[%s5 + $0x10] sm:$0xff]
    %v537 = vld [vmem:[%s5 + $0x18] sm:$0xff]
    %v538 = vld [vmem:[%s5 + $0x20] sm:$0xff]
    %v539 = vld [vmem:[%s5 + $0x28] sm:$0xff]
    %v540 = vld [vmem:[%s5 + $0x30] sm:$0xff]
    %v541 = vld [vmem:[%s5 + $0x38] sm:$0xff]
    %v542 = vld [vmem:[%s5 + $0x40] sm:$0xff]
    %v543 = vld [vmem:[%s5 + $0x48] sm:$0xff]
    %v544 = vld [vmem:[%s5 + $0x50] sm:$0xff]
    %v545 = vld [vmem:[%s5 + $0x58] sm:$0xff]
    %v546 = vld [vmem:[%s5 + $0x60] sm:$0xff]
    %v547 = vld [vmem:[%s5 + $0x68] sm:$0xff]
    %v548 = vld [vmem:[%s5 + $0x70] sm:$0xff]
    %v549 = vld [vmem:[%s5 + $0x78] sm:$0xff]
    %vm550 = vcmask 523264
    %v552 = vsel %vm550, 0.0, 0
    %554 = vmatpush.msra.mxu0 0.0
    %555 = vmatpush.msra.mxu0 0.0
    %556 = vmatpush.msra.mxu0 0.0
    %557 = vmatpush.msra.mxu0 0.0
    %558 = vmatpush.msra.mxu0 0.0
    %559 = vmatpush.msra.mxu0 0.0
    %560 = vmatpush.msra.mxu0 0.0
    %561 = vmatpush.msra.mxu0 0.0
    %562 = vmatpush.msra.mxu0 %v548
    %563 = vmatpush.msra.mxu0 %v546
    %564 = vmatpush.msra.mxu0 %v544
    %565 = vmatpush.msra.mxu0 %v542
    %566 = vmatpush.msra.mxu0 %v540
    %567 = vmatpush.msra.mxu0 %v538
    %568 = vmatpush.msra.mxu0 %v536
    %569 = vmatpush.msra.mxu0 %v534
    %570 = vmatmul.f32.gmra.mxu0 %v552
    %v571 = vpop.f32.mrf.mxu0
    %v572 = vadd.f32 0.0, %v571
    %573 = vdwg.mxu0
    %574 = vmatpush.msra.mxu0 0.0
    %575 = vmatpush.msra.mxu0 0.0
    %576 = vmatpush.msra.mxu0 0.0
    %577 = vmatpush.msra.mxu0 0.0
    %578 = vmatpush.msra.mxu0 0.0
    %579 = vmatpush.msra.mxu0 0.0
    %580 = vmatpush.msra.mxu0 0.0
    %581 = vmatpush.msra.mxu0 0.0
    %582 = vmatpush.msra.mxu0 %v549
    %583 = vmatpush.msra.mxu0 %v547
    %584 = vmatpush.msra.mxu0 %v545
    %585 = vmatpush.msra.mxu0 %v543
    %586 = vmatpush.msra.mxu0 %v541
    %587 = vmatpush.msra.mxu0 %v539
    %588 = vmatpush.msra.mxu0 %v537
    %589 = vmatpush.msra.mxu0 %v535
    %590 = vmatmul.f32.gmra.mxu0 %v552
    %v591 = vpop.f32.mrf.mxu0
    %v592 = vadd.f32 0.0, %v591
    %593 = vdwg.mxu0
    %v594 = vadd.f32 %v518, %v572
    %v595 = vadd.f32 %v519, %v592
    %v596 = vxor.u32 %v594, 2147483648
    %v597 = vxor.u32 %v595, 2147483648
    %v598 = vmul.f32 %v596, 1.442695
    %v599 = vpow.pop %v598
    %v600 = vmul.f32 %v597, 1.442695
    %v601 = vpow.pop %v600
    %v602 = vadd.f32 %v599, 1.0
    %v603 = vadd.f32 %v601, 1.0
    %v604 = vrcp.pop %v602
    %v605 = vmul.f32 %v602, %v604
    %v606 = vsub.f32 1.0, %v605
    %v607 = vmul.f32 %v604, %v606
    %v608 = vadd.f32 %v604, %v607
    %vm609 = vweird.f32 %v602
    %vm610 = vweird.f32 %v604
    %vm611 = vmor %vm609, %vm610
    %v612 = vsel %vm611, %v604, %v608
    %v613 = vand.u32 2147483647, %v602
    %vm614 = vcmp.eq.f32.partialorder %v613, 8.507059e+37
    %v615 = vand.u32 %v602, 2147483648
    %v616 = vor.u32 1.1754944e-38, %v615
    %v617 = vsel %vm614, %v616, %v612
    %v618 = vmul.f32 1.0, %v617
    %v619 = vrcp.pop %v603
    %v620 = vmul.f32 %v603, %v619
    %v621 = vsub.f32 1.0, %v620
    %v622 = vmul.f32 %v619, %v621
    %v623 = vadd.f32 %v619, %v622
    %vm624 = vweird.f32 %v603
    %vm625 = vweird.f32 %v619
    %vm626 = vmor %vm624, %vm625
    %v627 = vsel %vm626, %v619, %v623
    %v628 = vand.u32 2147483647, %v603
    %vm629 = vcmp.eq.f32.partialorder %v628, 8.507059e+37
    %v630 = vand.u32 %v603, 2147483648
    %v631 = vor.u32 1.1754944e-38, %v630
    %v632 = vsel %vm629, %v631, %v627
    %v633 = vmul.f32 1.0, %v632
    %v634 = vtanh.pop %v595
    %v635 = vmul.f32 %v618, 0.0
    %v636 = vmul.f32 %v618, %v634
    %638 = vrot.lane.b32.xlu0 %v636, 64
    %v639 = vpop.permute.xlu0 %638
    %v641 = vadd.f32 %v635, %v639
    %v642 = vtanh.pop %v641
    %v643 = vmul.f32 %v633, %v642
    %645 = vrot.lane.b32.xlu0 %v643, 64
    %v646 = vpop.permute.xlu0 %645
    %v648 = vsel %vm243, %v646, 0.0
    %650 = vrot.lane.b32.xlu0 %v641, 64
    %v651 = vpop.permute.xlu0 %650
    %v653 = vsel %vm243, %v651, 0.0
    %v655 = vsel %vm550, %v648, 0
    %657 = vmatpush.msra.mxu0 0.0
    %658 = vmatpush.msra.mxu0 0.0
    %659 = vmatpush.msra.mxu0 0.0
    %660 = vmatpush.msra.mxu0 0.0
    %661 = vmatpush.msra.mxu0 0.0
    %662 = vmatpush.msra.mxu0 0.0
    %663 = vmatpush.msra.mxu0 0.0
    %664 = vmatpush.msra.mxu0 0.0
    %665 = vmatpush.msra.mxu0 %v548
    %666 = vmatpush.msra.mxu0 %v546
    %667 = vmatpush.msra.mxu0 %v544
    %668 = vmatpush.msra.mxu0 %v542
    %669 = vmatpush.msra.mxu0 %v540
    %670 = vmatpush.msra.mxu0 %v538
    %671 = vmatpush.msra.mxu0 %v536
    %672 = vmatpush.msra.mxu0 %v534
    %673 = vmatmul.f32.gmra.mxu0 %v655
    %v674 = vpop.f32.mrf.mxu0
    %v675 = vadd.f32 0.0, %v674
    %676 = vdwg.mxu0
    %677 = vmatpush.msra.mxu0 0.0
    %678 = vmatpush.msra.mxu0 0.0
    %679 = vmatpush.msra.mxu0 0.0
    %680 = vmatpush.msra.mxu0 0.0
    %681 = vmatpush.msra.mxu0 0.0
    %682 = vmatpush.msra.mxu0 0.0
    %683 = vmatpush.msra.mxu0 0.0
    %684 = vmatpush.msra.mxu0 0.0
    %685 = vmatpush.msra.mxu0 %v549
    %686 = vmatpush.msra.mxu0 %v547
    %687 = vmatpush.msra.mxu0 %v545
    %688 = vmatpush.msra.mxu0 %v543
    %689 = vmatpush.msra.mxu0 %v541
    %690 = vmatpush.msra.mxu0 %v539
    %691 = vmatpush.msra.mxu0 %v537
    %692 = vmatpush.msra.mxu0 %v535
    %693 = vmatmul.f32.gmra.mxu0 %v655
    %v694 = vpop.f32.mrf.mxu0
    %v695 = vadd.f32 0.0, %v694
    %696 = vdwg.mxu0
    %v697 = vadd.f32 %v520, %v675
    %v698 = vadd.f32 %v521, %v695
    %v699 = vxor.u32 %v697, 2147483648
    %v700 = vxor.u32 %v698, 2147483648
    %v701 = vmul.f32 %v699, 1.442695
    %v702 = vpow.pop %v701
    %v703 = vmul.f32 %v700, 1.442695
    %v704 = vpow.pop %v703
    %v705 = vadd.f32 %v702, 1.0
    %v706 = vadd.f32 %v704, 1.0
    %v707 = vrcp.pop %v705
    %v708 = vmul.f32 %v705, %v707
    %v709 = vsub.f32 1.0, %v708
    %v710 = vmul.f32 %v707, %v709
    %v711 = vadd.f32 %v707, %v710
    %vm712 = vweird.f32 %v705
    %vm713 = vweird.f32 %v707
    %vm714 = vmor %vm712, %vm713
    %v715 = vsel %vm714, %v707, %v711
    %v716 = vand.u32 2147483647, %v705
    %vm717 = vcmp.eq.f32.partialorder %v716, 8.507059e+37
    %v718 = vand.u32 %v705, 2147483648
    %v719 = vor.u32 1.1754944e-38, %v718
    %v720 = vsel %vm717, %v719, %v715
    %v721 = vmul.f32 1.0, %v720
    %v722 = vrcp.pop %v706
    %v723 = vmul.f32 %v706, %v722
    %v724 = vsub.f32 1.0, %v723
    %v725 = vmul.f32 %v722, %v724
    %v726 = vadd.f32 %v722, %v725
    %vm727 = vweird.f32 %v706
    %vm728 = vweird.f32 %v722
    %vm729 = vmor %vm727, %vm728
    %v730 = vsel %vm729, %v722, %v726
    %v731 = vand.u32 2147483647, %v706
    %vm732 = vcmp.eq.f32.partialorder %v731, 8.507059e+37
    %v733 = vand.u32 %v706, 2147483648
    %v734 = vor.u32 1.1754944e-38, %v733
    %v735 = vsel %vm732, %v734, %v730
    %v736 = vmul.f32 1.0, %v735
    %v737 = vtanh.pop %v698
    %739 = vrot.lane.b32.xlu0 %v653, 64
    %v740 = vpop.permute.xlu0 %739
    %v742 = vmul.f32 %v721, %v740
    %v743 = vmul.f32 %v721, %v737
    %745 = vrot.lane.b32.xlu0 %v743, 64
    %v746 = vpop.permute.xlu0 %745
    %v748 = vadd.f32 %v742, %v746
    %v749 = vtanh.pop %v748
    %v750 = vmul.f32 %v736, %v749
    %752 = vrot.lane.b32.xlu0 %v750, 64
    %v753 = vpop.permute.xlu0 %752
    %v755 = vsel %vm245, %v753, %v648
    %757 = vrot.lane.b32.xlu0 %v748, 64
    %v758 = vpop.permute.xlu0 %757
    %v760 = vsel %vm245, %v758, %v653
    %v762 = vsel %vm550, %v755, 0
    %764 = vmatpush.msra.mxu0 0.0
    %765 = vmatpush.msra.mxu0 0.0
    %766 = vmatpush.msra.mxu0 0.0
    %767 = vmatpush.msra.mxu0 0.0
    %768 = vmatpush.msra.mxu0 0.0
    %769 = vmatpush.msra.mxu0 0.0
    %770 = vmatpush.msra.mxu0 0.0
    %771 = vmatpush.msra.mxu0 0.0
    %772 = vmatpush.msra.mxu0 %v548
    %773 = vmatpush.msra.mxu0 %v546
    %774 = vmatpush.msra.mxu0 %v544
    %775 = vmatpush.msra.mxu0 %v542
    %776 = vmatpush.msra.mxu0 %v540
    %777 = vmatpush.msra.mxu0 %v538
    %778 = vmatpush.msra.mxu0 %v536
    %779 = vmatpush.msra.mxu0 %v534
    %780 = vmatmul.f32.gmra.mxu0 %v762
    %v781 = vpop.f32.mrf.mxu0
    %v782 = vadd.f32 0.0, %v781
    %783 = vdwg.mxu0
    %784 = vmatpush.msra.mxu0 0.0
    %785 = vmatpush.msra.mxu0 0.0
    %786 = vmatpush.msra.mxu0 0.0
    %787 = vmatpush.msra.mxu0 0.0
    %788 = vmatpush.msra.mxu0 0.0
    %789 = vmatpush.msra.mxu0 0.0
    %790 = vmatpush.msra.mxu0 0.0
    %791 = vmatpush.msra.mxu0 0.0
    %792 = vmatpush.msra.mxu0 %v549
    %793 = vmatpush.msra.mxu0 %v547
    %794 = vmatpush.msra.mxu0 %v545
    %795 = vmatpush.msra.mxu0 %v543
    %796 = vmatpush.msra.mxu0 %v541
    %797 = vmatpush.msra.mxu0 %v539
    %798 = vmatpush.msra.mxu0 %v537
    %799 = vmatpush.msra.mxu0 %v535
    %800 = vmatmul.f32.gmra.mxu0 %v762
    %v801 = vpop.f32.mrf.mxu0
    %v802 = vadd.f32 0.0, %v801
    %803 = vdwg.mxu0
    %v804 = vadd.f32 %v522, %v782
    %v805 = vadd.f32 %v523, %v802
    %v806 = vxor.u32 %v804, 2147483648
    %v807 = vxor.u32 %v805, 2147483648
    %v808 = vmul.f32 %v806, 1.442695
    %v809 = vpow.pop %v808
    %v810 = vmul.f32 %v807, 1.442695
    %v811 = vpow.pop %v810
    %v812 = vadd.f32 %v809, 1.0
    %v813 = vadd.f32 %v811, 1.0
    %v814 = vrcp.pop %v812
    %v815 = vmul.f32 %v812, %v814
    %v816 = vsub.f32 1.0, %v815
    %v817 = vmul.f32 %v814, %v816
    %v818 = vadd.f32 %v814, %v817
    %vm819 = vweird.f32 %v812
    %vm820 = vweird.f32 %v814
    %vm821 = vmor %vm819, %vm820
    %v822 = vsel %vm821, %v814, %v818
    %v823 = vand.u32 2147483647, %v812
    %vm824 = vcmp.eq.f32.partialorder %v823, 8.507059e+37
    %v825 = vand.u32 %v812, 2147483648
    %v826 = vor.u32 1.1754944e-38, %v825
    %v827 = vsel %vm824, %v826, %v822
    %v828 = vmul.f32 1.0, %v827
    %v829 = vrcp.pop %v813
    %v830 = vmul.f32 %v813, %v829
    %v831 = vsub.f32 1.0, %v830
    %v832 = vmul.f32 %v829, %v831
    %v833 = vadd.f32 %v829, %v832
    %vm834 = vweird.f32 %v813
    %vm835 = vweird.f32 %v829
    %vm836 = vmor %vm834, %vm835
    %v837 = vsel %vm836, %v829, %v833
    %v838 = vand.u32 2147483647, %v813
    %vm839 = vcmp.eq.f32.partialorder %v838, 8.507059e+37
    %v840 = vand.u32 %v813, 2147483648
    %v841 = vor.u32 1.1754944e-38, %v840
    %v842 = vsel %vm839, %v841, %v837
    %v843 = vmul.f32 1.0, %v842
    %v844 = vtanh.pop %v805
    %846 = vrot.lane.b32.xlu0 %v760, 64
    %v847 = vpop.permute.xlu0 %846
    %v849 = vmul.f32 %v828, %v847
    %v850 = vmul.f32 %v828, %v844
    %852 = vrot.lane.b32.xlu0 %v850, 64
    %v853 = vpop.permute.xlu0 %852
    %v855 = vadd.f32 %v849, %v853
    %v856 = vtanh.pop %v855
    %v857 = vmul.f32 %v843, %v856
    %859 = vrot.lane.b32.xlu0 %v857, 64
    %v860 = vpop.permute.xlu0 %859
    %v862 = vsel %vm247, %v860, %v755
    %864 = vrot.lane.b32.xlu0 %v855, 64
    %v865 = vpop.permute.xlu0 %864
    %v867 = vsel %vm247, %v865, %v760
    %v869 = vsel %vm550, %v862, 0
    %871 = vmatpush.msra.mxu0 0.0
    %872 = vmatpush.msra.mxu0 0.0
    %873 = vmatpush.msra.mxu0 0.0
    %874 = vmatpush.msra.mxu0 0.0
    %875 = vmatpush.msra.mxu0 0.0
    %876 = vmatpush.msra.mxu0 0.0
    %877 = vmatpush.msra.mxu0 0.0
    %878 = vmatpush.msra.mxu0 0.0
    %879 = vmatpush.msra.mxu0 %v548
    %880 = vmatpush.msra.mxu0 %v546
    %881 = vmatpush.msra.mxu0 %v544
    %882 = vmatpush.msra.mxu0 %v542
    %883 = vmatpush.msra.mxu0 %v540
    %884 = vmatpush.msra.mxu0 %v538
    %885 = vmatpush.msra.mxu0 %v536
    %886 = vmatpush.msra.mxu0 %v534
    %887 = vmatmul.f32.gmra.mxu0 %v869
    %v888 = vpop.f32.mrf.mxu0
    %v889 = vadd.f32 0.0, %v888
    %890 = vdwg.mxu0
    %891 = vmatpush.msra.mxu0 0.0
    %892 = vmatpush.msra.mxu0 0.0
    %893 = vmatpush.msra.mxu0 0.0
    %894 = vmatpush.msra.mxu0 0.0
    %895 = vmatpush.msra.mxu0 0.0
    %896 = vmatpush.msra.mxu0 0.0
    %897 = vmatpush.msra.mxu0 0.0
    %898 = vmatpush.msra.mxu0 0.0
    %899 = vmatpush.msra.mxu0 %v549
    %900 = vmatpush.msra.mxu0 %v547
    %901 = vmatpush.msra.mxu0 %v545
    %902 = vmatpush.msra.mxu0 %v543
    %903 = vmatpush.msra.mxu0 %v541
    %904 = vmatpush.msra.mxu0 %v539
    %905 = vmatpush.msra.mxu0 %v537
    %906 = vmatpush.msra.mxu0 %v535
    %907 = vmatmul.f32.gmra.mxu0 %v869
    %v908 = vpop.f32.mrf.mxu0
    %v909 = vadd.f32 0.0, %v908
    %910 = vdwg.mxu0
    %v911 = vadd.f32 %v524, %v889
    %v912 = vadd.f32 %v525, %v909
    %v913 = vxor.u32 %v911, 2147483648
    %v914 = vxor.u32 %v912, 2147483648
    %v915 = vmul.f32 %v913, 1.442695
    %v916 = vpow.pop %v915
    %v917 = vmul.f32 %v914, 1.442695
    %v918 = vpow.pop %v917
    %v919 = vadd.f32 %v916, 1.0
    %v920 = vadd.f32 %v918, 1.0
    %v921 = vrcp.pop %v919
    %v922 = vmul.f32 %v919, %v921
    %v923 = vsub.f32 1.0, %v922
    %v924 = vmul.f32 %v921, %v923
    %v925 = vadd.f32 %v921, %v924
    %vm926 = vweird.f32 %v919
    %vm927 = vweird.f32 %v921
    %vm928 = vmor %vm926, %vm927
    %v929 = vsel %vm928, %v921, %v925
    %v930 = vand.u32 2147483647, %v919
    %vm931 = vcmp.eq.f32.partialorder %v930, 8.507059e+37
    %v932 = vand.u32 %v919, 2147483648
    %v933 = vor.u32 1.1754944e-38, %v932
    %v934 = vsel %vm931, %v933, %v929
    %v935 = vmul.f32 1.0, %v934
    %v936 = vrcp.pop %v920
    %v937 = vmul.f32 %v920, %v936
    %v938 = vsub.f32 1.0, %v937
    %v939 = vmul.f32 %v936, %v938
    %v940 = vadd.f32 %v936, %v939
    %vm941 = vweird.f32 %v920
    %vm942 = vweird.f32 %v936
    %vm943 = vmor %vm941, %vm942
    %v944 = vsel %vm943, %v936, %v940
    %v945 = vand.u32 2147483647, %v920
    %vm946 = vcmp.eq.f32.partialorder %v945, 8.507059e+37
    %v947 = vand.u32 %v920, 2147483648
    %v948 = vor.u32 1.1754944e-38, %v947
    %v949 = vsel %vm946, %v948, %v944
    %v950 = vmul.f32 1.0, %v949
    %v951 = vtanh.pop %v912
    %953 = vrot.lane.b32.xlu0 %v867, 64
    %v954 = vpop.permute.xlu0 %953
    %v956 = vmul.f32 %v935, %v954
    %v957 = vmul.f32 %v935, %v951
    %959 = vrot.lane.b32.xlu0 %v957, 64
    %v960 = vpop.permute.xlu0 %959
    %v962 = vadd.f32 %v956, %v960
    %v963 = vtanh.pop %v962
    %v964 = vmul.f32 %v950, %v963
    %966 = vrot.lane.b32.xlu0 %v964, 64
    %v967 = vpop.permute.xlu0 %966
    %v969 = vsel %vm249, %v967, %v862
    %971 = vrot.lane.b32.xlu0 %v962, 64
    %v972 = vpop.permute.xlu0 %971
    %v974 = vsel %vm249, %v972, %v867
    %v976 = vsel %vm550, %v969, 0
    %978 = vmatpush.msra.mxu0 0.0
    %979 = vmatpush.msra.mxu0 0.0
    %980 = vmatpush.msra.mxu0 0.0
    %981 = vmatpush.msra.mxu0 0.0
    %982 = vmatpush.msra.mxu0 0.0
    %983 = vmatpush.msra.mxu0 0.0
    %984 = vmatpush.msra.mxu0 0.0
    %985 = vmatpush.msra.mxu0 0.0
    %986 = vmatpush.msra.mxu0 %v548
    %987 = vmatpush.msra.mxu0 %v546
    %988 = vmatpush.msra.mxu0 %v544
    %989 = vmatpush.msra.mxu0 %v542
    %990 = vmatpush.msra.mxu0 %v540
    %991 = vmatpush.msra.mxu0 %v538
    %992 = vmatpush.msra.mxu0 %v536
    %993 = vmatpush.msra.mxu0 %v534
    %994 = vmatmul.f32.gmra.mxu0 %v976
    %v995 = vpop.f32.mrf.mxu0
    %v996 = vadd.f32 0.0, %v995
    %997 = vdwg.mxu0
    %998 = vmatpush.msra.mxu0 0.0
    %999 = vmatpush.msra.mxu0 0.0
    %1000 = vmatpush.msra.mxu0 0.0
    %1001 = vmatpush.msra.mxu0 0.0
    %1002 = vmatpush.msra.mxu0 0.0
    %1003 = vmatpush.msra.mxu0 0.0
    %1004 = vmatpush.msra.mxu0 0.0
    %1005 = vmatpush.msra.mxu0 0.0
    %1006 = vmatpush.msra.mxu0 %v549
    %1007 = vmatpush.msra.mxu0 %v547
    %1008 = vmatpush.msra.mxu0 %v545
    %1009 = vmatpush.msra.mxu0 %v543
    %1010 = vmatpush.msra.mxu0 %v541
    %1011 = vmatpush.msra.mxu0 %v539
    %1012 = vmatpush.msra.mxu0 %v537
    %1013 = vmatpush.msra.mxu0 %v535
    %1014 = vmatmul.f32.gmra.mxu0 %v976
    %v1015 = vpop.f32.mrf.mxu0
    %v1016 = vadd.f32 0.0, %v1015
    %1017 = vdwg.mxu0
    %v1018 = vadd.f32 %v526, %v996
    %v1019 = vadd.f32 %v527, %v1016
    %v1020 = vxor.u32 %v1018, 2147483648
    %v1021 = vxor.u32 %v1019, 2147483648
    %v1022 = vmul.f32 %v1020, 1.442695
    %v1023 = vpow.pop %v1022
    %v1024 = vmul.f32 %v1021, 1.442695
    %v1025 = vpow.pop %v1024
    %v1026 = vadd.f32 %v1023, 1.0
    %v1027 = vadd.f32 %v1025, 1.0
    %v1028 = vrcp.pop %v1026
    %v1029 = vmul.f32 %v1026, %v1028
    %v1030 = vsub.f32 1.0, %v1029
    %v1031 = vmul.f32 %v1028, %v1030
    %v1032 = vadd.f32 %v1028, %v1031
    %vm1033 = vweird.f32 %v1026
    %vm1034 = vweird.f32 %v1028
    %vm1035 = vmor %vm1033, %vm1034
    %v1036 = vsel %vm1035, %v1028, %v1032
    %v1037 = vand.u32 2147483647, %v1026
    %vm1038 = vcmp.eq.f32.partialorder %v1037, 8.507059e+37
    %v1039 = vand.u32 %v1026, 2147483648
    %v1040 = vor.u32 1.1754944e-38, %v1039
    %v1041 = vsel %vm1038, %v1040, %v1036
    %v1042 = vmul.f32 1.0, %v1041
    %v1043 = vrcp.pop %v1027
    %v1044 = vmul.f32 %v1027, %v1043
    %v1045 = vsub.f32 1.0, %v1044
    %v1046 = vmul.f32 %v1043, %v1045
    %v1047 = vadd.f32 %v1043, %v1046
    %vm1048 = vweird.f32 %v1027
    %vm1049 = vweird.f32 %v1043
    %vm1050 = vmor %vm1048, %vm1049
    %v1051 = vsel %vm1050, %v1043, %v1047
    %v1052 = vand.u32 2147483647, %v1027
    %vm1053 = vcmp.eq.f32.partialorder %v1052, 8.507059e+37
    %v1054 = vand.u32 %v1027, 2147483648
    %v1055 = vor.u32 1.1754944e-38, %v1054
    %v1056 = vsel %vm1053, %v1055, %v1051
    %v1057 = vmul.f32 1.0, %v1056
    %v1058 = vtanh.pop %v1019
    %1060 = vrot.lane.b32.xlu0 %v974, 64
    %v1061 = vpop.permute.xlu0 %1060
    %v1063 = vmul.f32 %v1042, %v1061
    %v1064 = vmul.f32 %v1042, %v1058
    %1066 = vrot.lane.b32.xlu0 %v1064, 64
    %v1067 = vpop.permute.xlu0 %1066
    %v1069 = vadd.f32 %v1063, %v1067
    %v1070 = vtanh.pop %v1069
    %v1071 = vmul.f32 %v1057, %v1070
    %1073 = vrot.lane.b32.xlu0 %v1071, 64
    %v1074 = vpop.permute.xlu0 %1073
    %v1076 = vsel %vm251, %v1074, %v969
    %1078 = vrot.lane.b32.xlu0 %v1069, 64
    %v1079 = vpop.permute.xlu0 %1078
    %v1081 = vsel %vm251, %v1079, %v974
    %v1083 = vsel %vm550, %v1076, 0
    %1085 = vmatpush.msra.mxu0 0.0
    %1086 = vmatpush.msra.mxu0 0.0
    %1087 = vmatpush.msra.mxu0 0.0
    %1088 = vmatpush.msra.mxu0 0.0
    %1089 = vmatpush.msra.mxu0 0.0
    %1090 = vmatpush.msra.mxu0 0.0
    %1091 = vmatpush.msra.mxu0 0.0
    %1092 = vmatpush.msra.mxu0 0.0
    %1093 = vmatpush.msra.mxu0 %v548
    %1094 = vmatpush.msra.mxu0 %v546
    %1095 = vmatpush.msra.mxu0 %v544
    %1096 = vmatpush.msra.mxu0 %v542
    %1097 = vmatpush.msra.mxu0 %v540
    %1098 = vmatpush.msra.mxu0 %v538
    %1099 = vmatpush.msra.mxu0 %v536
    %1100 = vmatpush.msra.mxu0 %v534
    %1101 = vmatmul.f32.gmra.mxu0 %v1083
    %v1102 = vpop.f32.mrf.mxu0
    %v1103 = vadd.f32 0.0, %v1102
    %1104 = vdwg.mxu0
    %1105 = vmatpush.msra.mxu0 0.0
    %1106 = vmatpush.msra.mxu0 0.0
    %1107 = vmatpush.msra.mxu0 0.0
    %1108 = vmatpush.msra.mxu0 0.0
    %1109 = vmatpush.msra.mxu0 0.0
    %1110 = vmatpush.msra.mxu0 0.0
    %1111 = vmatpush.msra.mxu0 0.0
    %1112 = vmatpush.msra.mxu0 0.0
    %1113 = vmatpush.msra.mxu0 %v549
    %1114 = vmatpush.msra.mxu0 %v547
    %1115 = vmatpush.msra.mxu0 %v545
    %1116 = vmatpush.msra.mxu0 %v543
    %1117 = vmatpush.msra.mxu0 %v541
    %1118 = vmatpush.msra.mxu0 %v539
    %1119 = vmatpush.msra.mxu0 %v537
    %1120 = vmatpush.msra.mxu0 %v535
    %1121 = vmatmul.f32.gmra.mxu0 %v1083
    %v1122 = vpop.f32.mrf.mxu0
    %v1123 = vadd.f32 0.0, %v1122
    %1124 = vdwg.mxu0
    %v1125 = vadd.f32 %v528, %v1103
    %v1126 = vadd.f32 %v529, %v1123
    %v1127 = vxor.u32 %v1125, 2147483648
    %v1128 = vxor.u32 %v1126, 2147483648
    %v1129 = vmul.f32 %v1127, 1.442695
    %v1130 = vpow.pop %v1129
    %v1131 = vmul.f32 %v1128, 1.442695
    %v1132 = vpow.pop %v1131
    %v1133 = vadd.f32 %v1130, 1.0
    %v1134 = vadd.f32 %v1132, 1.0
    %v1135 = vrcp.pop %v1133
    %v1136 = vmul.f32 %v1133, %v1135
    %v1137 = vsub.f32 1.0, %v1136
    %v1138 = vmul.f32 %v1135, %v1137
    %v1139 = vadd.f32 %v1135, %v1138
    %vm1140 = vweird.f32 %v1133
    %vm1141 = vweird.f32 %v1135
    %vm1142 = vmor %vm1140, %vm1141
    %v1143 = vsel %vm1142, %v1135, %v1139
    %v1144 = vand.u32 2147483647, %v1133
    %vm1145 = vcmp.eq.f32.partialorder %v1144, 8.507059e+37
    %v1146 = vand.u32 %v1133, 2147483648
    %v1147 = vor.u32 1.1754944e-38, %v1146
    %v1148 = vsel %vm1145, %v1147, %v1143
    %v1149 = vmul.f32 1.0, %v1148
    %v1150 = vrcp.pop %v1134
    %v1151 = vmul.f32 %v1134, %v1150
    %v1152 = vsub.f32 1.0, %v1151
    %v1153 = vmul.f32 %v1150, %v1152
    %v1154 = vadd.f32 %v1150, %v1153
    %vm1155 = vweird.f32 %v1134
    %vm1156 = vweird.f32 %v1150
    %vm1157 = vmor %vm1155, %vm1156
    %v1158 = vsel %vm1157, %v1150, %v1154
    %v1159 = vand.u32 2147483647, %v1134
    %vm1160 = vcmp.eq.f32.partialorder %v1159, 8.507059e+37
    %v1161 = vand.u32 %v1134, 2147483648
    %v1162 = vor.u32 1.1754944e-38, %v1161
    %v1163 = vsel %vm1160, %v1162, %v1158
    %v1164 = vmul.f32 1.0, %v1163
    %v1165 = vtanh.pop %v1126
    %1167 = vrot.lane.b32.xlu0 %v1081, 64
    %v1168 = vpop.permute.xlu0 %1167
    %v1170 = vmul.f32 %v1149, %v1168
    %v1171 = vmul.f32 %v1149, %v1165
    %1173 = vrot.lane.b32.xlu0 %v1171, 64
    %v1174 = vpop.permute.xlu0 %1173
    %v1176 = vadd.f32 %v1170, %v1174
    %v1177 = vtanh.pop %v1176
    %v1178 = vmul.f32 %v1164, %v1177
    %1180 = vrot.lane.b32.xlu0 %v1178, 64
    %v1181 = vpop.permute.xlu0 %1180
    %v1183 = vsel %vm253, %v1181, %v1076
    %1185 = vrot.lane.b32.xlu0 %v1176, 64
    %v1186 = vpop.permute.xlu0 %1185
    %v1188 = vsel %vm253, %v1186, %v1081
    %v1190 = vsel %vm550, %v1183, 0
    %1192 = vmatpush.msra.mxu0 0.0
    %1193 = vmatpush.msra.mxu0 0.0
    %1194 = vmatpush.msra.mxu0 0.0
    %1195 = vmatpush.msra.mxu0 0.0
    %1196 = vmatpush.msra.mxu0 0.0
    %1197 = vmatpush.msra.mxu0 0.0
    %1198 = vmatpush.msra.mxu0 0.0
    %1199 = vmatpush.msra.mxu0 0.0
    %1200 = vmatpush.msra.mxu0 %v548
    %1201 = vmatpush.msra.mxu0 %v546
    %1202 = vmatpush.msra.mxu0 %v544
    %1203 = vmatpush.msra.mxu0 %v542
    %1204 = vmatpush.msra.mxu0 %v540
    %1205 = vmatpush.msra.mxu0 %v538
    %1206 = vmatpush.msra.mxu0 %v536
    %1207 = vmatpush.msra.mxu0 %v534
    %1208 = vmatmul.f32.gmra.mxu0 %v1190
    %v1209 = vpop.f32.mrf.mxu0
    %v1210 = vadd.f32 0.0, %v1209
    %1211 = vdwg.mxu0
    %1212 = vmatpush.msra.mxu0 0.0
    %1213 = vmatpush.msra.mxu0 0.0
    %1214 = vmatpush.msra.mxu0 0.0
    %1215 = vmatpush.msra.mxu0 0.0
    %1216 = vmatpush.msra.mxu0 0.0
    %1217 = vmatpush.msra.mxu0 0.0
    %1218 = vmatpush.msra.mxu0 0.0
    %1219 = vmatpush.msra.mxu0 0.0
    %1220 = vmatpush.msra.mxu0 %v549
    %1221 = vmatpush.msra.mxu0 %v547
    %1222 = vmatpush.msra.mxu0 %v545
    %1223 = vmatpush.msra.mxu0 %v543
    %1224 = vmatpush.msra.mxu0 %v541
    %1225 = vmatpush.msra.mxu0 %v539
    %1226 = vmatpush.msra.mxu0 %v537
    %1227 = vmatpush.msra.mxu0 %v535
    %1228 = vmatmul.f32.gmra.mxu0 %v1190
    %v1229 = vpop.f32.mrf.mxu0
    %v1230 = vadd.f32 0.0, %v1229
    %1231 = vdwg.mxu0
    %v1232 = vadd.f32 %v530, %v1210
    %v1233 = vadd.f32 %v531, %v1230
    %v1234 = vxor.u32 %v1232, 2147483648
    %v1235 = vxor.u32 %v1233, 2147483648
    %v1236 = vmul.f32 %v1234, 1.442695
    %v1237 = vpow.pop %v1236
    %v1238 = vmul.f32 %v1235, 1.442695
    %v1239 = vpow.pop %v1238
    %v1240 = vadd.f32 %v1237, 1.0
    %v1241 = vadd.f32 %v1239, 1.0
    %v1242 = vrcp.pop %v1240
    %v1243 = vmul.f32 %v1240, %v1242
    %v1244 = vsub.f32 1.0, %v1243
    %v1245 = vmul.f32 %v1242, %v1244
    %v1246 = vadd.f32 %v1242, %v1245
    %vm1247 = vweird.f32 %v1240
    %vm1248 = vweird.f32 %v1242
    %vm1249 = vmor %vm1247, %vm1248
    %v1250 = vsel %vm1249, %v1242, %v1246
    %v1251 = vand.u32 2147483647, %v1240
    %vm1252 = vcmp.eq.f32.partialorder %v1251, 8.507059e+37
    %v1253 = vand.u32 %v1240, 2147483648
    %v1254 = vor.u32 1.1754944e-38, %v1253
    %v1255 = vsel %vm1252, %v1254, %v1250
    %v1256 = vmul.f32 1.0, %v1255
    %v1257 = vrcp.pop %v1241
    %v1258 = vmul.f32 %v1241, %v1257
    %v1259 = vsub.f32 1.0, %v1258
    %v1260 = vmul.f32 %v1257, %v1259
    %v1261 = vadd.f32 %v1257, %v1260
    %vm1262 = vweird.f32 %v1241
    %vm1263 = vweird.f32 %v1257
    %vm1264 = vmor %vm1262, %vm1263
    %v1265 = vsel %vm1264, %v1257, %v1261
    %v1266 = vand.u32 2147483647, %v1241
    %vm1267 = vcmp.eq.f32.partialorder %v1266, 8.507059e+37
    %v1268 = vand.u32 %v1241, 2147483648
    %v1269 = vor.u32 1.1754944e-38, %v1268
    %v1270 = vsel %vm1267, %v1269, %v1265
    %v1271 = vmul.f32 1.0, %v1270
    %v1272 = vtanh.pop %v1233
    %1274 = vrot.lane.b32.xlu0 %v1188, 64
    %v1275 = vpop.permute.xlu0 %1274
    %v1277 = vmul.f32 %v1256, %v1275
    %v1278 = vmul.f32 %v1256, %v1272
    %1280 = vrot.lane.b32.xlu0 %v1278, 64
    %v1281 = vpop.permute.xlu0 %1280
    %v1283 = vadd.f32 %v1277, %v1281
    %v1284 = vtanh.pop %v1283
    %v1285 = vmul.f32 %v1271, %v1284
    %1287 = vrot.lane.b32.xlu0 %v1285, 64
    %v1288 = vpop.permute.xlu0 %1287
    %v1290 = vsel %vm255, %v1288, %v1183
    %1292 = vrot.lane.b32.xlu0 %v1283, 64
    %v1293 = vpop.permute.xlu0 %1292
    %v1295 = vsel %vm255, %v1293, %v1188
    %v1297 = vsel %vm550, %v1290, 0
    %1299 = vmatpush.msra.mxu0 0.0
    %1300 = vmatpush.msra.mxu0 0.0
    %1301 = vmatpush.msra.mxu0 0.0
    %1302 = vmatpush.msra.mxu0 0.0
    %1303 = vmatpush.msra.mxu0 0.0
    %1304 = vmatpush.msra.mxu0 0.0
    %1305 = vmatpush.msra.mxu0 0.0
    %1306 = vmatpush.msra.mxu0 0.0
    %1307 = vmatpush.msra.mxu0 %v548
    %1308 = vmatpush.msra.mxu0 %v546
    %1309 = vmatpush.msra.mxu0 %v544
    %1310 = vmatpush.msra.mxu0 %v542
    %1311 = vmatpush.msra.mxu0 %v540
    %1312 = vmatpush.msra.mxu0 %v538
    %1313 = vmatpush.msra.mxu0 %v536
    %1314 = vmatpush.msra.mxu0 %v534
    %1315 = vmatmul.f32.gmra.mxu0 %v1297
    %v1316 = vpop.f32.mrf.mxu0
    %v1317 = vadd.f32 0.0, %v1316
    %1318 = vdwg.mxu0
    %1319 = vmatpush.msra.mxu0 0.0
    %1320 = vmatpush.msra.mxu0 0.0
    %1321 = vmatpush.msra.mxu0 0.0
    %1322 = vmatpush.msra.mxu0 0.0
    %1323 = vmatpush.msra.mxu0 0.0
    %1324 = vmatpush.msra.mxu0 0.0
    %1325 = vmatpush.msra.mxu0 0.0
    %1326 = vmatpush.msra.mxu0 0.0
    %1327 = vmatpush.msra.mxu0 %v549
    %1328 = vmatpush.msra.mxu0 %v547
    %1329 = vmatpush.msra.mxu0 %v545
    %1330 = vmatpush.msra.mxu0 %v543
    %1331 = vmatpush.msra.mxu0 %v541
    %1332 = vmatpush.msra.mxu0 %v539
    %1333 = vmatpush.msra.mxu0 %v537
    %1334 = vmatpush.msra.mxu0 %v535
    %1335 = vmatmul.f32.gmra.mxu0 %v1297
    %v1336 = vpop.f32.mrf.mxu0
    %v1337 = vadd.f32 0.0, %v1336
    %1338 = vdwg.mxu0
    %v1339 = vadd.f32 %v532, %v1317
    %v1340 = vadd.f32 %v533, %v1337
    %v1341 = vxor.u32 %v1339, 2147483648
    %v1342 = vxor.u32 %v1340, 2147483648
    %v1343 = vmul.f32 %v1341, 1.442695
    %v1344 = vpow.pop %v1343
    %v1345 = vmul.f32 %v1342, 1.442695
    %v1346 = vpow.pop %v1345
    %v1347 = vadd.f32 %v1344, 1.0
    %v1348 = vadd.f32 %v1346, 1.0
    %v1349 = vrcp.pop %v1347
    %v1350 = vmul.f32 %v1347, %v1349
    %v1351 = vsub.f32 1.0, %v1350
    %v1352 = vmul.f32 %v1349, %v1351
    %v1353 = vadd.f32 %v1349, %v1352
    %vm1354 = vweird.f32 %v1347
    %vm1355 = vweird.f32 %v1349
    %vm1356 = vmor %vm1354, %vm1355
    %v1357 = vsel %vm1356, %v1349, %v1353
    %v1358 = vand.u32 2147483647, %v1347
    %vm1359 = vcmp.eq.f32.partialorder %v1358, 8.507059e+37
    %v1360 = vand.u32 %v1347, 2147483648
    %v1361 = vor.u32 1.1754944e-38, %v1360
    %v1362 = vsel %vm1359, %v1361, %v1357
    %v1363 = vmul.f32 1.0, %v1362
    %v1364 = vrcp.pop %v1348
    %v1365 = vmul.f32 %v1348, %v1364
    %v1366 = vsub.f32 1.0, %v1365
    %v1367 = vmul.f32 %v1364, %v1366
    %v1368 = vadd.f32 %v1364, %v1367
    %vm1369 = vweird.f32 %v1348
    %vm1370 = vweird.f32 %v1364
    %vm1371 = vmor %vm1369, %vm1370
    %v1372 = vsel %vm1371, %v1364, %v1368
    %v1373 = vand.u32 2147483647, %v1348
    %vm1374 = vcmp.eq.f32.partialorder %v1373, 8.507059e+37
    %v1375 = vand.u32 %v1348, 2147483648
    %v1376 = vor.u32 1.1754944e-38, %v1375
    %v1377 = vsel %vm1374, %v1376, %v1372
    %v1378 = vmul.f32 1.0, %v1377
    %v1379 = vtanh.pop %v1340
    %1381 = vrot.lane.b32.xlu0 %v1295, 64
    %v1382 = vpop.permute.xlu0 %1381
    %v1384 = vmul.f32 %v1363, %v1382
    %v1385 = vmul.f32 %v1363, %v1379
    %1387 = vrot.lane.b32.xlu0 %v1385, 64
    %v1388 = vpop.permute.xlu0 %1387
    %v1390 = vadd.f32 %v1384, %v1388
    %v1391 = vtanh.pop %v1390
    %v1392 = vmul.f32 %v1378, %v1391
    %1394 = vrot.lane.b32.xlu0 %v1392, 64
    %v1395 = vpop.permute.xlu0 %1394
    %v1397 = vsel %vm257, %v1395, %v1290
    %v1398 = vld [vmem:[#allocation7] sm:$0xff]
    %v1399 = vld [vmem:[#allocation7 + $0x8] sm:$0xff]
    %v1400 = vld [vmem:[#allocation7 + $0x10] sm:$0xff]
    %v1401 = vld [vmem:[#allocation7 + $0x18] sm:$0xff]
    %v1402 = vld [vmem:[#allocation7 + $0x20] sm:$0xff]
    %v1403 = vld [vmem:[#allocation7 + $0x28] sm:$0xff]
    %v1404 = vld [vmem:[#allocation7 + $0x30] sm:$0xff]
    %v1405 = vld [vmem:[#allocation7 + $0x38] sm:$0xff]
    %v1406 = vld [vmem:[#allocation7 + $0x40] sm:$0xff]
    %v1407 = vld [vmem:[#allocation7 + $0x48] sm:$0xff]
    %v1408 = vld [vmem:[#allocation7 + $0x50] sm:$0xff]
    %v1409 = vld [vmem:[#allocation7 + $0x58] sm:$0xff]
    %v1410 = vld [vmem:[#allocation7 + $0x60] sm:$0xff]
    %v1411 = vld [vmem:[#allocation7 + $0x68] sm:$0xff]
    %v1412 = vld [vmem:[#allocation7 + $0x70] sm:$0xff]
    %v1413 = vld [vmem:[#allocation7 + $0x78] sm:$0xff]
    %v1414 = vld [vmem:[#allocation8] sm:$0xff]
    %v1415 = vld [vmem:[#allocation8 + $0x8] sm:$0xff]
    %v1416 = vld [vmem:[#allocation8 + $0x10] sm:$0xff]
    %v1417 = vld [vmem:[#allocation8 + $0x18] sm:$0xff]
    %v1418 = vld [vmem:[#allocation8 + $0x20] sm:$0xff]
    %v1419 = vld [vmem:[#allocation8 + $0x28] sm:$0xff]
    %v1420 = vld [vmem:[#allocation8 + $0x30] sm:$0xff]
    %v1421 = vld [vmem:[#allocation8 + $0x38] sm:$0xff]
    %v1422 = vld [vmem:[#allocation8 + $0x40] sm:$0xff]
    %v1423 = vld [vmem:[#allocation8 + $0x48] sm:$0xff]
    %v1424 = vld [vmem:[#allocation8 + $0x50] sm:$0xff]
    %v1425 = vld [vmem:[#allocation8 + $0x58] sm:$0xff]
    %v1426 = vld [vmem:[#allocation8 + $0x60] sm:$0xff]
    %v1427 = vld [vmem:[#allocation8 + $0x68] sm:$0xff]
    %v1428 = vld [vmem:[#allocation8 + $0x70] sm:$0xff]
    %v1429 = vld [vmem:[#allocation8 + $0x78] sm:$0xff]
    %1431 = vrot.lane.b32.xlu0 %v1397, 96
    %v1432 = vpop.permute.xlu0 %1431
    %1433 = vrot.lane.b32.xlu0 %v1290, 96
    %v1434 = vpop.permute.xlu0 %1433
    %1435 = vrot.lane.b32.xlu0 %v1183, 96
    %v1436 = vpop.permute.xlu0 %1435
    %1437 = vrot.lane.b32.xlu0 %v1076, 96
    %v1438 = vpop.permute.xlu0 %1437
    %1439 = vrot.lane.b32.xlu0 %v969, 96
    %v1440 = vpop.permute.xlu0 %1439
    %1441 = vrot.lane.b32.xlu0 %v862, 96
    %v1442 = vpop.permute.xlu0 %1441
    %1443 = vrot.lane.b32.xlu0 %v755, 96
    %v1444 = vpop.permute.xlu0 %1443
    %1445 = vrot.lane.b32.xlu0 %v648, 96
    %v1446 = vpop.permute.xlu0 %1445
    %vm1447 = vcmask 261120
    %v1448 = vsel %vm1447, %v1432, 0
    %v1450 = vsel %vm1447, %v1434, 0
    %v1452 = vsel %vm1447, %v1436, 0
    %v1454 = vsel %vm1447, %v1438, 0
    %v1456 = vsel %vm1447, %v1440, 0
    %v1458 = vsel %vm1447, %v1442, 0
    %v1460 = vsel %vm1447, %v1444, 0
    %v1462 = vsel %vm1447, %v1446, 0
    %1464 = vmatpush.msra.mxu0 0.0
    %1465 = vmatpush.msra.mxu0 0.0
    %1466 = vmatpush.msra.mxu0 0.0
    %1467 = vmatpush.msra.mxu0 0.0
    %1468 = vmatpush.msra.mxu0 0.0
    %1469 = vmatpush.msra.mxu0 0.0
    %1470 = vmatpush.msra.mxu0 0.0
    %1471 = vmatpush.msra.mxu0 0.0
    %1472 = vmatpush.msra.mxu0 0.0
    %1473 = vmatpush.msra.mxu0 0.0
    %1474 = vmatpush.msra.mxu0 0.0
    %1475 = vmatpush.msra.mxu0 0.0
    %1476 = vmatpush.msra.mxu0 %v1412
    %1477 = vmatpush.msra.mxu0 %v1410
    %1478 = vmatpush.msra.mxu0 %v1408
    %1479 = vmatpush.msra.mxu0 %v1406
    %1480 = vmatmul.f32.gmra.mxu0 %v1448
    %v1481 = vpop.f32.mrf.mxu0
    %v1482 = vadd.f32 0.0, %v1481
    %1483 = vmatmul.f32.gmra.mxu0 %v1450
    %v1484 = vpop.f32.mrf.mxu0
    %v1485 = vadd.f32 0.0, %v1484
    %1486 = vmatmul.f32.gmra.mxu0 %v1452
    %v1487 = vpop.f32.mrf.mxu0
    %v1488 = vadd.f32 0.0, %v1487
    %1489 = vmatmul.f32.gmra.mxu0 %v1454
    %v1490 = vpop.f32.mrf.mxu0
    %v1491 = vadd.f32 0.0, %v1490
    %1492 = vmatmul.f32.gmra.mxu0 %v1456
    %v1493 = vpop.f32.mrf.mxu0
    %v1494 = vadd.f32 0.0, %v1493
    %1495 = vmatmul.f32.gmra.mxu0 %v1458
    %v1496 = vpop.f32.mrf.mxu0
    %v1497 = vadd.f32 0.0, %v1496
    %1498 = vmatmul.f32.gmra.mxu0 %v1460
    %v1499 = vpop.f32.mrf.mxu0
    %v1500 = vadd.f32 0.0, %v1499
    %1501 = vmatmul.f32.gmra.mxu0 %v1462
    %v1502 = vpop.f32.mrf.mxu0
    %v1503 = vadd.f32 0.0, %v1502
    %1504 = vdwg.mxu0
    %1505 = vmatpush.msra.mxu0 0.0
    %1506 = vmatpush.msra.mxu0 0.0
    %1507 = vmatpush.msra.mxu0 0.0
    %1508 = vmatpush.msra.mxu0 0.0
    %1509 = vmatpush.msra.mxu0 0.0
    %1510 = vmatpush.msra.mxu0 0.0
    %1511 = vmatpush.msra.mxu0 0.0
    %1512 = vmatpush.msra.mxu0 0.0
    %1513 = vmatpush.msra.mxu0 0.0
    %1514 = vmatpush.msra.mxu0 0.0
    %1515 = vmatpush.msra.mxu0 0.0
    %1516 = vmatpush.msra.mxu0 0.0
    %1517 = vmatpush.msra.mxu0 %v1413
    %1518 = vmatpush.msra.mxu0 %v1411
    %1519 = vmatpush.msra.mxu0 %v1409
    %1520 = vmatpush.msra.mxu0 %v1407
    %1521 = vmatmul.f32.gmra.mxu0 %v1448
    %v1522 = vpop.f32.mrf.mxu0
    %v1523 = vadd.f32 0.0, %v1522
    %1524 = vmatmul.f32.gmra.mxu0 %v1450
    %v1525 = vpop.f32.mrf.mxu0
    %v1526 = vadd.f32 0.0, %v1525
    %1527 = vmatmul.f32.gmra.mxu0 %v1452
    %v1528 = vpop.f32.mrf.mxu0
    %v1529 = vadd.f32 0.0, %v1528
    %1530 = vmatmul.f32.gmra.mxu0 %v1454
    %v1531 = vpop.f32.mrf.mxu0
    %v1532 = vadd.f32 0.0, %v1531
    %1533 = vmatmul.f32.gmra.mxu0 %v1456
    %v1534 = vpop.f32.mrf.mxu0
    %v1535 = vadd.f32 0.0, %v1534
    %1536 = vmatmul.f32.gmra.mxu0 %v1458
    %v1537 = vpop.f32.mrf.mxu0
    %v1538 = vadd.f32 0.0, %v1537
    %1539 = vmatmul.f32.gmra.mxu0 %v1460
    %v1540 = vpop.f32.mrf.mxu0
    %v1541 = vadd.f32 0.0, %v1540
    %1542 = vmatmul.f32.gmra.mxu0 %v1462
    %v1543 = vpop.f32.mrf.mxu0
    %v1544 = vadd.f32 0.0, %v1543
    %1545 = vdwg.mxu0
    %v1546 = vsel %vm1447, %v648, 0
    %v1548 = vsel %vm1447, %v755, 0
    %v1550 = vsel %vm1447, %v862, 0
    %v1552 = vsel %vm1447, %v969, 0
    %v1554 = vsel %vm1447, %v1076, 0
    %v1556 = vsel %vm1447, %v1183, 0
    %v1558 = vsel %vm1447, %v1290, 0
    %v1560 = vsel %vm1447, %v1397, 0
    %1562 = vmatpush.msra.mxu0 0.0
    %1563 = vmatpush.msra.mxu0 0.0
    %1564 = vmatpush.msra.mxu0 0.0
    %1565 = vmatpush.msra.mxu0 0.0
    %1566 = vmatpush.msra.mxu0 0.0
    %1567 = vmatpush.msra.mxu0 0.0
    %1568 = vmatpush.msra.mxu0 0.0
    %1569 = vmatpush.msra.mxu0 0.0
    %1570 = vmatpush.msra.mxu0 0.0
    %1571 = vmatpush.msra.mxu0 0.0
    %1572 = vmatpush.msra.mxu0 0.0
    %1573 = vmatpush.msra.mxu0 0.0
    %1574 = vmatpush.msra.mxu0 %v1404
    %1575 = vmatpush.msra.mxu0 %v1402
    %1576 = vmatpush.msra.mxu0 %v1400
    %1577 = vmatpush.msra.mxu0 %v1398
    %1578 = vmatmul.f32.gmra.mxu0 %v1546
    %v1579 = vpop.f32.mrf.mxu0
    %v1580 = vadd.f32 %v1482, %v1579
    %1581 = vmatmul.f32.gmra.mxu0 %v1548
    %v1582 = vpop.f32.mrf.mxu0
    %v1583 = vadd.f32 %v1485, %v1582
    %1584 = vmatmul.f32.gmra.mxu0 %v1550
    %v1585 = vpop.f32.mrf.mxu0
    %v1586 = vadd.f32 %v1488, %v1585
    %1587 = vmatmul.f32.gmra.mxu0 %v1552
    %v1588 = vpop.f32.mrf.mxu0
    %v1589 = vadd.f32 %v1491, %v1588
    %1590 = vmatmul.f32.gmra.mxu0 %v1554
    %v1591 = vpop.f32.mrf.mxu0
    %v1592 = vadd.f32 %v1494, %v1591
    %1593 = vmatmul.f32.gmra.mxu0 %v1556
    %v1594 = vpop.f32.mrf.mxu0
    %v1595 = vadd.f32 %v1497, %v1594
    %1596 = vmatmul.f32.gmra.mxu0 %v1558
    %v1597 = vpop.f32.mrf.mxu0
    %v1598 = vadd.f32 %v1500, %v1597
    %1599 = vmatmul.f32.gmra.mxu0 %v1560
    %v1600 = vpop.f32.mrf.mxu0
    %v1601 = vadd.f32 %v1503, %v1600
    %1602 = vdwg.mxu0
    %1603 = vmatpush.msra.mxu0 0.0
    %1604 = vmatpush.msra.mxu0 0.0
    %1605 = vmatpush.msra.mxu0 0.0
    %1606 = vmatpush.msra.mxu0 0.0
    %1607 = vmatpush.msra.mxu0 0.0
    %1608 = vmatpush.msra.mxu0 0.0
    %1609 = vmatpush.msra.mxu0 0.0
    %1610 = vmatpush.msra.mxu0 0.0
    %1611 = vmatpush.msra.mxu0 0.0
    %1612 = vmatpush.msra.mxu0 0.0
    %1613 = vmatpush.msra.mxu0 0.0
    %1614 = vmatpush.msra.mxu0 0.0
    %1615 = vmatpush.msra.mxu0 %v1405
    %1616 = vmatpush.msra.mxu0 %v1403
    %1617 = vmatpush.msra.mxu0 %v1401
    %1618 = vmatpush.msra.mxu0 %v1399
    %1619 = vmatmul.f32.gmra.mxu0 %v1546
    %v1620 = vpop.f32.mrf.mxu0
    %v1621 = vadd.f32 %v1523, %v1620
    %1622 = vmatmul.f32.gmra.mxu0 %v1548
    %v1623 = vpop.f32.mrf.mxu0
    %v1624 = vadd.f32 %v1526, %v1623
    %1625 = vmatmul.f32.gmra.mxu0 %v1550
    %v1626 = vpop.f32.mrf.mxu0
    %v1627 = vadd.f32 %v1529, %v1626
    %1628 = vmatmul.f32.gmra.mxu0 %v1552
    %v1629 = vpop.f32.mrf.mxu0
    %v1630 = vadd.f32 %v1532, %v1629
    %1631 = vmatmul.f32.gmra.mxu0 %v1554
    %v1632 = vpop.f32.mrf.mxu0
    %v1633 = vadd.f32 %v1535, %v1632
    %1634 = vmatmul.f32.gmra.mxu0 %v1556
    %v1635 = vpop.f32.mrf.mxu0
    %v1636 = vadd.f32 %v1538, %v1635
    %1637 = vmatmul.f32.gmra.mxu0 %v1558
    %v1638 = vpop.f32.mrf.mxu0
    %v1639 = vadd.f32 %v1541, %v1638
    %1640 = vmatmul.f32.gmra.mxu0 %v1560
    %v1641 = vpop.f32.mrf.mxu0
    %v1642 = vadd.f32 %v1544, %v1641
    %1643 = vdwg.mxu0
    %1644 = vmatpush.msra.mxu0 0.0
    %1645 = vmatpush.msra.mxu0 0.0
    %1646 = vmatpush.msra.mxu0 0.0
    %1647 = vmatpush.msra.mxu0 0.0
    %1648 = vmatpush.msra.mxu0 0.0
    %1649 = vmatpush.msra.mxu0 0.0
    %1650 = vmatpush.msra.mxu0 0.0
    %1651 = vmatpush.msra.mxu0 0.0
    %1652 = vmatpush.msra.mxu0 0.0
    %1653 = vmatpush.msra.mxu0 0.0
    %1654 = vmatpush.msra.mxu0 0.0
    %1655 = vmatpush.msra.mxu0 0.0
    %1656 = vmatpush.msra.mxu0 %v1420
    %1657 = vmatpush.msra.mxu0 %v1418
    %1658 = vmatpush.msra.mxu0 %v1416
    %1659 = vmatpush.msra.mxu0 %v1414
    %1660 = vmatmul.f32.gmra.mxu0 %v1560
    %v1661 = vpop.f32.mrf.mxu0
    %v1662 = vadd.f32 0.0, %v1661
    %1663 = vmatmul.f32.gmra.mxu0 %v1558
    %v1664 = vpop.f32.mrf.mxu0
    %v1665 = vadd.f32 0.0, %v1664
    %1666 = vmatmul.f32.gmra.mxu0 %v1556
    %v1667 = vpop.f32.mrf.mxu0
    %v1668 = vadd.f32 0.0, %v1667
    %1669 = vmatmul.f32.gmra.mxu0 %v1554
    %v1670 = vpop.f32.mrf.mxu0
    %v1671 = vadd.f32 0.0, %v1670
    %1672 = vmatmul.f32.gmra.mxu0 %v1552
    %v1673 = vpop.f32.mrf.mxu0
    %v1674 = vadd.f32 0.0, %v1673
    %1675 = vmatmul.f32.gmra.mxu0 %v1550
    %v1676 = vpop.f32.mrf.mxu0
    %v1677 = vadd.f32 0.0, %v1676
    %1678 = vmatmul.f32.gmra.mxu0 %v1548
    %v1679 = vpop.f32.mrf.mxu0
    %v1680 = vadd.f32 0.0, %v1679
    %1681 = vmatmul.f32.gmra.mxu0 %v1546
    %v1682 = vpop.f32.mrf.mxu0
    %v1683 = vadd.f32 0.0, %v1682
    %1684 = vdwg.mxu0
    %1685 = vmatpush.msra.mxu0 0.0
    %1686 = vmatpush.msra.mxu0 0.0
    %1687 = vmatpush.msra.mxu0 0.0
    %1688 = vmatpush.msra.mxu0 0.0
    %1689 = vmatpush.msra.mxu0 0.0
    %1690 = vmatpush.msra.mxu0 0.0
    %1691 = vmatpush.msra.mxu0 0.0
    %1692 = vmatpush.msra.mxu0 0.0
    %1693 = vmatpush.msra.mxu0 0.0
    %1694 = vmatpush.msra.mxu0 0.0
    %1695 = vmatpush.msra.mxu0 0.0
    %1696 = vmatpush.msra.mxu0 0.0
    %1697 = vmatpush.msra.mxu0 %v1421
    %1698 = vmatpush.msra.mxu0 %v1419
    %1699 = vmatpush.msra.mxu0 %v1417
    %1700 = vmatpush.msra.mxu0 %v1415
    %1701 = vmatmul.f32.gmra.mxu0 %v1560
    %v1702 = vpop.f32.mrf.mxu0
    %v1703 = vadd.f32 0.0, %v1702
    %1704 = vmatmul.f32.gmra.mxu0 %v1558
    %v1705 = vpop.f32.mrf.mxu0
    %v1706 = vadd.f32 0.0, %v1705
    %1707 = vmatmul.f32.gmra.mxu0 %v1556
    %v1708 = vpop.f32.mrf.mxu0
    %v1709 = vadd.f32 0.0, %v1708
    %1710 = vmatmul.f32.gmra.mxu0 %v1554
    %v1711 = vpop.f32.mrf.mxu0
    %v1712 = vadd.f32 0.0, %v1711
    %1713 = vmatmul.f32.gmra.mxu0 %v1552
    %v1714 = vpop.f32.mrf.mxu0
    %v1715 = vadd.f32 0.0, %v1714
    %1716 = vmatmul.f32.gmra.mxu0 %v1550
    %v1717 = vpop.f32.mrf.mxu0
    %v1718 = vadd.f32 0.0, %v1717
    %1719 = vmatmul.f32.gmra.mxu0 %v1548
    %v1720 = vpop.f32.mrf.mxu0
    %v1721 = vadd.f32 0.0, %v1720
    %1722 = vmatmul.f32.gmra.mxu0 %v1546
    %v1723 = vpop.f32.mrf.mxu0
    %v1724 = vadd.f32 0.0, %v1723
    %1725 = vdwg.mxu0
    %v1726 = vadd.f32 %v1580, %v1662
    %v1727 = vadd.f32 %v1621, %v1703
    %v1728 = vadd.f32 %v1583, %v1665
    %v1729 = vadd.f32 %v1624, %v1706
    %v1730 = vadd.f32 %v1586, %v1668
    %v1731 = vadd.f32 %v1627, %v1709
    %v1732 = vadd.f32 %v1589, %v1671
    %v1733 = vadd.f32 %v1630, %v1712
    %v1734 = vadd.f32 %v1592, %v1674
    %v1735 = vadd.f32 %v1633, %v1715
    %v1736 = vadd.f32 %v1595, %v1677
    %v1737 = vadd.f32 %v1636, %v1718
    %v1738 = vadd.f32 %v1598, %v1680
    %v1739 = vadd.f32 %v1639, %v1721
    %v1740 = vadd.f32 %v1601, %v1683
    %v1741 = vadd.f32 %v1642, %v1724
    %1742 = vmatpush.msra.mxu0 0.0
    %1743 = vmatpush.msra.mxu0 0.0
    %1744 = vmatpush.msra.mxu0 0.0
    %1745 = vmatpush.msra.mxu0 0.0
    %1746 = vmatpush.msra.mxu0 0.0
    %1747 = vmatpush.msra.mxu0 0.0
    %1748 = vmatpush.msra.mxu0 0.0
    %1749 = vmatpush.msra.mxu0 0.0
    %1750 = vmatpush.msra.mxu0 0.0
    %1751 = vmatpush.msra.mxu0 0.0
    %1752 = vmatpush.msra.mxu0 0.0
    %1753 = vmatpush.msra.mxu0 0.0
    %1754 = vmatpush.msra.mxu0 %v1428
    %1755 = vmatpush.msra.mxu0 %v1426
    %1756 = vmatpush.msra.mxu0 %v1424
    %1757 = vmatpush.msra.mxu0 %v1422
    %1758 = vmatmul.f32.gmra.mxu0 %v1462
    %v1759 = vpop.f32.mrf.mxu0
    %v1760 = vadd.f32 0.0, %v1759
    %1761 = vmatmul.f32.gmra.mxu0 %v1460
    %v1762 = vpop.f32.mrf.mxu0
    %v1763 = vadd.f32 0.0, %v1762
    %1764 = vmatmul.f32.gmra.mxu0 %v1458
    %v1765 = vpop.f32.mrf.mxu0
    %v1766 = vadd.f32 0.0, %v1765
    %1767 = vmatmul.f32.gmra.mxu0 %v1456
    %v1768 = vpop.f32.mrf.mxu0
    %v1769 = vadd.f32 0.0, %v1768
    %1770 = vmatmul.f32.gmra.mxu0 %v1454
    %v1771 = vpop.f32.mrf.mxu0
    %v1772 = vadd.f32 0.0, %v1771
    %1773 = vmatmul.f32.gmra.mxu0 %v1452
    %v1774 = vpop.f32.mrf.mxu0
    %v1775 = vadd.f32 0.0, %v1774
    %1776 = vmatmul.f32.gmra.mxu0 %v1450
    %v1777 = vpop.f32.mrf.mxu0
    %v1778 = vadd.f32 0.0, %v1777
    %1779 = vmatmul.f32.gmra.mxu0 %v1448
    %v1780 = vpop.f32.mrf.mxu0
    %v1781 = vadd.f32 0.0, %v1780
    %1782 = vdwg.mxu0
    %1783 = vmatpush.msra.mxu0 0.0
    %1784 = vmatpush.msra.mxu0 0.0
    %1785 = vmatpush.msra.mxu0 0.0
    %1786 = vmatpush.msra.mxu0 0.0
    %1787 = vmatpush.msra.mxu0 0.0
    %1788 = vmatpush.msra.mxu0 0.0
    %1789 = vmatpush.msra.mxu0 0.0
    %1790 = vmatpush.msra.mxu0 0.0
    %1791 = vmatpush.msra.mxu0 0.0
    %1792 = vmatpush.msra.mxu0 0.0
    %1793 = vmatpush.msra.mxu0 0.0
    %1794 = vmatpush.msra.mxu0 0.0
    %1795 = vmatpush.msra.mxu0 %v1429
    %1796 = vmatpush.msra.mxu0 %v1427
    %1797 = vmatpush.msra.mxu0 %v1425
    %1798 = vmatpush.msra.mxu0 %v1423
    %1799 = vmatmul.f32.gmra.mxu0 %v1462
    %v1800 = vpop.f32.mrf.mxu0
    %v1801 = vadd.f32 0.0, %v1800
    %1802 = vmatmul.f32.gmra.mxu0 %v1460
    %v1803 = vpop.f32.mrf.mxu0
    %v1804 = vadd.f32 0.0, %v1803
    %1805 = vmatmul.f32.gmra.mxu0 %v1458
    %v1806 = vpop.f32.mrf.mxu0
    %v1807 = vadd.f32 0.0, %v1806
    %1808 = vmatmul.f32.gmra.mxu0 %v1456
    %v1809 = vpop.f32.mrf.mxu0
    %v1810 = vadd.f32 0.0, %v1809
    %1811 = vmatmul.f32.gmra.mxu0 %v1454
    %v1812 = vpop.f32.mrf.mxu0
    %v1813 = vadd.f32 0.0, %v1812
    %1814 = vmatmul.f32.gmra.mxu0 %v1452
    %v1815 = vpop.f32.mrf.mxu0
    %v1816 = vadd.f32 0.0, %v1815
    %1817 = vmatmul.f32.gmra.mxu0 %v1450
    %v1818 = vpop.f32.mrf.mxu0
    %v1819 = vadd.f32 0.0, %v1818
    %1820 = vmatmul.f32.gmra.mxu0 %v1448
    %v1821 = vpop.f32.mrf.mxu0
    %v1822 = vadd.f32 0.0, %v1821
    %1823 = vdwg.mxu0
    %v1824 = vadd.f32 %v1726, %v1760
    %v1825 = vadd.f32 %v1727, %v1801
    %v1826 = vadd.f32 %v1728, %v1763
    %v1827 = vadd.f32 %v1729, %v1804
    %v1828 = vadd.f32 %v1730, %v1766
    %v1829 = vadd.f32 %v1731, %v1807
    %v1830 = vadd.f32 %v1732, %v1769
    %v1831 = vadd.f32 %v1733, %v1810
    %v1832 = vadd.f32 %v1734, %v1772
    %v1833 = vadd.f32 %v1735, %v1813
    %v1834 = vadd.f32 %v1736, %v1775
    %v1835 = vadd.f32 %v1737, %v1816
    %v1836 = vadd.f32 %v1738, %v1778
    %v1837 = vadd.f32 %v1739, %v1819
    %v1838 = vadd.f32 %v1740, %v1781
    %v1839 = vadd.f32 %v1741, %v1822
    %v1840 = vld [vmem:[%s10] sm:$0x3]
    %v1842 = vperm.slane %v1840, 0
    %v1843 = vperm.slane %v1840, 1
    %v1846 = vadd.f32 %v1824, %v1842
    %v1847 = vadd.f32 %v1825, %v1843
    %v1848 = vadd.f32 %v1826, %v1842
    %v1849 = vadd.f32 %v1827, %v1843
    %v1850 = vadd.f32 %v1828, %v1842
    %v1851 = vadd.f32 %v1829, %v1843
    %v1852 = vadd.f32 %v1830, %v1842
    %v1853 = vadd.f32 %v1831, %v1843
    %v1854 = vadd.f32 %v1832, %v1842
    %v1855 = vadd.f32 %v1833, %v1843
    %v1856 = vadd.f32 %v1834, %v1842
    %v1857 = vadd.f32 %v1835, %v1843
    %v1858 = vadd.f32 %v1836, %v1842
    %v1859 = vadd.f32 %v1837, %v1843
    %v1860 = vadd.f32 %v1838, %v1842
    %v1861 = vadd.f32 %v1839, %v1843
    %v1862 = vld [vmem:[#allocation10] sm:$0xff]
    %v1863 = vld [vmem:[#allocation10 + $0x8] sm:$0xff]
    %v1864 = vld [vmem:[#allocation10 + $0x10] sm:$0xff]
    %v1865 = vld [vmem:[#allocation10 + $0x18] sm:$0xff]
    %v1866 = vld [vmem:[#allocation10 + $0x20] sm:$0xff]
    %v1867 = vld [vmem:[#allocation10 + $0x28] sm:$0xff]
    %v1868 = vld [vmem:[#allocation10 + $0x30] sm:$0xff]
    %v1869 = vld [vmem:[#allocation10 + $0x38] sm:$0xff]
    %v1870 = vld [vmem:[#allocation10 + $0x40] sm:$0xff]
    %v1871 = vld [vmem:[#allocation10 + $0x48] sm:$0xff]
    %v1872 = vld [vmem:[#allocation10 + $0x50] sm:$0xff]
    %v1873 = vld [vmem:[#allocation10 + $0x58] sm:$0xff]
    %v1874 = vld [vmem:[#allocation10 + $0x60] sm:$0xff]
    %v1875 = vld [vmem:[#allocation10 + $0x68] sm:$0xff]
    %v1876 = vld [vmem:[#allocation10 + $0x70] sm:$0xff]
    %v1877 = vld [vmem:[#allocation10 + $0x78] sm:$0xff]
    %1878 = vmatpush.msra.mxu0 0.0
    %1879 = vmatpush.msra.mxu0 0.0
    %1880 = vmatpush.msra.mxu0 0.0
    %1881 = vmatpush.msra.mxu0 0.0
    %1882 = vmatpush.msra.mxu0 0.0
    %1883 = vmatpush.msra.mxu0 0.0
    %1884 = vmatpush.msra.mxu0 0.0
    %1885 = vmatpush.msra.mxu0 0.0
    %1886 = vmatpush.msra.mxu0 %v1876
    %1887 = vmatpush.msra.mxu0 %v1874
    %1888 = vmatpush.msra.mxu0 %v1872
    %1889 = vmatpush.msra.mxu0 %v1870
    %1890 = vmatpush.msra.mxu0 %v1868
    %1891 = vmatpush.msra.mxu0 %v1866
    %1892 = vmatpush.msra.mxu0 %v1864
    %1893 = vmatpush.msra.mxu0 %v1862
    %1894 = vmatmul.f32.gmra.mxu0 %v552
    %v1895 = vpop.f32.mrf.mxu0
    %v1896 = vadd.f32 0.0, %v1895
    %1897 = vdwg.mxu0
    %1898 = vmatpush.msra.mxu0 0.0
    %1899 = vmatpush.msra.mxu0 0.0
    %1900 = vmatpush.msra.mxu0 0.0
    %1901 = vmatpush.msra.mxu0 0.0
    %1902 = vmatpush.msra.mxu0 0.0
    %1903 = vmatpush.msra.mxu0 0.0
    %1904 = vmatpush.msra.mxu0 0.0
    %1905 = vmatpush.msra.mxu0 0.0
    %1906 = vmatpush.msra.mxu0 %v1877
    %1907 = vmatpush.msra.mxu0 %v1875
    %1908 = vmatpush.msra.mxu0 %v1873
    %1909 = vmatpush.msra.mxu0 %v1871
    %1910 = vmatpush.msra.mxu0 %v1869
    %1911 = vmatpush.msra.mxu0 %v1867
    %1912 = vmatpush.msra.mxu0 %v1865
    %1913 = vmatpush.msra.mxu0 %v1863
    %1914 = vmatmul.f32.gmra.mxu0 %v552
    %v1915 = vpop.f32.mrf.mxu0
    %v1916 = vadd.f32 0.0, %v1915
    %1917 = vdwg.mxu0
    %v1918 = vadd.f32 %v1846, %v1896
    %v1919 = vadd.f32 %v1847, %v1916
    %v1920 = vxor.u32 %v1918, 2147483648
    %v1921 = vxor.u32 %v1919, 2147483648
    %v1922 = vmul.f32 %v1920, 1.442695
    %v1923 = vpow.pop %v1922
    %v1924 = vmul.f32 %v1921, 1.442695
    %v1925 = vpow.pop %v1924
    %v1926 = vadd.f32 %v1923, 1.0
    %v1927 = vadd.f32 %v1925, 1.0
    %v1928 = vrcp.pop %v1926
    %v1929 = vmul.f32 %v1926, %v1928
    %v1930 = vsub.f32 1.0, %v1929
    %v1931 = vmul.f32 %v1928, %v1930
    %v1932 = vadd.f32 %v1928, %v1931
    %vm1933 = vweird.f32 %v1926
    %vm1934 = vweird.f32 %v1928
    %vm1935 = vmor %vm1933, %vm1934
    %v1936 = vsel %vm1935, %v1928, %v1932
    %v1937 = vand.u32 2147483647, %v1926
    %vm1938 = vcmp.eq.f32.partialorder %v1937, 8.507059e+37
    %v1939 = vand.u32 %v1926, 2147483648
    %v1940 = vor.u32 1.1754944e-38, %v1939
    %v1941 = vsel %vm1938, %v1940, %v1936
    %v1942 = vmul.f32 1.0, %v1941
    %v1943 = vrcp.pop %v1927
    %v1944 = vmul.f32 %v1927, %v1943
    %v1945 = vsub.f32 1.0, %v1944
    %v1946 = vmul.f32 %v1943, %v1945
    %v1947 = vadd.f32 %v1943, %v1946
    %vm1948 = vweird.f32 %v1927
    %vm1949 = vweird.f32 %v1943
    %vm1950 = vmor %vm1948, %vm1949
    %v1951 = vsel %vm1950, %v1943, %v1947
    %v1952 = vand.u32 2147483647, %v1927
    %vm1953 = vcmp.eq.f32.partialorder %v1952, 8.507059e+37
    %v1954 = vand.u32 %v1927, 2147483648
    %v1955 = vor.u32 1.1754944e-38, %v1954
    %v1956 = vsel %vm1953, %v1955, %v1951
    %v1957 = vmul.f32 1.0, %v1956
    %v1958 = vtanh.pop %v1919
    %v1959 = vmul.f32 %v1942, 0.0
    %v1960 = vmul.f32 %v1942, %v1958
    %1962 = vrot.lane.b32.xlu0 %v1960, 64
    %v1963 = vpop.permute.xlu0 %1962
    %v1965 = vadd.f32 %v1959, %v1963
    %v1966 = vtanh.pop %v1965
    %v1967 = vmul.f32 %v1957, %v1966
    %1969 = vrot.lane.b32.xlu0 %v1967, 64
    %v1970 = vpop.permute.xlu0 %1969
    %v1972 = vsel %vm243, %v1970, 0.0
    %1974 = vrot.lane.b32.xlu0 %v1965, 64
    %v1975 = vpop.permute.xlu0 %1974
    %v1977 = vsel %vm243, %v1975, 0.0
    %v1979 = vsel %vm550, %v1972, 0
    %1981 = vmatpush.msra.mxu0 0.0
    %1982 = vmatpush.msra.mxu0 0.0
    %1983 = vmatpush.msra.mxu0 0.0
    %1984 = vmatpush.msra.mxu0 0.0
    %1985 = vmatpush.msra.mxu0 0.0
    %1986 = vmatpush.msra.mxu0 0.0
    %1987 = vmatpush.msra.mxu0 0.0
    %1988 = vmatpush.msra.mxu0 0.0
    %1989 = vmatpush.msra.mxu0 %v1876
    %1990 = vmatpush.msra.mxu0 %v1874
    %1991 = vmatpush.msra.mxu0 %v1872
    %1992 = vmatpush.msra.mxu0 %v1870
    %1993 = vmatpush.msra.mxu0 %v1868
    %1994 = vmatpush.msra.mxu0 %v1866
    %1995 = vmatpush.msra.mxu0 %v1864
    %1996 = vmatpush.msra.mxu0 %v1862
    %1997 = vmatmul.f32.gmra.mxu0 %v1979
    %v1998 = vpop.f32.mrf.mxu0
    %v1999 = vadd.f32 0.0, %v1998
    %2000 = vdwg.mxu0
    %2001 = vmatpush.msra.mxu0 0.0
    %2002 = vmatpush.msra.mxu0 0.0
    %2003 = vmatpush.msra.mxu0 0.0
    %2004 = vmatpush.msra.mxu0 0.0
    %2005 = vmatpush.msra.mxu0 0.0
    %2006 = vmatpush.msra.mxu0 0.0
    %2007 = vmatpush.msra.mxu0 0.0
    %2008 = vmatpush.msra.mxu0 0.0
    %2009 = vmatpush.msra.mxu0 %v1877
    %2010 = vmatpush.msra.mxu0 %v1875
    %2011 = vmatpush.msra.mxu0 %v1873
    %2012 = vmatpush.msra.mxu0 %v1871
    %2013 = vmatpush.msra.mxu0 %v1869
    %2014 = vmatpush.msra.mxu0 %v1867
    %2015 = vmatpush.msra.mxu0 %v1865
    %2016 = vmatpush.msra.mxu0 %v1863
    %2017 = vmatmul.f32.gmra.mxu0 %v1979
    %v2018 = vpop.f32.mrf.mxu0
    %v2019 = vadd.f32 0.0, %v2018
    %2020 = vdwg.mxu0
    %v2021 = vadd.f32 %v1848, %v1999
    %v2022 = vadd.f32 %v1849, %v2019
    %v2023 = vxor.u32 %v2021, 2147483648
    %v2024 = vxor.u32 %v2022, 2147483648
    %v2025 = vmul.f32 %v2023, 1.442695
    %v2026 = vpow.pop %v2025
    %v2027 = vmul.f32 %v2024, 1.442695
    %v2028 = vpow.pop %v2027
    %v2029 = vadd.f32 %v2026, 1.0
    %v2030 = vadd.f32 %v2028, 1.0
    %v2031 = vrcp.pop %v2029
    %v2032 = vmul.f32 %v2029, %v2031
    %v2033 = vsub.f32 1.0, %v2032
    %v2034 = vmul.f32 %v2031, %v2033
    %v2035 = vadd.f32 %v2031, %v2034
    %vm2036 = vweird.f32 %v2029
    %vm2037 = vweird.f32 %v2031
    %vm2038 = vmor %vm2036, %vm2037
    %v2039 = vsel %vm2038, %v2031, %v2035
    %v2040 = vand.u32 2147483647, %v2029
    %vm2041 = vcmp.eq.f32.partialorder %v2040, 8.507059e+37
    %v2042 = vand.u32 %v2029, 2147483648
    %v2043 = vor.u32 1.1754944e-38, %v2042
    %v2044 = vsel %vm2041, %v2043, %v2039
    %v2045 = vmul.f32 1.0, %v2044
    %v2046 = vrcp.pop %v2030
    %v2047 = vmul.f32 %v2030, %v2046
    %v2048 = vsub.f32 1.0, %v2047
    %v2049 = vmul.f32 %v2046, %v2048
    %v2050 = vadd.f32 %v2046, %v2049
    %vm2051 = vweird.f32 %v2030
    %vm2052 = vweird.f32 %v2046
    %vm2053 = vmor %vm2051, %vm2052
    %v2054 = vsel %vm2053, %v2046, %v2050
    %v2055 = vand.u32 2147483647, %v2030
    %vm2056 = vcmp.eq.f32.partialorder %v2055, 8.507059e+37
    %v2057 = vand.u32 %v2030, 2147483648
    %v2058 = vor.u32 1.1754944e-38, %v2057
    %v2059 = vsel %vm2056, %v2058, %v2054
    %v2060 = vmul.f32 1.0, %v2059
    %v2061 = vtanh.pop %v2022
    %2063 = vrot.lane.b32.xlu0 %v1977, 64
    %v2064 = vpop.permute.xlu0 %2063
    %v2066 = vmul.f32 %v2045, %v2064
    %v2067 = vmul.f32 %v2045, %v2061
    %2069 = vrot.lane.b32.xlu0 %v2067, 64
    %v2070 = vpop.permute.xlu0 %2069
    %v2072 = vadd.f32 %v2066, %v2070
    %v2073 = vtanh.pop %v2072
    %v2074 = vmul.f32 %v2060, %v2073
    %2076 = vrot.lane.b32.xlu0 %v2074, 64
    %v2077 = vpop.permute.xlu0 %2076
    %v2079 = vsel %vm245, %v2077, %v1972
    %2081 = vrot.lane.b32.xlu0 %v2072, 64
    %v2082 = vpop.permute.xlu0 %2081
    %v2084 = vsel %vm245, %v2082, %v1977
    %v2086 = vsel %vm550, %v2079, 0
    %2088 = vmatpush.msra.mxu0 0.0
    %2089 = vmatpush.msra.mxu0 0.0
    %2090 = vmatpush.msra.mxu0 0.0
    %2091 = vmatpush.msra.mxu0 0.0
    %2092 = vmatpush.msra.mxu0 0.0
    %2093 = vmatpush.msra.mxu0 0.0
    %2094 = vmatpush.msra.mxu0 0.0
    %2095 = vmatpush.msra.mxu0 0.0
    %2096 = vmatpush.msra.mxu0 %v1876
    %2097 = vmatpush.msra.mxu0 %v1874
    %2098 = vmatpush.msra.mxu0 %v1872
    %2099 = vmatpush.msra.mxu0 %v1870
    %2100 = vmatpush.msra.mxu0 %v1868
    %2101 = vmatpush.msra.mxu0 %v1866
    %2102 = vmatpush.msra.mxu0 %v1864
    %2103 = vmatpush.msra.mxu0 %v1862
    %2104 = vmatmul.f32.gmra.mxu0 %v2086
    %v2105 = vpop.f32.mrf.mxu0
    %v2106 = vadd.f32 0.0, %v2105
    %2107 = vdwg.mxu0
    %2108 = vmatpush.msra.mxu0 0.0
    %2109 = vmatpush.msra.mxu0 0.0
    %2110 = vmatpush.msra.mxu0 0.0
    %2111 = vmatpush.msra.mxu0 0.0
    %2112 = vmatpush.msra.mxu0 0.0
    %2113 = vmatpush.msra.mxu0 0.0
    %2114 = vmatpush.msra.mxu0 0.0
    %2115 = vmatpush.msra.mxu0 0.0
    %2116 = vmatpush.msra.mxu0 %v1877
    %2117 = vmatpush.msra.mxu0 %v1875
    %2118 = vmatpush.msra.mxu0 %v1873
    %2119 = vmatpush.msra.mxu0 %v1871
    %2120 = vmatpush.msra.mxu0 %v1869
    %2121 = vmatpush.msra.mxu0 %v1867
    %2122 = vmatpush.msra.mxu0 %v1865
    %2123 = vmatpush.msra.mxu0 %v1863
    %2124 = vmatmul.f32.gmra.mxu0 %v2086
    %v2125 = vpop.f32.mrf.mxu0
    %v2126 = vadd.f32 0.0, %v2125
    %2127 = vdwg.mxu0
    %v2128 = vadd.f32 %v1850, %v2106
    %v2129 = vadd.f32 %v1851, %v2126
    %v2130 = vxor.u32 %v2128, 2147483648
    %v2131 = vxor.u32 %v2129, 2147483648
    %v2132 = vmul.f32 %v2130, 1.442695
    %v2133 = vpow.pop %v2132
    %v2134 = vmul.f32 %v2131, 1.442695
    %v2135 = vpow.pop %v2134
    %v2136 = vadd.f32 %v2133, 1.0
    %v2137 = vadd.f32 %v2135, 1.0
    %v2138 = vrcp.pop %v2136
    %v2139 = vmul.f32 %v2136, %v2138
    %v2140 = vsub.f32 1.0, %v2139
    %v2141 = vmul.f32 %v2138, %v2140
    %v2142 = vadd.f32 %v2138, %v2141
    %vm2143 = vweird.f32 %v2136
    %vm2144 = vweird.f32 %v2138
    %vm2145 = vmor %vm2143, %vm2144
    %v2146 = vsel %vm2145, %v2138, %v2142
    %v2147 = vand.u32 2147483647, %v2136
    %vm2148 = vcmp.eq.f32.partialorder %v2147, 8.507059e+37
    %v2149 = vand.u32 %v2136, 2147483648
    %v2150 = vor.u32 1.1754944e-38, %v2149
    %v2151 = vsel %vm2148, %v2150, %v2146
    %v2152 = vmul.f32 1.0, %v2151
    %v2153 = vrcp.pop %v2137
    %v2154 = vmul.f32 %v2137, %v2153
    %v2155 = vsub.f32 1.0, %v2154
    %v2156 = vmul.f32 %v2153, %v2155
    %v2157 = vadd.f32 %v2153, %v2156
    %vm2158 = vweird.f32 %v2137
    %vm2159 = vweird.f32 %v2153
    %vm2160 = vmor %vm2158, %vm2159
    %v2161 = vsel %vm2160, %v2153, %v2157
    %v2162 = vand.u32 2147483647, %v2137
    %vm2163 = vcmp.eq.f32.partialorder %v2162, 8.507059e+37
    %v2164 = vand.u32 %v2137, 2147483648
    %v2165 = vor.u32 1.1754944e-38, %v2164
    %v2166 = vsel %vm2163, %v2165, %v2161
    %v2167 = vmul.f32 1.0, %v2166
    %v2168 = vtanh.pop %v2129
    %2170 = vrot.lane.b32.xlu0 %v2084, 64
    %v2171 = vpop.permute.xlu0 %2170
    %v2173 = vmul.f32 %v2152, %v2171
    %v2174 = vmul.f32 %v2152, %v2168
    %2176 = vrot.lane.b32.xlu0 %v2174, 64
    %v2177 = vpop.permute.xlu0 %2176
    %v2179 = vadd.f32 %v2173, %v2177
    %v2180 = vtanh.pop %v2179
    %v2181 = vmul.f32 %v2167, %v2180
    %2183 = vrot.lane.b32.xlu0 %v2181, 64
    %v2184 = vpop.permute.xlu0 %2183
    %v2186 = vsel %vm247, %v2184, %v2079
    %2188 = vrot.lane.b32.xlu0 %v2179, 64
    %v2189 = vpop.permute.xlu0 %2188
    %v2191 = vsel %vm247, %v2189, %v2084
    %v2193 = vsel %vm550, %v2186, 0
    %2195 = vmatpush.msra.mxu0 0.0
    %2196 = vmatpush.msra.mxu0 0.0
    %2197 = vmatpush.msra.mxu0 0.0
    %2198 = vmatpush.msra.mxu0 0.0
    %2199 = vmatpush.msra.mxu0 0.0
    %2200 = vmatpush.msra.mxu0 0.0
    %2201 = vmatpush.msra.mxu0 0.0
    %2202 = vmatpush.msra.mxu0 0.0
    %2203 = vmatpush.msra.mxu0 %v1876
    %2204 = vmatpush.msra.mxu0 %v1874
    %2205 = vmatpush.msra.mxu0 %v1872
    %2206 = vmatpush.msra.mxu0 %v1870
    %2207 = vmatpush.msra.mxu0 %v1868
    %2208 = vmatpush.msra.mxu0 %v1866
    %2209 = vmatpush.msra.mxu0 %v1864
    %2210 = vmatpush.msra.mxu0 %v1862
    %2211 = vmatmul.f32.gmra.mxu0 %v2193
    %v2212 = vpop.f32.mrf.mxu0
    %v2213 = vadd.f32 0.0, %v2212
    %2214 = vdwg.mxu0
    %2215 = vmatpush.msra.mxu0 0.0
    %2216 = vmatpush.msra.mxu0 0.0
    %2217 = vmatpush.msra.mxu0 0.0
    %2218 = vmatpush.msra.mxu0 0.0
    %2219 = vmatpush.msra.mxu0 0.0
    %2220 = vmatpush.msra.mxu0 0.0
    %2221 = vmatpush.msra.mxu0 0.0
    %2222 = vmatpush.msra.mxu0 0.0
    %2223 = vmatpush.msra.mxu0 %v1877
    %2224 = vmatpush.msra.mxu0 %v1875
    %2225 = vmatpush.msra.mxu0 %v1873
    %2226 = vmatpush.msra.mxu0 %v1871
    %2227 = vmatpush.msra.mxu0 %v1869
    %2228 = vmatpush.msra.mxu0 %v1867
    %2229 = vmatpush.msra.mxu0 %v1865
    %2230 = vmatpush.msra.mxu0 %v1863
    %2231 = vmatmul.f32.gmra.mxu0 %v2193
    %v2232 = vpop.f32.mrf.mxu0
    %v2233 = vadd.f32 0.0, %v2232
    %2234 = vdwg.mxu0
    %v2235 = vadd.f32 %v1852, %v2213
    %v2236 = vadd.f32 %v1853, %v2233
    %v2237 = vxor.u32 %v2235, 2147483648
    %v2238 = vxor.u32 %v2236, 2147483648
    %v2239 = vmul.f32 %v2237, 1.442695
    %v2240 = vpow.pop %v2239
    %v2241 = vmul.f32 %v2238, 1.442695
    %v2242 = vpow.pop %v2241
    %v2243 = vadd.f32 %v2240, 1.0
    %v2244 = vadd.f32 %v2242, 1.0
    %v2245 = vrcp.pop %v2243
    %v2246 = vmul.f32 %v2243, %v2245
    %v2247 = vsub.f32 1.0, %v2246
    %v2248 = vmul.f32 %v2245, %v2247
    %v2249 = vadd.f32 %v2245, %v2248
    %vm2250 = vweird.f32 %v2243
    %vm2251 = vweird.f32 %v2245
    %vm2252 = vmor %vm2250, %vm2251
    %v2253 = vsel %vm2252, %v2245, %v2249
    %v2254 = vand.u32 2147483647, %v2243
    %vm2255 = vcmp.eq.f32.partialorder %v2254, 8.507059e+37
    %v2256 = vand.u32 %v2243, 2147483648
    %v2257 = vor.u32 1.1754944e-38, %v2256
    %v2258 = vsel %vm2255, %v2257, %v2253
    %v2259 = vmul.f32 1.0, %v2258
    %v2260 = vrcp.pop %v2244
    %v2261 = vmul.f32 %v2244, %v2260
    %v2262 = vsub.f32 1.0, %v2261
    %v2263 = vmul.f32 %v2260, %v2262
    %v2264 = vadd.f32 %v2260, %v2263
    %vm2265 = vweird.f32 %v2244
    %vm2266 = vweird.f32 %v2260
    %vm2267 = vmor %vm2265, %vm2266
    %v2268 = vsel %vm2267, %v2260, %v2264
    %v2269 = vand.u32 2147483647, %v2244
    %vm2270 = vcmp.eq.f32.partialorder %v2269, 8.507059e+37
    %v2271 = vand.u32 %v2244, 2147483648
    %v2272 = vor.u32 1.1754944e-38, %v2271
    %v2273 = vsel %vm2270, %v2272, %v2268
    %v2274 = vmul.f32 1.0, %v2273
    %v2275 = vtanh.pop %v2236
    %2277 = vrot.lane.b32.xlu0 %v2191, 64
    %v2278 = vpop.permute.xlu0 %2277
    %v2280 = vmul.f32 %v2259, %v2278
    %v2281 = vmul.f32 %v2259, %v2275
    %2283 = vrot.lane.b32.xlu0 %v2281, 64
    %v2284 = vpop.permute.xlu0 %2283
    %v2286 = vadd.f32 %v2280, %v2284
    %v2287 = vtanh.pop %v2286
    %v2288 = vmul.f32 %v2274, %v2287
    %2290 = vrot.lane.b32.xlu0 %v2288, 64
    %v2291 = vpop.permute.xlu0 %2290
    %v2293 = vsel %vm249, %v2291, %v2186
    %2295 = vrot.lane.b32.xlu0 %v2286, 64
    %v2296 = vpop.permute.xlu0 %2295
    %v2298 = vsel %vm249, %v2296, %v2191
    %v2300 = vsel %vm550, %v2293, 0
    %2302 = vmatpush.msra.mxu0 0.0
    %2303 = vmatpush.msra.mxu0 0.0
    %2304 = vmatpush.msra.mxu0 0.0
    %2305 = vmatpush.msra.mxu0 0.0
    %2306 = vmatpush.msra.mxu0 0.0
    %2307 = vmatpush.msra.mxu0 0.0
    %2308 = vmatpush.msra.mxu0 0.0
    %2309 = vmatpush.msra.mxu0 0.0
    %2310 = vmatpush.msra.mxu0 %v1876
    %2311 = vmatpush.msra.mxu0 %v1874
    %2312 = vmatpush.msra.mxu0 %v1872
    %2313 = vmatpush.msra.mxu0 %v1870
    %2314 = vmatpush.msra.mxu0 %v1868
    %2315 = vmatpush.msra.mxu0 %v1866
    %2316 = vmatpush.msra.mxu0 %v1864
    %2317 = vmatpush.msra.mxu0 %v1862
    %2318 = vmatmul.f32.gmra.mxu0 %v2300
    %v2319 = vpop.f32.mrf.mxu0
    %v2320 = vadd.f32 0.0, %v2319
    %2321 = vdwg.mxu0
    %2322 = vmatpush.msra.mxu0 0.0
    %2323 = vmatpush.msra.mxu0 0.0
    %2324 = vmatpush.msra.mxu0 0.0
    %2325 = vmatpush.msra.mxu0 0.0
    %2326 = vmatpush.msra.mxu0 0.0
    %2327 = vmatpush.msra.mxu0 0.0
    %2328 = vmatpush.msra.mxu0 0.0
    %2329 = vmatpush.msra.mxu0 0.0
    %2330 = vmatpush.msra.mxu0 %v1877
    %2331 = vmatpush.msra.mxu0 %v1875
    %2332 = vmatpush.msra.mxu0 %v1873
    %2333 = vmatpush.msra.mxu0 %v1871
    %2334 = vmatpush.msra.mxu0 %v1869
    %2335 = vmatpush.msra.mxu0 %v1867
    %2336 = vmatpush.msra.mxu0 %v1865
    %2337 = vmatpush.msra.mxu0 %v1863
    %2338 = vmatmul.f32.gmra.mxu0 %v2300
    %v2339 = vpop.f32.mrf.mxu0
    %v2340 = vadd.f32 0.0, %v2339
    %2341 = vdwg.mxu0
    %v2342 = vadd.f32 %v1854, %v2320
    %v2343 = vadd.f32 %v1855, %v2340
    %v2344 = vxor.u32 %v2342, 2147483648
    %v2345 = vxor.u32 %v2343, 2147483648
    %v2346 = vmul.f32 %v2344, 1.442695
    %v2347 = vpow.pop %v2346
    %v2348 = vmul.f32 %v2345, 1.442695
    %v2349 = vpow.pop %v2348
    %v2350 = vadd.f32 %v2347, 1.0
    %v2351 = vadd.f32 %v2349, 1.0
    %v2352 = vrcp.pop %v2350
    %v2353 = vmul.f32 %v2350, %v2352
    %v2354 = vsub.f32 1.0, %v2353
    %v2355 = vmul.f32 %v2352, %v2354
    %v2356 = vadd.f32 %v2352, %v2355
    %vm2357 = vweird.f32 %v2350
    %vm2358 = vweird.f32 %v2352
    %vm2359 = vmor %vm2357, %vm2358
    %v2360 = vsel %vm2359, %v2352, %v2356
    %v2361 = vand.u32 2147483647, %v2350
    %vm2362 = vcmp.eq.f32.partialorder %v2361, 8.507059e+37
    %v2363 = vand.u32 %v2350, 2147483648
    %v2364 = vor.u32 1.1754944e-38, %v2363
    %v2365 = vsel %vm2362, %v2364, %v2360
    %v2366 = vmul.f32 1.0, %v2365
    %v2367 = vrcp.pop %v2351
    %v2368 = vmul.f32 %v2351, %v2367
    %v2369 = vsub.f32 1.0, %v2368
    %v2370 = vmul.f32 %v2367, %v2369
    %v2371 = vadd.f32 %v2367, %v2370
    %vm2372 = vweird.f32 %v2351
    %vm2373 = vweird.f32 %v2367
    %vm2374 = vmor %vm2372, %vm2373
    %v2375 = vsel %vm2374, %v2367, %v2371
    %v2376 = vand.u32 2147483647, %v2351
    %vm2377 = vcmp.eq.f32.partialorder %v2376, 8.507059e+37
    %v2378 = vand.u32 %v2351, 2147483648
    %v2379 = vor.u32 1.1754944e-38, %v2378
    %v2380 = vsel %vm2377, %v2379, %v2375
    %v2381 = vmul.f32 1.0, %v2380
    %v2382 = vtanh.pop %v2343
    %2384 = vrot.lane.b32.xlu0 %v2298, 64
    %v2385 = vpop.permute.xlu0 %2384
    %v2387 = vmul.f32 %v2366, %v2385
    %v2388 = vmul.f32 %v2366, %v2382
    %2390 = vrot.lane.b32.xlu0 %v2388, 64
    %v2391 = vpop.permute.xlu0 %2390
    %v2393 = vadd.f32 %v2387, %v2391
    %v2394 = vtanh.pop %v2393
    %v2395 = vmul.f32 %v2381, %v2394
    %2397 = vrot.lane.b32.xlu0 %v2395, 64
    %v2398 = vpop.permute.xlu0 %2397
    %v2400 = vsel %vm251, %v2398, %v2293
    %2402 = vrot.lane.b32.xlu0 %v2393, 64
    %v2403 = vpop.permute.xlu0 %2402
    %v2405 = vsel %vm251, %v2403, %v2298
    %v2407 = vsel %vm550, %v2400, 0
    %2409 = vmatpush.msra.mxu0 0.0
    %2410 = vmatpush.msra.mxu0 0.0
    %2411 = vmatpush.msra.mxu0 0.0
    %2412 = vmatpush.msra.mxu0 0.0
    %2413 = vmatpush.msra.mxu0 0.0
    %2414 = vmatpush.msra.mxu0 0.0
    %2415 = vmatpush.msra.mxu0 0.0
    %2416 = vmatpush.msra.mxu0 0.0
    %2417 = vmatpush.msra.mxu0 %v1876
    %2418 = vmatpush.msra.mxu0 %v1874
    %2419 = vmatpush.msra.mxu0 %v1872
    %2420 = vmatpush.msra.mxu0 %v1870
    %2421 = vmatpush.msra.mxu0 %v1868
    %2422 = vmatpush.msra.mxu0 %v1866
    %2423 = vmatpush.msra.mxu0 %v1864
    %2424 = vmatpush.msra.mxu0 %v1862
    %2425 = vmatmul.f32.gmra.mxu0 %v2407
    %v2426 = vpop.f32.mrf.mxu0
    %v2427 = vadd.f32 0.0, %v2426
    %2428 = vdwg.mxu0
    %2429 = vmatpush.msra.mxu0 0.0
    %2430 = vmatpush.msra.mxu0 0.0
    %2431 = vmatpush.msra.mxu0 0.0
    %2432 = vmatpush.msra.mxu0 0.0
    %2433 = vmatpush.msra.mxu0 0.0
    %2434 = vmatpush.msra.mxu0 0.0
    %2435 = vmatpush.msra.mxu0 0.0
    %2436 = vmatpush.msra.mxu0 0.0
    %2437 = vmatpush.msra.mxu0 %v1877
    %2438 = vmatpush.msra.mxu0 %v1875
    %2439 = vmatpush.msra.mxu0 %v1873
    %2440 = vmatpush.msra.mxu0 %v1871
    %2441 = vmatpush.msra.mxu0 %v1869
    %2442 = vmatpush.msra.mxu0 %v1867
    %2443 = vmatpush.msra.mxu0 %v1865
    %2444 = vmatpush.msra.mxu0 %v1863
    %2445 = vmatmul.f32.gmra.mxu0 %v2407
    %v2446 = vpop.f32.mrf.mxu0
    %v2447 = vadd.f32 0.0, %v2446
    %2448 = vdwg.mxu0
    %v2449 = vadd.f32 %v1856, %v2427
    %v2450 = vadd.f32 %v1857, %v2447
    %v2451 = vxor.u32 %v2449, 2147483648
    %v2452 = vxor.u32 %v2450, 2147483648
    %v2453 = vmul.f32 %v2451, 1.442695
    %v2454 = vpow.pop %v2453
    %v2455 = vmul.f32 %v2452, 1.442695
    %v2456 = vpow.pop %v2455
    %v2457 = vadd.f32 %v2454, 1.0
    %v2458 = vadd.f32 %v2456, 1.0
    %v2459 = vrcp.pop %v2457
    %v2460 = vmul.f32 %v2457, %v2459
    %v2461 = vsub.f32 1.0, %v2460
    %v2462 = vmul.f32 %v2459, %v2461
    %v2463 = vadd.f32 %v2459, %v2462
    %vm2464 = vweird.f32 %v2457
    %vm2465 = vweird.f32 %v2459
    %vm2466 = vmor %vm2464, %vm2465
    %v2467 = vsel %vm2466, %v2459, %v2463
    %v2468 = vand.u32 2147483647, %v2457
    %vm2469 = vcmp.eq.f32.partialorder %v2468, 8.507059e+37
    %v2470 = vand.u32 %v2457, 2147483648
    %v2471 = vor.u32 1.1754944e-38, %v2470
    %v2472 = vsel %vm2469, %v2471, %v2467
    %v2473 = vmul.f32 1.0, %v2472
    %v2474 = vrcp.pop %v2458
    %v2475 = vmul.f32 %v2458, %v2474
    %v2476 = vsub.f32 1.0, %v2475
    %v2477 = vmul.f32 %v2474, %v2476
    %v2478 = vadd.f32 %v2474, %v2477
    %vm2479 = vweird.f32 %v2458
    %vm2480 = vweird.f32 %v2474
    %vm2481 = vmor %vm2479, %vm2480
    %v2482 = vsel %vm2481, %v2474, %v2478
    %v2483 = vand.u32 2147483647, %v2458
    %vm2484 = vcmp.eq.f32.partialorder %v2483, 8.507059e+37
    %v2485 = vand.u32 %v2458, 2147483648
    %v2486 = vor.u32 1.1754944e-38, %v2485
    %v2487 = vsel %vm2484, %v2486, %v2482
    %v2488 = vmul.f32 1.0, %v2487
    %v2489 = vtanh.pop %v2450
    %2491 = vrot.lane.b32.xlu0 %v2405, 64
    %v2492 = vpop.permute.xlu0 %2491
    %v2494 = vmul.f32 %v2473, %v2492
    %v2495 = vmul.f32 %v2473, %v2489
    %2497 = vrot.lane.b32.xlu0 %v2495, 64
    %v2498 = vpop.permute.xlu0 %2497
    %v2500 = vadd.f32 %v2494, %v2498
    %v2501 = vtanh.pop %v2500
    %v2502 = vmul.f32 %v2488, %v2501
    %2504 = vrot.lane.b32.xlu0 %v2502, 64
    %v2505 = vpop.permute.xlu0 %2504
    %v2507 = vsel %vm253, %v2505, %v2400
    %2509 = vrot.lane.b32.xlu0 %v2500, 64
    %v2510 = vpop.permute.xlu0 %2509
    %v2512 = vsel %vm253, %v2510, %v2405
    %v2514 = vsel %vm550, %v2507, 0
    %2516 = vmatpush.msra.mxu0 0.0
    %2517 = vmatpush.msra.mxu0 0.0
    %2518 = vmatpush.msra.mxu0 0.0
    %2519 = vmatpush.msra.mxu0 0.0
    %2520 = vmatpush.msra.mxu0 0.0
    %2521 = vmatpush.msra.mxu0 0.0
    %2522 = vmatpush.msra.mxu0 0.0
    %2523 = vmatpush.msra.mxu0 0.0
    %2524 = vmatpush.msra.mxu0 %v1876
    %2525 = vmatpush.msra.mxu0 %v1874
    %2526 = vmatpush.msra.mxu0 %v1872
    %2527 = vmatpush.msra.mxu0 %v1870
    %2528 = vmatpush.msra.mxu0 %v1868
    %2529 = vmatpush.msra.mxu0 %v1866
    %2530 = vmatpush.msra.mxu0 %v1864
    %2531 = vmatpush.msra.mxu0 %v1862
    %2532 = vmatmul.f32.gmra.mxu0 %v2514
    %v2533 = vpop.f32.mrf.mxu0
    %v2534 = vadd.f32 0.0, %v2533
    %2535 = vdwg.mxu0
    %2536 = vmatpush.msra.mxu0 0.0
    %2537 = vmatpush.msra.mxu0 0.0
    %2538 = vmatpush.msra.mxu0 0.0
    %2539 = vmatpush.msra.mxu0 0.0
    %2540 = vmatpush.msra.mxu0 0.0
    %2541 = vmatpush.msra.mxu0 0.0
    %2542 = vmatpush.msra.mxu0 0.0
    %2543 = vmatpush.msra.mxu0 0.0
    %2544 = vmatpush.msra.mxu0 %v1877
    %2545 = vmatpush.msra.mxu0 %v1875
    %2546 = vmatpush.msra.mxu0 %v1873
    %2547 = vmatpush.msra.mxu0 %v1871
    %2548 = vmatpush.msra.mxu0 %v1869
    %2549 = vmatpush.msra.mxu0 %v1867
    %2550 = vmatpush.msra.mxu0 %v1865
    %2551 = vmatpush.msra.mxu0 %v1863
    %2552 = vmatmul.f32.gmra.mxu0 %v2514
    %v2553 = vpop.f32.mrf.mxu0
    %v2554 = vadd.f32 0.0, %v2553
    %2555 = vdwg.mxu0
    %v2556 = vadd.f32 %v1858, %v2534
    %v2557 = vadd.f32 %v1859, %v2554
    %v2558 = vxor.u32 %v2556, 2147483648
    %v2559 = vxor.u32 %v2557, 2147483648
    %v2560 = vmul.f32 %v2558, 1.442695
    %v2561 = vpow.pop %v2560
    %v2562 = vmul.f32 %v2559, 1.442695
    %v2563 = vpow.pop %v2562
    %v2564 = vadd.f32 %v2561, 1.0
    %v2565 = vadd.f32 %v2563, 1.0
    %v2566 = vrcp.pop %v2564
    %v2567 = vmul.f32 %v2564, %v2566
    %v2568 = vsub.f32 1.0, %v2567
    %v2569 = vmul.f32 %v2566, %v2568
    %v2570 = vadd.f32 %v2566, %v2569
    %vm2571 = vweird.f32 %v2564
    %vm2572 = vweird.f32 %v2566
    %vm2573 = vmor %vm2571, %vm2572
    %v2574 = vsel %vm2573, %v2566, %v2570
    %v2575 = vand.u32 2147483647, %v2564
    %vm2576 = vcmp.eq.f32.partialorder %v2575, 8.507059e+37
    %v2577 = vand.u32 %v2564, 2147483648
    %v2578 = vor.u32 1.1754944e-38, %v2577
    %v2579 = vsel %vm2576, %v2578, %v2574
    %v2580 = vmul.f32 1.0, %v2579
    %v2581 = vrcp.pop %v2565
    %v2582 = vmul.f32 %v2565, %v2581
    %v2583 = vsub.f32 1.0, %v2582
    %v2584 = vmul.f32 %v2581, %v2583
    %v2585 = vadd.f32 %v2581, %v2584
    %vm2586 = vweird.f32 %v2565
    %vm2587 = vweird.f32 %v2581
    %vm2588 = vmor %vm2586, %vm2587
    %v2589 = vsel %vm2588, %v2581, %v2585
    %v2590 = vand.u32 2147483647, %v2565
    %vm2591 = vcmp.eq.f32.partialorder %v2590, 8.507059e+37
    %v2592 = vand.u32 %v2565, 2147483648
    %v2593 = vor.u32 1.1754944e-38, %v2592
    %v2594 = vsel %vm2591, %v2593, %v2589
    %v2595 = vmul.f32 1.0, %v2594
    %v2596 = vtanh.pop %v2557
    %2598 = vrot.lane.b32.xlu0 %v2512, 64
    %v2599 = vpop.permute.xlu0 %2598
    %v2601 = vmul.f32 %v2580, %v2599
    %v2602 = vmul.f32 %v2580, %v2596
    %2604 = vrot.lane.b32.xlu0 %v2602, 64
    %v2605 = vpop.permute.xlu0 %2604
    %v2607 = vadd.f32 %v2601, %v2605
    %v2608 = vtanh.pop %v2607
    %v2609 = vmul.f32 %v2595, %v2608
    %2611 = vrot.lane.b32.xlu0 %v2609, 64
    %v2612 = vpop.permute.xlu0 %2611
    %v2614 = vsel %vm255, %v2612, %v2507
    %2616 = vrot.lane.b32.xlu0 %v2607, 64
    %v2617 = vpop.permute.xlu0 %2616
    %v2619 = vsel %vm255, %v2617, %v2512
    %v2621 = vsel %vm550, %v2614, 0
    %2623 = vmatpush.msra.mxu0 0.0
    %2624 = vmatpush.msra.mxu0 0.0
    %2625 = vmatpush.msra.mxu0 0.0
    %2626 = vmatpush.msra.mxu0 0.0
    %2627 = vmatpush.msra.mxu0 0.0
    %2628 = vmatpush.msra.mxu0 0.0
    %2629 = vmatpush.msra.mxu0 0.0
    %2630 = vmatpush.msra.mxu0 0.0
    %2631 = vmatpush.msra.mxu0 %v1876
    %2632 = vmatpush.msra.mxu0 %v1874
    %2633 = vmatpush.msra.mxu0 %v1872
    %2634 = vmatpush.msra.mxu0 %v1870
    %2635 = vmatpush.msra.mxu0 %v1868
    %2636 = vmatpush.msra.mxu0 %v1866
    %2637 = vmatpush.msra.mxu0 %v1864
    %2638 = vmatpush.msra.mxu0 %v1862
    %2639 = vmatmul.f32.gmra.mxu0 %v2621
    %v2640 = vpop.f32.mrf.mxu0
    %v2641 = vadd.f32 0.0, %v2640
    %2642 = vdwg.mxu0
    %2643 = vmatpush.msra.mxu0 0.0
    %2644 = vmatpush.msra.mxu0 0.0
    %2645 = vmatpush.msra.mxu0 0.0
    %2646 = vmatpush.msra.mxu0 0.0
    %2647 = vmatpush.msra.mxu0 0.0
    %2648 = vmatpush.msra.mxu0 0.0
    %2649 = vmatpush.msra.mxu0 0.0
    %2650 = vmatpush.msra.mxu0 0.0
    %2651 = vmatpush.msra.mxu0 %v1877
    %2652 = vmatpush.msra.mxu0 %v1875
    %2653 = vmatpush.msra.mxu0 %v1873
    %2654 = vmatpush.msra.mxu0 %v1871
    %2655 = vmatpush.msra.mxu0 %v1869
    %2656 = vmatpush.msra.mxu0 %v1867
    %2657 = vmatpush.msra.mxu0 %v1865
    %2658 = vmatpush.msra.mxu0 %v1863
    %2659 = vmatmul.f32.gmra.mxu0 %v2621
    %v2660 = vpop.f32.mrf.mxu0
    %v2661 = vadd.f32 0.0, %v2660
    %2662 = vdwg.mxu0
    %v2663 = vadd.f32 %v1860, %v2641
    %v2664 = vadd.f32 %v1861, %v2661
    %v2665 = vxor.u32 %v2663, 2147483648
    %v2666 = vxor.u32 %v2664, 2147483648
    %v2667 = vmul.f32 %v2665, 1.442695
    %v2668 = vpow.pop %v2667
    %v2669 = vmul.f32 %v2666, 1.442695
    %v2670 = vpow.pop %v2669
    %v2671 = vadd.f32 %v2668, 1.0
    %v2672 = vadd.f32 %v2670, 1.0
    %v2673 = vrcp.pop %v2671
    %v2674 = vmul.f32 %v2671, %v2673
    %v2675 = vsub.f32 1.0, %v2674
    %v2676 = vmul.f32 %v2673, %v2675
    %v2677 = vadd.f32 %v2673, %v2676
    %vm2678 = vweird.f32 %v2671
    %vm2679 = vweird.f32 %v2673
    %vm2680 = vmor %vm2678, %vm2679
    %v2681 = vsel %vm2680, %v2673, %v2677
    %v2682 = vand.u32 2147483647, %v2671
    %vm2683 = vcmp.eq.f32.partialorder %v2682, 8.507059e+37
    %v2684 = vand.u32 %v2671, 2147483648
    %v2685 = vor.u32 1.1754944e-38, %v2684
    %v2686 = vsel %vm2683, %v2685, %v2681
    %v2687 = vmul.f32 1.0, %v2686
    %v2688 = vrcp.pop %v2672
    %v2689 = vmul.f32 %v2672, %v2688
    %v2690 = vsub.f32 1.0, %v2689
    %v2691 = vmul.f32 %v2688, %v2690
    %v2692 = vadd.f32 %v2688, %v2691
    %vm2693 = vweird.f32 %v2672
    %vm2694 = vweird.f32 %v2688
    %vm2695 = vmor %vm2693, %vm2694
    %v2696 = vsel %vm2695, %v2688, %v2692
    %v2697 = vand.u32 2147483647, %v2672
    %vm2698 = vcmp.eq.f32.partialorder %v2697, 8.507059e+37
    %v2699 = vand.u32 %v2672, 2147483648
    %v2700 = vor.u32 1.1754944e-38, %v2699
    %v2701 = vsel %vm2698, %v2700, %v2696
    %v2702 = vmul.f32 1.0, %v2701
    %v2703 = vtanh.pop %v2664
    %2705 = vrot.lane.b32.xlu0 %v2619, 64
    %v2706 = vpop.permute.xlu0 %2705
    %v2708 = vmul.f32 %v2687, %v2706
    %v2709 = vmul.f32 %v2687, %v2703
    %2711 = vrot.lane.b32.xlu0 %v2709, 64
    %v2712 = vpop.permute.xlu0 %2711
    %v2714 = vadd.f32 %v2708, %v2712
    %v2715 = vtanh.pop %v2714
    %v2716 = vmul.f32 %v2702, %v2715
    %2718 = vrot.lane.b32.xlu0 %v2716, 64
    %v2719 = vpop.permute.xlu0 %2718
    %v2721 = vsel %vm257, %v2719, %v2614
    %v2722 = vld [vmem:[%s11] sm:$0xff]
    %v2723 = vld [vmem:[%s11 + $0x8] sm:$0xff]
    %v2724 = vld [vmem:[%s11 + $0x10] sm:$0xff]
    %v2725 = vld [vmem:[%s11 + $0x18] sm:$0xff]
    %v2726 = vld [vmem:[%s11 + $0x20] sm:$0xff]
    %v2727 = vld [vmem:[%s11 + $0x28] sm:$0xff]
    %v2728 = vld [vmem:[%s11 + $0x30] sm:$0xff]
    %v2729 = vld [vmem:[%s11 + $0x38] sm:$0xff]
    %v2730 = vld [vmem:[%s12] sm:$0x1]
    %v2732 = vperm.slane %v2730, 0
    %v2735 = vsel %vm550, %v2721, 0
    %2737 = vmatpush.msra.mxu0 0.0
    %2738 = vmatpush.msra.mxu0 0.0
    %2739 = vmatpush.msra.mxu0 0.0
    %2740 = vmatpush.msra.mxu0 0.0
    %2741 = vmatpush.msra.mxu0 0.0
    %2742 = vmatpush.msra.mxu0 0.0
    %2743 = vmatpush.msra.mxu0 0.0
    %2744 = vmatpush.msra.mxu0 0.0
    %2745 = vmatpush.msra.mxu0 %v2729
    %2746 = vmatpush.msra.mxu0 %v2728
    %2747 = vmatpush.msra.mxu0 %v2727
    %2748 = vmatpush.msra.mxu0 %v2726
    %2749 = vmatpush.msra.mxu0 %v2725
    %2750 = vmatpush.msra.mxu0 %v2724
    %2751 = vmatpush.msra.mxu0 %v2723
    %2752 = vmatpush.msra.mxu0 %v2722
    %2753 = vmatmul.f32.gmra.mxu0 %v2735
    %v2754 = vpop.f32.mrf.mxu0
    %v2755 = vadd.f32 %v2732, %v2754
    %2756 = vdwg.mxu0
    %vm2757 = vcmask 39936
    %2758 = vst.msk [vmem:[#allocation11] sm:$0xff] %vm2757, %v2755
    // Predicated region
    $region74: #{tpu_custom_call.1} parent=1 // pred_check
      _
    $region75: #{tpu_custom_call.1} parent=1 // pred_check_branch
      %2760 = sbr.rel (0) target = $region77
    $region76: #{tpu_custom_call.1} parent=1 // pred_region
      %2762 = vsyncadd [#allocation4], 0
      %s2764 = sshll.u32 [#allocation11], 4
      %s2765 = int_to_ptr.vmem [resolvable:$true] %s2764
      %s2766 = sshll.u32 %s13, 4
      %s2767 = int_to_ptr.hbm [resolvable:$true] %s2766
      %2769 = dma.vmem_to_hbm [thread:$0]  %s2765, 128, %s2767, [#allocation4]
    $region77: #{tpu_custom_call.1} parent=1 // pred_fallthru
      _
    // Predicated region
    $region78: #{tpu_custom_call.1} parent=1 // pred_check
      _
    $region79: #{tpu_custom_call.1} parent=1 // pred_check_branch
      %2771 = sbr.rel (0) target = $region81
    $region80: #{tpu_custom_call.1} parent=1 // pred_region
      %2773 = dma.done [#allocation4], 128
    $region81: #{tpu_custom_call.1} parent=1 // pred_fallthru
      _
    %2774 = vsyncpa [#allocation3], 1
    %2775 = vsyncpa [#allocation6], 1
    %2776 = vsyncpa [#allocation9], 1
    %2777 = vsyncpa [#allocation4], 1

</llo_original>
